<compile_context>
chip_gen: v7x
topology: tpu7x:2x2x1
jax: 0.10.0
libtpu: 0.0.40
codegen_flags: <defaults>
</compile_context>

<pallas_src>
import functools

import jax
import jax.numpy as jnp
from jax import lax
from jax.experimental import pallas as pl
from jax.experimental.pallas import tpu as pltpu

EPS = 1e-5
_LANE = 128
N_NOISE = 7  # noise tensors for links: AC, AE, BC, BF, CD, DE, DF


def _round_up(x, m):
    return (x + m - 1) // m * m


# --------------------------------------------------------------------------
# Matmul precision selection (one-time probe, cached)
# --------------------------------------------------------------------------
_MM_PRECISION = None


def _probe_kernel(a_ref, b_ref, o_ref):
    o_ref[...] = jnp.dot(a_ref[...], b_ref[...],
                         preferred_element_type=jnp.float32,
                         precision=lax.Precision.HIGH)


def _matmul_precision():
    """Use HIGH (bf16_3x) when Mosaic supports it and it stays f32-accurate;
    otherwise HIGHEST.  Decided once, cached for all subsequent calls."""
    global _MM_PRECISION
    if _MM_PRECISION is not None:
        return _MM_PRECISION
    try:
        a = jax.random.normal(jax.random.PRNGKey(1), (8, _LANE), jnp.float32)
        b = jax.random.normal(jax.random.PRNGKey(2), (_LANE, _LANE), jnp.float32)
        got = pl.pallas_call(
            _probe_kernel,
            out_shape=jax.ShapeDtypeStruct((8, _LANE), jnp.float32),
            in_specs=[pl.BlockSpec(memory_space=pltpu.MemorySpace.VMEM)] * 2,
            out_specs=pl.BlockSpec(memory_space=pltpu.MemorySpace.VMEM),
        )(a, b)
        ref = jnp.dot(a, b, precision=lax.Precision.HIGHEST)
        ok = bool(jnp.allclose(got, ref, rtol=1e-5, atol=1e-4))
        _MM_PRECISION = lax.Precision.HIGH if ok else lax.Precision.HIGHEST
    except Exception:
        _MM_PRECISION = lax.Precision.HIGHEST
    return _MM_PRECISION


# --------------------------------------------------------------------------
# One-time parameter packing (hoisted out of the forward path)
# --------------------------------------------------------------------------
def _place(slab, block, r, c):
    return slab.at[r:r + block.shape[0], c:c + block.shape[1]].set(block)


def pack_butterfly_params(params, scale_power=1.0):
    """Pack the 36 parameter tensors into two lane-dense slabs.

    Call ONCE per parameter update; the result is reused by every forward.
    Lane layout (o = output_size, i = input_size, h = hidden_size):
      outputs : x_A@[0,o)  x_B@[o,2o)  x_C@[2o,3o)  x_D@[3o,4o)
                x_E@[4o,4o+2i)  x_F@[4o+2i,4o+4i)
      hiddens : module-1 @[0,h), module-2 @[h,2h)
      E|F in  : nDE-only rows @[2o,3o), shared x_D rows @[3o,4o),
                nDF-only rows @[4o,5o)   (noise via extra lanes is exact
                because the pre-ReLU first layer is linear)
    """
    IN = params["A"][0].shape[0]
    HID = params["A"][0].shape[1]
    OUT = params["A"][2].shape[1]
    P = _round_up(max(2 * IN, 2 * HID, 5 * OUT, 4 * OUT + 4 * IN), _LANE)

    f32 = jnp.float32
    s = float(scale_power)
    wA, wB, wC, wD, wE, wF = (params[k] for k in "ABCDEF")
    zmat = lambda: jnp.zeros((P, P), f32)
    zrow = lambda: jnp.zeros((1, P), f32)

    # ---- fused, zero-padded weight blocks (8, P, P) -----------------------
    w1_ab = _place(_place(zmat(), wA[0], 0, 0), wB[0], IN, HID)
    w2_ab = _place(_place(zmat(), wA[2], 0, 0), wB[2], HID, OUT)
    w1_c = _place(zmat(), wC[0], 0, 0)
    w2_c = _place(zmat(), wC[2], 0, 2 * OUT)
    w1_d = _place(zmat(), wD[0], 2 * OUT, 0)
    w2_d = _place(zmat(), wD[2], 0, 3 * OUT)              # x_D lanes only
    w1_ef = zmat()
    w1_ef = _place(w1_ef, wE[0][:OUT], 0, 0)               # x_A(+nAE) -> E
    w1_ef = _place(w1_ef, wF[0][:OUT], OUT, HID)           # x_B(+nBF) -> F
    w1_ef = _place(w1_ef, wE[0][OUT:], 3 * OUT, 0)         # x_D       -> E
    w1_ef = _place(w1_ef, wF[0][OUT:], 3 * OUT, HID)       # x_D       -> F
    w1_ef = _place(w1_ef, wE[0][OUT:], 2 * OUT, 0)         # nDE only  -> E
    w1_ef = _place(w1_ef, wF[0][OUT:], 4 * OUT, HID)       # nDF only  -> F
    w2_ef = _place(_place(zmat(), wE[2], 0, 4 * OUT),
                   wF[2], HID, 4 * OUT + 2 * IN)
    wslab = jnp.stack([w1_ab, w2_ab, w1_c, w2_c, w1_d, w2_d, w1_ef, w2_ef])

    # ---- vector params (b1, b2, gamma*scale, beta*scale) per stage (16, P) -
    rows = [
        # A|B
        _place(_place(zrow(), wA[1], 0, 0), wB[1], 0, HID),
        _place(_place(zrow(), wA[3], 0, 0), wB[3], 0, OUT),
        _place(_place(zrow(), wA[4] * s, 0, 0), wB[4] * s, 0, OUT),
        _place(_place(zrow(), wA[5] * s, 0, 0), wB[5] * s, 0, OUT),
        # C
        _place(zrow(), wC[1], 0, 0),
        _place(zrow(), wC[3], 0, 2 * OUT),
        _place(zrow(), wC[4] * s, 0, 2 * OUT),
        _place(zrow(), wC[5] * s, 0, 2 * OUT),
        # D
        _place(zrow(), wD[1], 0, 0),
        _place(zrow(), wD[3], 0, 3 * OUT),
        _place(zrow(), wD[4] * s, 0, 3 * OUT),
        _place(zrow(), wD[5] * s, 0, 3 * OUT),
        # E|F
        _place(_place(zrow(), wE[1], 0, 0), wF[1], 0, HID),
        _place(_place(zrow(), wE[3], 0, 4 * OUT), wF[3], 0, 4 * OUT + 2 * IN),
        _place(_place(zrow(), wE[4] * s, 0, 4 * OUT), wF[4] * s, 0, 4 * OUT + 2 * IN),
        _place(_place(zrow(), wE[5] * s, 0, 4 * OUT), wF[5] * s, 0, 4 * OUT + 2 * IN),
    ]
    vecslab = jnp.concatenate(rows, axis=0)               # (16, P)

    return {"wslab": wslab, "vecslab": vecslab, "dims": (IN, HID, OUT, P)}


# --------------------------------------------------------------------------
# Kernel
# --------------------------------------------------------------------------
def _make_kernel(has_noise, std, precision):
    """has_noise / std / precision are compile-time (baked into the closure)."""

    def kernel(*refs):
        if has_noise:
            x_ref, w_ref, vec_ref, noise_ref, o_ref = refs
        else:
            x_ref, w_ref, vec_ref, o_ref = refs
            noise_ref = None

        x = x_ref[...]                                    # (B, P)
        inv_b = 1.0 / x.shape[0]

        def sfc(a, s):
            # Fused SimpleFullyConnected stage s (0=A|B, 1=C, 2=D, 3=E|F):
            #   Linear -> ReLU -> Linear -> BatchNorm1d(training) * scale_power
            w1 = w_ref[2 * s]                             # (P, P) padded block
            w2 = w_ref[2 * s + 1]
            b1 = vec_ref[4 * s + 0:4 * s + 1, :]          # (1, P)
            b2 = vec_ref[4 * s + 1:4 * s + 2, :]
            g = vec_ref[4 * s + 2:4 * s + 3, :]           # gamma * scale_power
            bt = vec_ref[4 * s + 3:4 * s + 4, :]          # beta  * scale_power
            h = jnp.dot(a, w1, preferred_element_type=jnp.float32,
                        precision=precision) + b1
            h = jnp.maximum(h, 0.0)
            y = jnp.dot(h, w2, preferred_element_type=jnp.float32,
                        precision=precision) + b2
            # Both sublane reductions issued back-to-back (parallel in XLU),
            # then var = E[y^2] - mean^2 (clamped); biased var, eps=1e-5.
            sum_y = jnp.sum(y, axis=0, keepdims=True)
            sum_yy = jnp.sum(y * y, axis=0, keepdims=True)
            mean = sum_y * inv_b
            var = jnp.maximum(sum_yy * inv_b - mean * mean, 0.0)
            return (y - mean) * lax.rsqrt(var + EPS) * g + bt

        def add_noise(a, i):
            # std baked in-kernel: 3 VPU multiplies that hide under MXU slack.
            return a + noise_ref[i] * std if has_noise else a

        # Lane layout (o = out_size, i = in_size): outputs never overlap, so
        # the epilogue is a plain add (no mask / iota / where).
        x_ab = sfc(x, 0)                                  # x_A|x_B
        x_c = sfc(add_noise(x_ab, 0), 1)                  # x_C
        x_d = sfc(add_noise(x_c, 1), 2)                   # x_D
        x_ef = sfc(add_noise(x_ab + x_d, 2), 3)           # x_E|x_F
        o_ref[...] = (x_ab + x_c + x_d + x_ef).astype(o_ref.dtype)

    return kernel


# --------------------------------------------------------------------------
# Forward (steady-state path: pad per-call data, launch one fused kernel)
# --------------------------------------------------------------------------
@functools.partial(jax.jit, static_argnames=("dims", "std", "precision"))
def _forward_impl(x1, x2, wslab, vecslab, noise, dims, std, precision):
    IN, _HID, OUT, P = dims
    B = x1.shape[0]
    f32 = jnp.float32
    xin = jnp.zeros((B, P), f32).at[:, :IN].set(x1).at[:, IN:2 * IN].set(x2)

    has_noise = (noise is not None) and (std != 0.0)
    inputs = [xin, wslab, vecslab]
    if has_noise:
        nAC, nAE, nBC, nBF, nCD, nDE, nDF = noise
        z = jnp.zeros((B, P), f32)
        n_c = z.at[:, :OUT].set(nAC).at[:, OUT:2 * OUT].set(nBC)
        n_d = z.at[:, 2 * OUT:3 * OUT].set(nCD)
        n_ef = (z.at[:, :OUT].set(nAE).at[:, OUT:2 * OUT].set(nBF)
                 .at[:, 2 * OUT:3 * OUT].set(nDE)
                 .at[:, 4 * OUT:5 * OUT].set(nDF))
        inputs.append(jnp.stack([n_c, n_d, n_ef]))        # (3, B, P), unscaled

    out = pl.pallas_call(
        _make_kernel(has_noise, std, precision),
        out_shape=jax.ShapeDtypeStruct((B, P), f32),
        in_specs=[pl.BlockSpec(memory_space=pltpu.MemorySpace.VMEM)
                  for _ in inputs],
        out_specs=pl.BlockSpec(memory_space=pltpu.MemorySpace.VMEM),
    )(*inputs)

    x_A = out[:, 0:OUT]
    x_B = out[:, OUT:2 * OUT]
    x_C = out[:, 2 * OUT:3 * OUT]
    x_D = out[:, 3 * OUT:4 * OUT]
    x_E = out[:, 4 * OUT:4 * OUT + 2 * IN]
    x_F = out[:, 4 * OUT + 2 * IN:4 * OUT + 4 * IN]
    return x_E, x_F, [x_A, x_B, x_C, x_D, x_E, x_F]


def butterfly_forward(x1, x2, packed, noise=None, noise_std_dev=0.0):
    """Pallas implementation of ButterflyNetwork.forward (dropped=None path).

    `packed` comes from pack_butterfly_params (built once per param update).
    `noise` is the pre-sampled standard-normal noise (order AC,AE,BC,BF,CD,DE,DF).
    """
    noise_t = None if noise is None else tuple(noise)
    return _forward_impl(x1, x2, packed["wslab"], packed["vecslab"], noise_t,
                         dims=packed["dims"], std=float(noise_std_dev),
                         precision=_matmul_precision())


# --------------------------------------------------------------------------
# Pure-JAX reference (PyTorch-faithful, for verification)
# --------------------------------------------------------------------------
def _sfc_ref(x, p):
    w1, b1, w2, b2, g, bt = p
    h = jnp.maximum(jnp.dot(x, w1, precision=lax.Precision.HIGHEST) + b1, 0.0)
    y = jnp.dot(h, w2, precision=lax.Precision.HIGHEST) + b2
    mean = jnp.mean(y, axis=0, keepdims=True)
    var = jnp.mean((y - mean) ** 2, axis=0, keepdims=True)
    return (y - mean) * lax.rsqrt(var + EPS) * g + bt


def _butterfly_ref(x1, x2, params, noise, std, scale):
    nAC, nAE, nBC, nBF, nCD, nDE, nDF = noise
    x_A = _sfc_ref(x1, params["A"]) * scale
    x_B = _sfc_ref(x2, params["B"]) * scale
    x_C = _sfc_ref(jnp.concatenate([x_A + nAC * std, x_B + nBC * std], -1),
                   params["C"]) * scale
    x_D = _sfc_ref(x_C + nCD * std, params["D"]) * scale
    x_E = _sfc_ref(jnp.concatenate([x_A + nAE * std, x_D + nDE * std], -1),
                   params["E"]) * scale
    x_F = _sfc_ref(jnp.concatenate([x_B + nBF * std, x_D + nDF * std], -1),
                   params["F"]) * scale
    return x_E, x_F, [x_A, x_B, x_C, x_D, x_E, x_F]


def init_sfc_params(key, input_size, hidden_size, output_size):
    k1, k2, k3, k4 = jax.random.split(key, 4)
    s1 = 1.0 / float(input_size) ** 0.5
    s2 = 1.0 / float(hidden_size) ** 0.5
    w1 = jax.random.uniform(k1, (input_size, hidden_size), jnp.float32, -s1, s1)
    b1 = jax.random.uniform(k2, (1, hidden_size), jnp.float32, -s1, s1)
    w2 = jax.random.uniform(k3, (hidden_size, output_size), jnp.float32, -s2, s2)
    b2 = jax.random.uniform(k4, (1, output_size), jnp.float32, -s2, s2)
    gamma = jnp.ones((1, output_size), jnp.float32)
    beta = jnp.zeros((1, output_size), jnp.float32)
    return [w1, b1, w2, b2, gamma, beta]


if __name__ == "__main__":
    key = jax.random.PRNGKey(0)
    batch, input_size, hidden_size, output_size = 8, 16, 32, 16
    noise_std_dev, scale_power = 0.05, 0.5

    keys = jax.random.split(key, 16)
    x1 = jax.random.normal(keys[0], (batch, input_size), jnp.float32)
    x2 = jax.random.normal(keys[1], (batch, input_size), jnp.float32)

    params = {
        "A": init_sfc_params(keys[2], input_size, hidden_size, output_size),
        "B": init_sfc_params(keys[3], input_size, hidden_size, output_size),
        "C": init_sfc_params(keys[4], 2 * output_size, hidden_size, output_size),
        "D": init_sfc_params(keys[5], output_size, hidden_size, output_size),
        "E": init_sfc_params(keys[6], 2 * output_size, hidden_size, 2 * input_size),
        "F": init_sfc_params(keys[7], 2 * output_size, hidden_size, 2 * input_size),
    }
    # pre-sampled standard-normal noise for add_noise() at each link
    # (order: AC, AE, BC, BF, CD, DE, DF)
    noise = [jax.random.normal(keys[8 + i], (batch, output_size), jnp.float32)
             for i in range(N_NOISE)]

    packed = pack_butterfly_params(params, scale_power)   # once per param update
    y1, y2, inter = butterfly_forward(x1, x2, packed, noise, noise_std_dev)
    jax.block_until_ready((y1, y2, inter))

    # verify against the pure-JAX (PyTorch-faithful) reference
    y1_r, y2_r, inter_r = _butterfly_ref(x1, x2, params, noise,
                                         noise_std_dev, scale_power)
    for got, ref in zip([y1, y2] + list(inter), [y1_r, y2_r] + list(inter_r)):
        assert jnp.allclose(got, ref, rtol=1e-4, atol=1e-4), "mismatch vs reference"

    print("KERNEL_OK")
</pallas_src>

<mosaic_0001>
module attributes {stable_mosaic.version = 11 : i64} {
  func.func @kernel(%arg0: memref<8x128xf32, #tpu.memory_space<vmem>>, %arg1: memref<8x128x128xf32, #tpu.memory_space<vmem>>, %arg2: memref<16x128xf32, #tpu.memory_space<vmem>>, %arg3: memref<3x8x128xf32, #tpu.memory_space<vmem>>, %arg4: memref<8x128xf32, #tpu.memory_space<vmem>>) attributes {dimension_semantics = [], scalar_prefetch = 0 : i64, scratch_operands = 0 : i64, tpu.core_type = #tpu.core_type<tc>} {
    %c0 = arith.constant 0 : index
    %c0_0 = arith.constant 0 : index
    %0 = vector.load %arg0[%c0, %c0_0] : memref<8x128xf32, #tpu.memory_space<vmem>>, vector<8x128xf32>
    %c0_1 = arith.constant 0 : index
    %c0_2 = arith.constant 0 : index
    %c0_3 = arith.constant 0 : index
    %1 = vector.load %arg1[%c0_1, %c0_2, %c0_3] : memref<8x128x128xf32, #tpu.memory_space<vmem>>, vector<1x128x128xf32>
    %2 = vector.shape_cast %1 : vector<1x128x128xf32> to vector<128x128xf32>
    %c1 = arith.constant 1 : index
    %c0_4 = arith.constant 0 : index
    %c0_5 = arith.constant 0 : index
    %3 = vector.load %arg1[%c1, %c0_4, %c0_5] : memref<8x128x128xf32, #tpu.memory_space<vmem>>, vector<1x128x128xf32>
    %4 = vector.shape_cast %3 : vector<1x128x128xf32> to vector<128x128xf32>
    %c0_6 = arith.constant 0 : index
    %c0_7 = arith.constant 0 : index
    %5 = vector.load %arg2[%c0_6, %c0_7] : memref<16x128xf32, #tpu.memory_space<vmem>>, vector<1x128xf32>
    %c1_8 = arith.constant 1 : index
    %c0_9 = arith.constant 0 : index
    %6 = vector.load %arg2[%c1_8, %c0_9] : memref<16x128xf32, #tpu.memory_space<vmem>>, vector<1x128xf32>
    %c2 = arith.constant 2 : index
    %c0_10 = arith.constant 0 : index
    %7 = vector.load %arg2[%c2, %c0_10] : memref<16x128xf32, #tpu.memory_space<vmem>>, vector<1x128xf32>
    %c3 = arith.constant 3 : index
    %c0_11 = arith.constant 0 : index
    %8 = vector.load %arg2[%c3, %c0_11] : memref<16x128xf32, #tpu.memory_space<vmem>>, vector<1x128xf32>
    %cst = arith.constant dense<0.000000e+00> : vector<8x128xf32>
    %9 = tpu.matmul %0, %2, %cst {dimension_numbers = #tpu.dot_dimension_numbers<[1], [0], [0], [1], [0, 0, 1, 1], [], []>, precision = #tpu.contract_precision<fp32>} : vector<8x128xf32>, vector<128x128xf32>, vector<8x128xf32> -> vector<8x128xf32>
    %10 = vector.broadcast %5 : vector<1x128xf32> to vector<8x128xf32>
    %11 = arith.addf %9, %10 : vector<8x128xf32>
    %cst_12 = arith.constant 0.000000e+00 : f32
    %12 = vector.broadcast %cst_12 : f32 to vector<8x128xf32>
    %13 = arith.maximumf %11, %12 : vector<8x128xf32>
    %cst_13 = arith.constant dense<0.000000e+00> : vector<8x128xf32>
    %14 = tpu.matmul %13, %4, %cst_13 {dimension_numbers = #tpu.dot_dimension_numbers<[1], [0], [0], [1], [0, 0, 1, 1], [], []>, precision = #tpu.contract_precision<fp32>} : vector<8x128xf32>, vector<128x128xf32>, vector<8x128xf32> -> vector<8x128xf32>
    %15 = vector.broadcast %6 : vector<1x128xf32> to vector<8x128xf32>
    %16 = arith.addf %14, %15 : vector<8x128xf32>
    %cst_14 = arith.constant dense<0.000000e+00> : vector<128xf32>
    %17 = vector.multi_reduction <add>, %16, %cst_14 [0] : vector<8x128xf32> to vector<128xf32>
    %18 = vector.shape_cast %17 : vector<128xf32> to vector<1x128xf32>
    %19 = arith.mulf %16, %16 : vector<8x128xf32>
    %cst_15 = arith.constant dense<0.000000e+00> : vector<128xf32>
    %20 = vector.multi_reduction <add>, %19, %cst_15 [0] : vector<8x128xf32> to vector<128xf32>
    %21 = vector.shape_cast %20 : vector<128xf32> to vector<1x128xf32>
    %cst_16 = arith.constant 1.250000e-01 : f32
    %22 = vector.broadcast %cst_16 : f32 to vector<1x128xf32>
    %23 = arith.mulf %18, %22 : vector<1x128xf32>
    %cst_17 = arith.constant 1.250000e-01 : f32
    %24 = vector.broadcast %cst_17 : f32 to vector<1x128xf32>
    %25 = arith.mulf %21, %24 : vector<1x128xf32>
    %26 = arith.mulf %23, %23 : vector<1x128xf32>
    %27 = arith.subf %25, %26 : vector<1x128xf32>
    %cst_18 = arith.constant 0.000000e+00 : f32
    %28 = vector.broadcast %cst_18 : f32 to vector<1x128xf32>
    %29 = arith.maximumf %27, %28 : vector<1x128xf32>
    %30 = vector.broadcast %23 : vector<1x128xf32> to vector<8x128xf32>
    %31 = arith.subf %16, %30 : vector<8x128xf32>
    %cst_19 = arith.constant 9.99999974E-6 : f32
    %32 = vector.broadcast %cst_19 : f32 to vector<1x128xf32>
    %33 = arith.addf %29, %32 : vector<1x128xf32>
    %34 = math.rsqrt %33 : vector<1x128xf32>
    %35 = vector.broadcast %34 : vector<1x128xf32> to vector<8x128xf32>
    %36 = arith.mulf %31, %35 : vector<8x128xf32>
    %37 = vector.broadcast %7 : vector<1x128xf32> to vector<8x128xf32>
    %38 = arith.mulf %36, %37 : vector<8x128xf32>
    %39 = vector.broadcast %8 : vector<1x128xf32> to vector<8x128xf32>
    %40 = arith.addf %38, %39 : vector<8x128xf32>
    %c0_20 = arith.constant 0 : index
    %c0_21 = arith.constant 0 : index
    %c0_22 = arith.constant 0 : index
    %41 = vector.load %arg3[%c0_20, %c0_21, %c0_22] : memref<3x8x128xf32, #tpu.memory_space<vmem>>, vector<1x8x128xf32>
    %42 = vector.shape_cast %41 : vector<1x8x128xf32> to vector<8x128xf32>
    %cst_23 = arith.constant 5.000000e-02 : f32
    %43 = vector.broadcast %cst_23 : f32 to vector<8x128xf32>
    %44 = arith.mulf %42, %43 : vector<8x128xf32>
    %45 = arith.addf %40, %44 : vector<8x128xf32>
    %c2_24 = arith.constant 2 : index
    %c0_25 = arith.constant 0 : index
    %c0_26 = arith.constant 0 : index
    %46 = vector.load %arg1[%c2_24, %c0_25, %c0_26] : memref<8x128x128xf32, #tpu.memory_space<vmem>>, vector<1x128x128xf32>
    %47 = vector.shape_cast %46 : vector<1x128x128xf32> to vector<128x128xf32>
    %c3_27 = arith.constant 3 : index
    %c0_28 = arith.constant 0 : index
    %c0_29 = arith.constant 0 : index
    %48 = vector.load %arg1[%c3_27, %c0_28, %c0_29] : memref<8x128x128xf32, #tpu.memory_space<vmem>>, vector<1x128x128xf32>
    %49 = vector.shape_cast %48 : vector<1x128x128xf32> to vector<128x128xf32>
    %c4 = arith.constant 4 : index
    %c0_30 = arith.constant 0 : index
    %50 = vector.load %arg2[%c4, %c0_30] : memref<16x128xf32, #tpu.memory_space<vmem>>, vector<1x128xf32>
    %c5 = arith.constant 5 : index
    %c0_31 = arith.constant 0 : index
    %51 = vector.load %arg2[%c5, %c0_31] : memref<16x128xf32, #tpu.memory_space<vmem>>, vector<1x128xf32>
    %c6 = arith.constant 6 : index
    %c0_32 = arith.constant 0 : index
    %52 = vector.load %arg2[%c6, %c0_32] : memref<16x128xf32, #tpu.memory_space<vmem>>, vector<1x128xf32>
    %c7 = arith.constant 7 : index
    %c0_33 = arith.constant 0 : index
    %53 = vector.load %arg2[%c7, %c0_33] : memref<16x128xf32, #tpu.memory_space<vmem>>, vector<1x128xf32>
    %cst_34 = arith.constant dense<0.000000e+00> : vector<8x128xf32>
    %54 = tpu.matmul %45, %47, %cst_34 {dimension_numbers = #tpu.dot_dimension_numbers<[1], [0], [0], [1], [0, 0, 1, 1], [], []>, precision = #tpu.contract_precision<fp32>} : vector<8x128xf32>, vector<128x128xf32>, vector<8x128xf32> -> vector<8x128xf32>
    %55 = vector.broadcast %50 : vector<1x128xf32> to vector<8x128xf32>
    %56 = arith.addf %54, %55 : vector<8x128xf32>
    %cst_35 = arith.constant 0.000000e+00 : f32
    %57 = vector.broadcast %cst_35 : f32 to vector<8x128xf32>
    %58 = arith.maximumf %56, %57 : vector<8x128xf32>
    %cst_36 = arith.constant dense<0.000000e+00> : vector<8x128xf32>
    %59 = tpu.matmul %58, %49, %cst_36 {dimension_numbers = #tpu.dot_dimension_numbers<[1], [0], [0], [1], [0, 0, 1, 1], [], []>, precision = #tpu.contract_precision<fp32>} : vector<8x128xf32>, vector<128x128xf32>, vector<8x128xf32> -> vector<8x128xf32>
    %60 = vector.broadcast %51 : vector<1x128xf32> to vector<8x128xf32>
    %61 = arith.addf %59, %60 : vector<8x128xf32>
    %cst_37 = arith.constant dense<0.000000e+00> : vector<128xf32>
    %62 = vector.multi_reduction <add>, %61, %cst_37 [0] : vector<8x128xf32> to vector<128xf32>
    %63 = vector.shape_cast %62 : vector<128xf32> to vector<1x128xf32>
    %64 = arith.mulf %61, %61 : vector<8x128xf32>
    %cst_38 = arith.constant dense<0.000000e+00> : vector<128xf32>
    %65 = vector.multi_reduction <add>, %64, %cst_38 [0] : vector<8x128xf32> to vector<128xf32>
    %66 = vector.shape_cast %65 : vector<128xf32> to vector<1x128xf32>
    %cst_39 = arith.constant 1.250000e-01 : f32
    %67 = vector.broadcast %cst_39 : f32 to vector<1x128xf32>
    %68 = arith.mulf %63, %67 : vector<1x128xf32>
    %cst_40 = arith.constant 1.250000e-01 : f32
    %69 = vector.broadcast %cst_40 : f32 to vector<1x128xf32>
    %70 = arith.mulf %66, %69 : vector<1x128xf32>
    %71 = arith.mulf %68, %68 : vector<1x128xf32>
    %72 = arith.subf %70, %71 : vector<1x128xf32>
    %cst_41 = arith.constant 0.000000e+00 : f32
    %73 = vector.broadcast %cst_41 : f32 to vector<1x128xf32>
    %74 = arith.maximumf %72, %73 : vector<1x128xf32>
    %75 = vector.broadcast %68 : vector<1x128xf32> to vector<8x128xf32>
    %76 = arith.subf %61, %75 : vector<8x128xf32>
    %cst_42 = arith.constant 9.99999974E-6 : f32
    %77 = vector.broadcast %cst_42 : f32 to vector<1x128xf32>
    %78 = arith.addf %74, %77 : vector<1x128xf32>
    %79 = math.rsqrt %78 : vector<1x128xf32>
    %80 = vector.broadcast %79 : vector<1x128xf32> to vector<8x128xf32>
    %81 = arith.mulf %76, %80 : vector<8x128xf32>
    %82 = vector.broadcast %52 : vector<1x128xf32> to vector<8x128xf32>
    %83 = arith.mulf %81, %82 : vector<8x128xf32>
    %84 = vector.broadcast %53 : vector<1x128xf32> to vector<8x128xf32>
    %85 = arith.addf %83, %84 : vector<8x128xf32>
    %c1_43 = arith.constant 1 : index
    %c0_44 = arith.constant 0 : index
    %c0_45 = arith.constant 0 : index
    %86 = vector.load %arg3[%c1_43, %c0_44, %c0_45] : memref<3x8x128xf32, #tpu.memory_space<vmem>>, vector<1x8x128xf32>
    %87 = vector.shape_cast %86 : vector<1x8x128xf32> to vector<8x128xf32>
    %cst_46 = arith.constant 5.000000e-02 : f32
    %88 = vector.broadcast %cst_46 : f32 to vector<8x128xf32>
    %89 = arith.mulf %87, %88 : vector<8x128xf32>
    %90 = arith.addf %85, %89 : vector<8x128xf32>
    %c4_47 = arith.constant 4 : index
    %c0_48 = arith.constant 0 : index
    %c0_49 = arith.constant 0 : index
    %91 = vector.load %arg1[%c4_47, %c0_48, %c0_49] : memref<8x128x128xf32, #tpu.memory_space<vmem>>, vector<1x128x128xf32>
    %92 = vector.shape_cast %91 : vector<1x128x128xf32> to vector<128x128xf32>
    %c5_50 = arith.constant 5 : index
    %c0_51 = arith.constant 0 : index
    %c0_52 = arith.constant 0 : index
    %93 = vector.load %arg1[%c5_50, %c0_51, %c0_52] : memref<8x128x128xf32, #tpu.memory_space<vmem>>, vector<1x128x128xf32>
    %94 = vector.shape_cast %93 : vector<1x128x128xf32> to vector<128x128xf32>
    %c8 = arith.constant 8 : index
    %c0_53 = arith.constant 0 : index
    %95 = vector.load %arg2[%c8, %c0_53] : memref<16x128xf32, #tpu.memory_space<vmem>>, vector<1x128xf32>
    %c9 = arith.constant 9 : index
    %c0_54 = arith.constant 0 : index
    %96 = vector.load %arg2[%c9, %c0_54] : memref<16x128xf32, #tpu.memory_space<vmem>>, vector<1x128xf32>
    %c10 = arith.constant 10 : index
    %c0_55 = arith.constant 0 : index
    %97 = vector.load %arg2[%c10, %c0_55] : memref<16x128xf32, #tpu.memory_space<vmem>>, vector<1x128xf32>
    %c11 = arith.constant 11 : index
    %c0_56 = arith.constant 0 : index
    %98 = vector.load %arg2[%c11, %c0_56] : memref<16x128xf32, #tpu.memory_space<vmem>>, vector<1x128xf32>
    %cst_57 = arith.constant dense<0.000000e+00> : vector<8x128xf32>
    %99 = tpu.matmul %90, %92, %cst_57 {dimension_numbers = #tpu.dot_dimension_numbers<[1], [0], [0], [1], [0, 0, 1, 1], [], []>, precision = #tpu.contract_precision<fp32>} : vector<8x128xf32>, vector<128x128xf32>, vector<8x128xf32> -> vector<8x128xf32>
    %100 = vector.broadcast %95 : vector<1x128xf32> to vector<8x128xf32>
    %101 = arith.addf %99, %100 : vector<8x128xf32>
    %cst_58 = arith.constant 0.000000e+00 : f32
    %102 = vector.broadcast %cst_58 : f32 to vector<8x128xf32>
    %103 = arith.maximumf %101, %102 : vector<8x128xf32>
    %cst_59 = arith.constant dense<0.000000e+00> : vector<8x128xf32>
    %104 = tpu.matmul %103, %94, %cst_59 {dimension_numbers = #tpu.dot_dimension_numbers<[1], [0], [0], [1], [0, 0, 1, 1], [], []>, precision = #tpu.contract_precision<fp32>} : vector<8x128xf32>, vector<128x128xf32>, vector<8x128xf32> -> vector<8x128xf32>
    %105 = vector.broadcast %96 : vector<1x128xf32> to vector<8x128xf32>
    %106 = arith.addf %104, %105 : vector<8x128xf32>
    %cst_60 = arith.constant dense<0.000000e+00> : vector<128xf32>
    %107 = vector.multi_reduction <add>, %106, %cst_60 [0] : vector<8x128xf32> to vector<128xf32>
    %108 = vector.shape_cast %107 : vector<128xf32> to vector<1x128xf32>
    %109 = arith.mulf %106, %106 : vector<8x128xf32>
    %cst_61 = arith.constant dense<0.000000e+00> : vector<128xf32>
    %110 = vector.multi_reduction <add>, %109, %cst_61 [0] : vector<8x128xf32> to vector<128xf32>
    %111 = vector.shape_cast %110 : vector<128xf32> to vector<1x128xf32>
    %cst_62 = arith.constant 1.250000e-01 : f32
    %112 = vector.broadcast %cst_62 : f32 to vector<1x128xf32>
    %113 = arith.mulf %108, %112 : vector<1x128xf32>
    %cst_63 = arith.constant 1.250000e-01 : f32
    %114 = vector.broadcast %cst_63 : f32 to vector<1x128xf32>
    %115 = arith.mulf %111, %114 : vector<1x128xf32>
    %116 = arith.mulf %113, %113 : vector<1x128xf32>
    %117 = arith.subf %115, %116 : vector<1x128xf32>
    %cst_64 = arith.constant 0.000000e+00 : f32
    %118 = vector.broadcast %cst_64 : f32 to vector<1x128xf32>
    %119 = arith.maximumf %117, %118 : vector<1x128xf32>
    %120 = vector.broadcast %113 : vector<1x128xf32> to vector<8x128xf32>
    %121 = arith.subf %106, %120 : vector<8x128xf32>
    %cst_65 = arith.constant 9.99999974E-6 : f32
    %122 = vector.broadcast %cst_65 : f32 to vector<1x128xf32>
    %123 = arith.addf %119, %122 : vector<1x128xf32>
    %124 = math.rsqrt %123 : vector<1x128xf32>
    %125 = vector.broadcast %124 : vector<1x128xf32> to vector<8x128xf32>
    %126 = arith.mulf %121, %125 : vector<8x128xf32>
    %127 = vector.broadcast %97 : vector<1x128xf32> to vector<8x128xf32>
    %128 = arith.mulf %126, %127 : vector<8x128xf32>
    %129 = vector.broadcast %98 : vector<1x128xf32> to vector<8x128xf32>
    %130 = arith.addf %128, %129 : vector<8x128xf32>
    %131 = arith.addf %40, %130 : vector<8x128xf32>
    %c2_66 = arith.constant 2 : index
    %c0_67 = arith.constant 0 : index
    %c0_68 = arith.constant 0 : index
    %132 = vector.load %arg3[%c2_66, %c0_67, %c0_68] : memref<3x8x128xf32, #tpu.memory_space<vmem>>, vector<1x8x128xf32>
    %133 = vector.shape_cast %132 : vector<1x8x128xf32> to vector<8x128xf32>
    %cst_69 = arith.constant 5.000000e-02 : f32
    %134 = vector.broadcast %cst_69 : f32 to vector<8x128xf32>
    %135 = arith.mulf %133, %134 : vector<8x128xf32>
    %136 = arith.addf %131, %135 : vector<8x128xf32>
    %c6_70 = arith.constant 6 : index
    %c0_71 = arith.constant 0 : index
    %c0_72 = arith.constant 0 : index
    %137 = vector.load %arg1[%c6_70, %c0_71, %c0_72] : memref<8x128x128xf32, #tpu.memory_space<vmem>>, vector<1x128x128xf32>
    %138 = vector.shape_cast %137 : vector<1x128x128xf32> to vector<128x128xf32>
    %c7_73 = arith.constant 7 : index
    %c0_74 = arith.constant 0 : index
    %c0_75 = arith.constant 0 : index
    %139 = vector.load %arg1[%c7_73, %c0_74, %c0_75] : memref<8x128x128xf32, #tpu.memory_space<vmem>>, vector<1x128x128xf32>
    %140 = vector.shape_cast %139 : vector<1x128x128xf32> to vector<128x128xf32>
    %c12 = arith.constant 12 : index
    %c0_76 = arith.constant 0 : index
    %141 = vector.load %arg2[%c12, %c0_76] : memref<16x128xf32, #tpu.memory_space<vmem>>, vector<1x128xf32>
    %c13 = arith.constant 13 : index
    %c0_77 = arith.constant 0 : index
    %142 = vector.load %arg2[%c13, %c0_77] : memref<16x128xf32, #tpu.memory_space<vmem>>, vector<1x128xf32>
    %c14 = arith.constant 14 : index
    %c0_78 = arith.constant 0 : index
    %143 = vector.load %arg2[%c14, %c0_78] : memref<16x128xf32, #tpu.memory_space<vmem>>, vector<1x128xf32>
    %c15 = arith.constant 15 : index
    %c0_79 = arith.constant 0 : index
    %144 = vector.load %arg2[%c15, %c0_79] : memref<16x128xf32, #tpu.memory_space<vmem>>, vector<1x128xf32>
    %cst_80 = arith.constant dense<0.000000e+00> : vector<8x128xf32>
    %145 = tpu.matmul %136, %138, %cst_80 {dimension_numbers = #tpu.dot_dimension_numbers<[1], [0], [0], [1], [0, 0, 1, 1], [], []>, precision = #tpu.contract_precision<fp32>} : vector<8x128xf32>, vector<128x128xf32>, vector<8x128xf32> -> vector<8x128xf32>
    %146 = vector.broadcast %141 : vector<1x128xf32> to vector<8x128xf32>
    %147 = arith.addf %145, %146 : vector<8x128xf32>
    %cst_81 = arith.constant 0.000000e+00 : f32
    %148 = vector.broadcast %cst_81 : f32 to vector<8x128xf32>
    %149 = arith.maximumf %147, %148 : vector<8x128xf32>
    %cst_82 = arith.constant dense<0.000000e+00> : vector<8x128xf32>
    %150 = tpu.matmul %149, %140, %cst_82 {dimension_numbers = #tpu.dot_dimension_numbers<[1], [0], [0], [1], [0, 0, 1, 1], [], []>, precision = #tpu.contract_precision<fp32>} : vector<8x128xf32>, vector<128x128xf32>, vector<8x128xf32> -> vector<8x128xf32>
    %151 = vector.broadcast %142 : vector<1x128xf32> to vector<8x128xf32>
    %152 = arith.addf %150, %151 : vector<8x128xf32>
    %cst_83 = arith.constant dense<0.000000e+00> : vector<128xf32>
    %153 = vector.multi_reduction <add>, %152, %cst_83 [0] : vector<8x128xf32> to vector<128xf32>
    %154 = vector.shape_cast %153 : vector<128xf32> to vector<1x128xf32>
    %155 = arith.mulf %152, %152 : vector<8x128xf32>
    %cst_84 = arith.constant dense<0.000000e+00> : vector<128xf32>
    %156 = vector.multi_reduction <add>, %155, %cst_84 [0] : vector<8x128xf32> to vector<128xf32>
    %157 = vector.shape_cast %156 : vector<128xf32> to vector<1x128xf32>
    %cst_85 = arith.constant 1.250000e-01 : f32
    %158 = vector.broadcast %cst_85 : f32 to vector<1x128xf32>
    %159 = arith.mulf %154, %158 : vector<1x128xf32>
    %cst_86 = arith.constant 1.250000e-01 : f32
    %160 = vector.broadcast %cst_86 : f32 to vector<1x128xf32>
    %161 = arith.mulf %157, %160 : vector<1x128xf32>
    %162 = arith.mulf %159, %159 : vector<1x128xf32>
    %163 = arith.subf %161, %162 : vector<1x128xf32>
    %cst_87 = arith.constant 0.000000e+00 : f32
    %164 = vector.broadcast %cst_87 : f32 to vector<1x128xf32>
    %165 = arith.maximumf %163, %164 : vector<1x128xf32>
    %166 = vector.broadcast %159 : vector<1x128xf32> to vector<8x128xf32>
    %167 = arith.subf %152, %166 : vector<8x128xf32>
    %cst_88 = arith.constant 9.99999974E-6 : f32
    %168 = vector.broadcast %cst_88 : f32 to vector<1x128xf32>
    %169 = arith.addf %165, %168 : vector<1x128xf32>
    %170 = math.rsqrt %169 : vector<1x128xf32>
    %171 = vector.broadcast %170 : vector<1x128xf32> to vector<8x128xf32>
    %172 = arith.mulf %167, %171 : vector<8x128xf32>
    %173 = vector.broadcast %143 : vector<1x128xf32> to vector<8x128xf32>
    %174 = arith.mulf %172, %173 : vector<8x128xf32>
    %175 = vector.broadcast %144 : vector<1x128xf32> to vector<8x128xf32>
    %176 = arith.addf %174, %175 : vector<8x128xf32>
    %177 = arith.addf %40, %85 : vector<8x128xf32>
    %178 = arith.addf %177, %130 : vector<8x128xf32>
    %179 = arith.addf %178, %176 : vector<8x128xf32>
    %c0_89 = arith.constant 0 : index
    %c0_90 = arith.constant 0 : index
    %180 = vector.load %arg4[%c0_89, %c0_90] : memref<8x128xf32, #tpu.memory_space<vmem>>, vector<8x128xf32>
    tpu.vector_store %arg4[%c0_89, %c0_90], %179 {strides = array<i32>} : memref<8x128xf32, #tpu.memory_space<vmem>>, vector<8x128xf32>,
    return
  }
}

</mosaic_0001>

<llo_original>
// kernel: _forward_impl.1
$region0: #{_forward_impl.1}
  #allocation0 [shape = 'u32[]', space=smem, size = 0x4, offset = 0x4, fixed_abs, tag = 'smem constant byte address 0x4 - core index']
  #allocation1 [shape = 'u32[144,128]{1,0:T(1,128)}', space=vmem, size = 0x12000, scoped, tag = 'internal scratch']
  %s0 = inlined_call_operand.vmem [shape: f32[8,128], index: 0, kind: input, shape index: {}]
  %s1 = inlined_call_operand.hbm [shape: f32[8,128,128], index: 1, kind: input, shape index: {}]
  %s2 = inlined_call_operand.vmem [shape: f32[16,128], index: 2, kind: input, shape index: {}]
  %s3 = inlined_call_operand.vmem [shape: f32[3,8,128], index: 3, kind: input, shape index: {}]
  %s4 = inlined_call_operand.vmem [shape: f32[8,128], index: 4, kind: output, shape index: {}]
  %s5 = sld [smem:[#allocation0]]
  $region30: #{_forward_impl.1} parent=0
    _
  %s7 = ssub.s32 1, %s5
  %s8 = scalar_select 0, %s7, %s5
  $region1: #{_forward_impl.1} parent=0
    #allocation2 [shape = 'u8[524288]{0}', space=vmem, size = 0x80000, scoped, tag = 'input window, operand 1, single buffered']
    #allocation3 [shape = 's32[1]{0}', space=sflag, size = 0x4, scoped, tag = 'scoped memory for _forward_impl.1']
    %9 = vsyncpa [#allocation3], 0
    // Predicated region
    $region2: #{_forward_impl.1} parent=1 // pred_check
      _
    $region3: #{_forward_impl.1} parent=1 // pred_check_branch
      %11 = sbr.rel (0) target = $region5
    $region4: #{_forward_impl.1} parent=1 // pred_region
      _
    $region5: #{_forward_impl.1} parent=1 // pred_fallthru
      _
    // Predicated region
    $region6: #{_forward_impl.1} parent=1 // pred_check
      _
    $region7: #{_forward_impl.1} parent=1 // pred_check_branch
      %13 = sbr.rel (0) target = $region9
    $region8: #{_forward_impl.1} parent=1 // pred_region
      %s15 = ssub.s32 16384, 16384
      %16 = vsyncadd [#allocation3], %s15
      %s17 = sshll.u32 [#allocation2], 4
      %s18 = int_to_ptr.vmem [resolvable:$true] %s17
      %23 = dma.hbm_to_vmem [thread:$0]  %s1, 16384, %s18, [#allocation3], 128, 128, 8
    $region9: #{_forward_impl.1} parent=1 // pred_fallthru
      _
    // Predicated region
    $region10: #{_forward_impl.1} parent=1 // pred_check
      _
    $region11: #{_forward_impl.1} parent=1 // pred_check_branch
      %25 = sbr.rel (0) target = $region13
    $region12: #{_forward_impl.1} parent=1 // pred_region
      _
    $region13: #{_forward_impl.1} parent=1 // pred_fallthru
      _
    // Predicated region
    $region14: #{_forward_impl.1} parent=1 // pred_check
      _
    $region15: #{_forward_impl.1} parent=1 // pred_check_branch
      %27 = sbr.rel (0) target = $region17
    $region16: #{_forward_impl.1} parent=1 // pred_region
      _
    $region17: #{_forward_impl.1} parent=1 // pred_fallthru
      _
    // Predicated region
    $region18: #{_forward_impl.1} parent=1 // pred_check
      _
    $region19: #{_forward_impl.1} parent=1 // pred_check_branch
      %29 = sbr.rel (0) target = $region21
    $region20: #{_forward_impl.1} parent=1 // pred_region
      %30 = dma.done [#allocation3], 16384
    $region21: #{_forward_impl.1} parent=1 // pred_fallthru
      _
    %v31 = vld [vmem:[%s0] sm:$0xff]
    %v32 = vld [vmem:[#allocation2] sm:$0xff]
    %v33 = vld [vmem:[#allocation2 + $0x8] sm:$0xff]
    %v34 = vld [vmem:[#allocation2 + $0x10] sm:$0xff]
    %v35 = vld [vmem:[#allocation2 + $0x18] sm:$0xff]
    %v36 = vld [vmem:[#allocation2 + $0x20] sm:$0xff]
    %v37 = vld [vmem:[#allocation2 + $0x28] sm:$0xff]
    %v38 = vld [vmem:[#allocation2 + $0x30] sm:$0xff]
    %v39 = vld [vmem:[#allocation2 + $0x38] sm:$0xff]
    %v40 = vld [vmem:[#allocation2 + $0x40] sm:$0xff]
    %v41 = vld [vmem:[#allocation2 + $0x48] sm:$0xff]
    %v42 = vld [vmem:[#allocation2 + $0x50] sm:$0xff]
    %v43 = vld [vmem:[#allocation2 + $0x58] sm:$0xff]
    %v44 = vld [vmem:[#allocation2 + $0x60] sm:$0xff]
    %v45 = vld [vmem:[#allocation2 + $0x68] sm:$0xff]
    %v46 = vld [vmem:[#allocation2 + $0x70] sm:$0xff]
    %v47 = vld [vmem:[#allocation2 + $0x78] sm:$0xff]
    %s48 = scalar_lea.vmem [#allocation2], 128
    %v49 = vld [vmem:[%s48] sm:$0xff]
    %v50 = vld [vmem:[%s48 + $0x8] sm:$0xff]
    %v51 = vld [vmem:[%s48 + $0x10] sm:$0xff]
    %v52 = vld [vmem:[%s48 + $0x18] sm:$0xff]
    %v53 = vld [vmem:[%s48 + $0x20] sm:$0xff]
    %v54 = vld [vmem:[%s48 + $0x28] sm:$0xff]
    %v55 = vld [vmem:[%s48 + $0x30] sm:$0xff]
    %v56 = vld [vmem:[%s48 + $0x38] sm:$0xff]
    %v57 = vld [vmem:[%s48 + $0x40] sm:$0xff]
    %v58 = vld [vmem:[%s48 + $0x48] sm:$0xff]
    %v59 = vld [vmem:[%s48 + $0x50] sm:$0xff]
    %v60 = vld [vmem:[%s48 + $0x58] sm:$0xff]
    %v61 = vld [vmem:[%s48 + $0x60] sm:$0xff]
    %v62 = vld [vmem:[%s48 + $0x68] sm:$0xff]
    %v63 = vld [vmem:[%s48 + $0x70] sm:$0xff]
    %v64 = vld [vmem:[%s48 + $0x78] sm:$0xff]
    %v65 = vld [vmem:[%s2] sm:$0x1]
    %v66 = vld [vmem:[%s2 + $0x1] sm:$0x1]
    %v67 = vld [vmem:[%s2 + $0x2] sm:$0x1]
    %v68 = vld [vmem:[%s2 + $0x3] sm:$0x1]
    %v69 = vlaneseq
    %v70 = vshrl.u32 %v69, 7
    %v71 = vsub.s32 0, %v70
    %v72 = vrot.slane %v65, %v71
    %73 = vmatprep.subr.mxu0 0.0
    %v74 = vand.u32 %v32, 4294901760
    %75 = vmatpush1.msra.mxu0 %v74
    %76 = vmatprep.subr.mxu0 0.0
    %v77 = vand.u32 %v33, 4294901760
    %78 = vmatpush1.msra.mxu0 %v77
    %79 = vmatprep.subr.mxu0 0.0
    %v80 = vand.u32 %v34, 4294901760
    %81 = vmatpush1.msra.mxu0 %v80
    %82 = vmatprep.subr.mxu0 0.0
    %v83 = vand.u32 %v35, 4294901760
    %84 = vmatpush1.msra.mxu0 %v83
    %85 = vmatprep.subr.mxu0 0.0
    %v86 = vand.u32 %v36, 4294901760
    %87 = vmatpush1.msra.mxu0 %v86
    %88 = vmatprep.subr.mxu0 0.0
    %v89 = vand.u32 %v37, 4294901760
    %90 = vmatpush1.msra.mxu0 %v89
    %91 = vmatprep.subr.mxu0 0.0
    %v92 = vand.u32 %v38, 4294901760
    %93 = vmatpush1.msra.mxu0 %v92
    %94 = vmatprep.subr.mxu0 0.0
    %v95 = vand.u32 %v39, 4294901760
    %96 = vmatpush1.msra.mxu0 %v95
    %97 = vmatprep.subr.mxu0 0.0
    %v98 = vand.u32 %v40, 4294901760
    %99 = vmatpush1.msra.mxu0 %v98
    %100 = vmatprep.subr.mxu0 0.0
    %v101 = vand.u32 %v41, 4294901760
    %102 = vmatpush1.msra.mxu0 %v101
    %103 = vmatprep.subr.mxu0 0.0
    %v104 = vand.u32 %v42, 4294901760
    %105 = vmatpush1.msra.mxu0 %v104
    %106 = vmatprep.subr.mxu0 0.0
    %v107 = vand.u32 %v43, 4294901760
    %108 = vmatpush1.msra.mxu0 %v107
    %109 = vmatprep.subr.mxu0 0.0
    %v110 = vand.u32 %v44, 4294901760
    %111 = vmatpush1.msra.mxu0 %v110
    %112 = vmatprep.subr.mxu0 0.0
    %v113 = vand.u32 %v45, 4294901760
    %114 = vmatpush1.msra.mxu0 %v113
    %115 = vmatprep.subr.mxu0 0.0
    %v116 = vand.u32 %v46, 4294901760
    %117 = vmatpush1.msra.mxu0 %v116
    %118 = vmatprep.subr.mxu0 0.0
    %v119 = vand.u32 %v47, 4294901760
    %120 = vmatpush1.msra.mxu0 %v119
    %121 = vmatprep.subr.mxu0 0.0
    %122 = vmatpush1.msra.mxu0 0.0
    %123 = vmatprep.subr.mxu0 0.0
    %124 = vmatpush1.msra.mxu0 0.0
    %125 = vmatprep.subr.mxu0 0.0
    %126 = vmatpush1.msra.mxu0 0.0
    %127 = vmatprep.subr.mxu0 0.0
    %128 = vmatpush1.msra.mxu0 0.0
    %129 = vmatprep.subr.mxu0 0.0
    %130 = vmatpush1.msra.mxu0 0.0
    %131 = vmatprep.subr.mxu0 0.0
    %132 = vmatpush1.msra.mxu0 0.0
    %133 = vmatprep.subr.mxu0 0.0
    %134 = vmatpush1.msra.mxu0 0.0
    %135 = vmatprep.subr.mxu0 0.0
    %136 = vmatpush1.msra.mxu0 0.0
    %137 = vmatprep.subr.mxu0 0.0
    %138 = vmatpush1.msra.mxu0 0.0
    %139 = vmatprep.subr.mxu0 0.0
    %140 = vmatpush1.msra.mxu0 0.0
    %141 = vmatprep.subr.mxu0 0.0
    %142 = vmatpush1.msra.mxu0 0.0
    %143 = vmatprep.subr.mxu0 0.0
    %144 = vmatpush1.msra.mxu0 0.0
    %145 = vmatprep.subr.mxu0 0.0
    %146 = vmatpush1.msra.mxu0 0.0
    %147 = vmatprep.subr.mxu0 0.0
    %148 = vmatpush1.msra.mxu0 0.0
    %149 = vmatprep.subr.mxu0 0.0
    %150 = vmatpush1.msra.mxu0 0.0
    %151 = vmatprep.subr.mxu0 0.0
    %152 = vmatpush1.msra.mxu0 0.0
    %153 = vmatprep.mubr.f32.mxu0 0.0
    %v154 = vand.u32 %v31, 4294901760
    %v155 = vsub.f32 %v31, %v154
    %v156 = vand.u32 %v155, 4294901760
    %v157 = vsub.f32 %v155, %v156
    %v158 = vand.u32 %v157, 4294901760
    %159 = vmatmul.mubr.f32.gmra.mrb[0].mxu0 %v158
    %v160 = vpop.f32.mrb[0].mxu0
    %v161 = vadd.f32 %v72, %v160
    %v162 = vpop.f32.mrb[0].mxu0
    %163 = vdwg.mxu0
    %164 = vmatprep.subr.mxu0 0.0
    %v165 = vand.u32 %v32, 4294901760
    %v166 = vsub.f32 %v32, %v165
    %v167 = vand.u32 %v166, 4294901760
    %v168 = vsub.f32 %v166, %v167
    %v169 = vand.u32 %v168, 4294901760
    %170 = vmatpush1.msra.mxu0 %v169
    %171 = vmatprep.subr.mxu0 0.0
    %v172 = vand.u32 %v33, 4294901760
    %v173 = vsub.f32 %v33, %v172
    %v174 = vand.u32 %v173, 4294901760
    %v175 = vsub.f32 %v173, %v174
    %v176 = vand.u32 %v175, 4294901760
    %177 = vmatpush1.msra.mxu0 %v176
    %178 = vmatprep.subr.mxu0 0.0
    %v179 = vand.u32 %v34, 4294901760
    %v180 = vsub.f32 %v34, %v179
    %v181 = vand.u32 %v180, 4294901760
    %v182 = vsub.f32 %v180, %v181
    %v183 = vand.u32 %v182, 4294901760
    %184 = vmatpush1.msra.mxu0 %v183
    %185 = vmatprep.subr.mxu0 0.0
    %v186 = vand.u32 %v35, 4294901760
    %v187 = vsub.f32 %v35, %v186
    %v188 = vand.u32 %v187, 4294901760
    %v189 = vsub.f32 %v187, %v188
    %v190 = vand.u32 %v189, 4294901760
    %191 = vmatpush1.msra.mxu0 %v190
    %192 = vmatprep.subr.mxu0 0.0
    %v193 = vand.u32 %v36, 4294901760
    %v194 = vsub.f32 %v36, %v193
    %v195 = vand.u32 %v194, 4294901760
    %v196 = vsub.f32 %v194, %v195
    %v197 = vand.u32 %v196, 4294901760
    %198 = vmatpush1.msra.mxu0 %v197
    %199 = vmatprep.subr.mxu0 0.0
    %v200 = vand.u32 %v37, 4294901760
    %v201 = vsub.f32 %v37, %v200
    %v202 = vand.u32 %v201, 4294901760
    %v203 = vsub.f32 %v201, %v202
    %v204 = vand.u32 %v203, 4294901760
    %205 = vmatpush1.msra.mxu0 %v204
    %206 = vmatprep.subr.mxu0 0.0
    %v207 = vand.u32 %v38, 4294901760
    %v208 = vsub.f32 %v38, %v207
    %v209 = vand.u32 %v208, 4294901760
    %v210 = vsub.f32 %v208, %v209
    %v211 = vand.u32 %v210, 4294901760
    %212 = vmatpush1.msra.mxu0 %v211
    %213 = vmatprep.subr.mxu0 0.0
    %v214 = vand.u32 %v39, 4294901760
    %v215 = vsub.f32 %v39, %v214
    %v216 = vand.u32 %v215, 4294901760
    %v217 = vsub.f32 %v215, %v216
    %v218 = vand.u32 %v217, 4294901760
    %219 = vmatpush1.msra.mxu0 %v218
    %220 = vmatprep.subr.mxu0 0.0
    %v221 = vand.u32 %v40, 4294901760
    %v222 = vsub.f32 %v40, %v221
    %v223 = vand.u32 %v222, 4294901760
    %v224 = vsub.f32 %v222, %v223
    %v225 = vand.u32 %v224, 4294901760
    %226 = vmatpush1.msra.mxu0 %v225
    %227 = vmatprep.subr.mxu0 0.0
    %v228 = vand.u32 %v41, 4294901760
    %v229 = vsub.f32 %v41, %v228
    %v230 = vand.u32 %v229, 4294901760
    %v231 = vsub.f32 %v229, %v230
    %v232 = vand.u32 %v231, 4294901760
    %233 = vmatpush1.msra.mxu0 %v232
    %234 = vmatprep.subr.mxu0 0.0
    %v235 = vand.u32 %v42, 4294901760
    %v236 = vsub.f32 %v42, %v235
    %v237 = vand.u32 %v236, 4294901760
    %v238 = vsub.f32 %v236, %v237
    %v239 = vand.u32 %v238, 4294901760
    %240 = vmatpush1.msra.mxu0 %v239
    %241 = vmatprep.subr.mxu0 0.0
    %v242 = vand.u32 %v43, 4294901760
    %v243 = vsub.f32 %v43, %v242
    %v244 = vand.u32 %v243, 4294901760
    %v245 = vsub.f32 %v243, %v244
    %v246 = vand.u32 %v245, 4294901760
    %247 = vmatpush1.msra.mxu0 %v246
    %248 = vmatprep.subr.mxu0 0.0
    %v249 = vand.u32 %v44, 4294901760
    %v250 = vsub.f32 %v44, %v249
    %v251 = vand.u32 %v250, 4294901760
    %v252 = vsub.f32 %v250, %v251
    %v253 = vand.u32 %v252, 4294901760
    %254 = vmatpush1.msra.mxu0 %v253
    %255 = vmatprep.subr.mxu0 0.0
    %v256 = vand.u32 %v45, 4294901760
    %v257 = vsub.f32 %v45, %v256
    %v258 = vand.u32 %v257, 4294901760
    %v259 = vsub.f32 %v257, %v258
    %v260 = vand.u32 %v259, 4294901760
    %261 = vmatpush1.msra.mxu0 %v260
    %262 = vmatprep.subr.mxu0 0.0
    %v263 = vand.u32 %v46, 4294901760
    %v264 = vsub.f32 %v46, %v263
    %v265 = vand.u32 %v264, 4294901760
    %v266 = vsub.f32 %v264, %v265
    %v267 = vand.u32 %v266, 4294901760
    %268 = vmatpush1.msra.mxu0 %v267
    %269 = vmatprep.subr.mxu0 0.0
    %v270 = vand.u32 %v47, 4294901760
    %v271 = vsub.f32 %v47, %v270
    %v272 = vand.u32 %v271, 4294901760
    %v273 = vsub.f32 %v271, %v272
    %v274 = vand.u32 %v273, 4294901760
    %275 = vmatpush1.msra.mxu0 %v274
    %276 = vmatprep.subr.mxu0 0.0
    %277 = vmatpush1.msra.mxu0 0.0
    %278 = vmatprep.subr.mxu0 0.0
    %279 = vmatpush1.msra.mxu0 0.0
    %280 = vmatprep.subr.mxu0 0.0
    %281 = vmatpush1.msra.mxu0 0.0
    %282 = vmatprep.subr.mxu0 0.0
    %283 = vmatpush1.msra.mxu0 0.0
    %284 = vmatprep.subr.mxu0 0.0
    %285 = vmatpush1.msra.mxu0 0.0
    %286 = vmatprep.subr.mxu0 0.0
    %287 = vmatpush1.msra.mxu0 0.0
    %288 = vmatprep.subr.mxu0 0.0
    %289 = vmatpush1.msra.mxu0 0.0
    %290 = vmatprep.subr.mxu0 0.0
    %291 = vmatpush1.msra.mxu0 0.0
    %292 = vmatprep.subr.mxu0 0.0
    %293 = vmatpush1.msra.mxu0 0.0
    %294 = vmatprep.subr.mxu0 0.0
    %295 = vmatpush1.msra.mxu0 0.0
    %296 = vmatprep.subr.mxu0 0.0
    %297 = vmatpush1.msra.mxu0 0.0
    %298 = vmatprep.subr.mxu0 0.0
    %299 = vmatpush1.msra.mxu0 0.0
    %300 = vmatprep.subr.mxu0 0.0
    %301 = vmatpush1.msra.mxu0 0.0
    %302 = vmatprep.subr.mxu0 0.0
    %303 = vmatpush1.msra.mxu0 0.0
    %304 = vmatprep.subr.mxu0 0.0
    %305 = vmatpush1.msra.mxu0 0.0
    %306 = vmatprep.subr.mxu0 0.0
    %307 = vmatpush1.msra.mxu0 0.0
    %308 = vmatprep.mubr.f32.mxu0 0.0
    %v309 = vand.u32 %v31, 4294901760
    %310 = vmatmul.mubr.f32.gmra.mrb[0].mxu0 %v309
    %v311 = vpop.f32.mrb[0].mxu0
    %v312 = vadd.f32 %v161, %v311
    %v313 = vpop.f32.mrb[0].mxu0
    %314 = vdwg.mxu0
    %315 = vmatprep.subr.mxu0 0.0
    %v316 = vand.u32 %v32, 4294901760
    %v317 = vsub.f32 %v32, %v316
    %318 = vmatpush1.msra.mxu0 %v317
    %319 = vmatprep.subr.mxu0 0.0
    %v320 = vand.u32 %v33, 4294901760
    %v321 = vsub.f32 %v33, %v320
    %322 = vmatpush1.msra.mxu0 %v321
    %323 = vmatprep.subr.mxu0 0.0
    %v324 = vand.u32 %v34, 4294901760
    %v325 = vsub.f32 %v34, %v324
    %326 = vmatpush1.msra.mxu0 %v325
    %327 = vmatprep.subr.mxu0 0.0
    %v328 = vand.u32 %v35, 4294901760
    %v329 = vsub.f32 %v35, %v328
    %330 = vmatpush1.msra.mxu0 %v329
    %331 = vmatprep.subr.mxu0 0.0
    %v332 = vand.u32 %v36, 4294901760
    %v333 = vsub.f32 %v36, %v332
    %334 = vmatpush1.msra.mxu0 %v333
    %335 = vmatprep.subr.mxu0 0.0
    %v336 = vand.u32 %v37, 4294901760
    %v337 = vsub.f32 %v37, %v336
    %338 = vmatpush1.msra.mxu0 %v337
    %339 = vmatprep.subr.mxu0 0.0
    %v340 = vand.u32 %v38, 4294901760
    %v341 = vsub.f32 %v38, %v340
    %342 = vmatpush1.msra.mxu0 %v341
    %343 = vmatprep.subr.mxu0 0.0
    %v344 = vand.u32 %v39, 4294901760
    %v345 = vsub.f32 %v39, %v344
    %346 = vmatpush1.msra.mxu0 %v345
    %347 = vmatprep.subr.mxu0 0.0
    %v348 = vand.u32 %v40, 4294901760
    %v349 = vsub.f32 %v40, %v348
    %350 = vmatpush1.msra.mxu0 %v349
    %351 = vmatprep.subr.mxu0 0.0
    %v352 = vand.u32 %v41, 4294901760
    %v353 = vsub.f32 %v41, %v352
    %354 = vmatpush1.msra.mxu0 %v353
    %355 = vmatprep.subr.mxu0 0.0
    %v356 = vand.u32 %v42, 4294901760
    %v357 = vsub.f32 %v42, %v356
    %358 = vmatpush1.msra.mxu0 %v357
    %359 = vmatprep.subr.mxu0 0.0
    %v360 = vand.u32 %v43, 4294901760
    %v361 = vsub.f32 %v43, %v360
    %362 = vmatpush1.msra.mxu0 %v361
    %363 = vmatprep.subr.mxu0 0.0
    %v364 = vand.u32 %v44, 4294901760
    %v365 = vsub.f32 %v44, %v364
    %366 = vmatpush1.msra.mxu0 %v365
    %367 = vmatprep.subr.mxu0 0.0
    %v368 = vand.u32 %v45, 4294901760
    %v369 = vsub.f32 %v45, %v368
    %370 = vmatpush1.msra.mxu0 %v369
    %371 = vmatprep.subr.mxu0 0.0
    %v372 = vand.u32 %v46, 4294901760
    %v373 = vsub.f32 %v46, %v372
    %374 = vmatpush1.msra.mxu0 %v373
    %375 = vmatprep.subr.mxu0 0.0
    %v376 = vand.u32 %v47, 4294901760
    %v377 = vsub.f32 %v47, %v376
    %378 = vmatpush1.msra.mxu0 %v377
    %379 = vmatprep.subr.mxu0 0.0
    %380 = vmatpush1.msra.mxu0 0.0
    %381 = vmatprep.subr.mxu0 0.0
    %382 = vmatpush1.msra.mxu0 0.0
    %383 = vmatprep.subr.mxu0 0.0
    %384 = vmatpush1.msra.mxu0 0.0
    %385 = vmatprep.subr.mxu0 0.0
    %386 = vmatpush1.msra.mxu0 0.0
    %387 = vmatprep.subr.mxu0 0.0
    %388 = vmatpush1.msra.mxu0 0.0
    %389 = vmatprep.subr.mxu0 0.0
    %390 = vmatpush1.msra.mxu0 0.0
    %391 = vmatprep.subr.mxu0 0.0
    %392 = vmatpush1.msra.mxu0 0.0
    %393 = vmatprep.subr.mxu0 0.0
    %394 = vmatpush1.msra.mxu0 0.0
    %395 = vmatprep.subr.mxu0 0.0
    %396 = vmatpush1.msra.mxu0 0.0
    %397 = vmatprep.subr.mxu0 0.0
    %398 = vmatpush1.msra.mxu0 0.0
    %399 = vmatprep.subr.mxu0 0.0
    %400 = vmatpush1.msra.mxu0 0.0
    %401 = vmatprep.subr.mxu0 0.0
    %402 = vmatpush1.msra.mxu0 0.0
    %403 = vmatprep.subr.mxu0 0.0
    %404 = vmatpush1.msra.mxu0 0.0
    %405 = vmatprep.subr.mxu0 0.0
    %406 = vmatpush1.msra.mxu0 0.0
    %407 = vmatprep.subr.mxu0 0.0
    %408 = vmatpush1.msra.mxu0 0.0
    %409 = vmatprep.subr.mxu0 0.0
    %410 = vmatpush1.msra.mxu0 0.0
    %411 = vmatprep.mubr.f32.mxu0 0.0
    %v412 = vand.u32 %v31, 4294901760
    %v413 = vsub.f32 %v31, %v412
    %414 = vmatmul.mubr.f32.gmra.mrb[0].mxu0 %v413
    %v415 = vpop.f32.mrb[0].mxu0
    %v416 = vadd.f32 %v312, %v415
    %v417 = vpop.f32.mrb[0].mxu0
    %418 = vdwg.mxu0
    %419 = vmatprep.subr.mxu0 0.0
    %v420 = vand.u32 %v32, 4294901760
    %421 = vmatpush1.msra.mxu0 %v420
    %422 = vmatprep.subr.mxu0 0.0
    %v423 = vand.u32 %v33, 4294901760
    %424 = vmatpush1.msra.mxu0 %v423
    %425 = vmatprep.subr.mxu0 0.0
    %v426 = vand.u32 %v34, 4294901760
    %427 = vmatpush1.msra.mxu0 %v426
    %428 = vmatprep.subr.mxu0 0.0
    %v429 = vand.u32 %v35, 4294901760
    %430 = vmatpush1.msra.mxu0 %v429
    %431 = vmatprep.subr.mxu0 0.0
    %v432 = vand.u32 %v36, 4294901760
    %433 = vmatpush1.msra.mxu0 %v432
    %434 = vmatprep.subr.mxu0 0.0
    %v435 = vand.u32 %v37, 4294901760
    %436 = vmatpush1.msra.mxu0 %v435
    %437 = vmatprep.subr.mxu0 0.0
    %v438 = vand.u32 %v38, 4294901760
    %439 = vmatpush1.msra.mxu0 %v438
    %440 = vmatprep.subr.mxu0 0.0
    %v441 = vand.u32 %v39, 4294901760
    %442 = vmatpush1.msra.mxu0 %v441
    %443 = vmatprep.subr.mxu0 0.0
    %v444 = vand.u32 %v40, 4294901760
    %445 = vmatpush1.msra.mxu0 %v444
    %446 = vmatprep.subr.mxu0 0.0
    %v447 = vand.u32 %v41, 4294901760
    %448 = vmatpush1.msra.mxu0 %v447
    %449 = vmatprep.subr.mxu0 0.0
    %v450 = vand.u32 %v42, 4294901760
    %451 = vmatpush1.msra.mxu0 %v450
    %452 = vmatprep.subr.mxu0 0.0
    %v453 = vand.u32 %v43, 4294901760
    %454 = vmatpush1.msra.mxu0 %v453
    %455 = vmatprep.subr.mxu0 0.0
    %v456 = vand.u32 %v44, 4294901760
    %457 = vmatpush1.msra.mxu0 %v456
    %458 = vmatprep.subr.mxu0 0.0
    %v459 = vand.u32 %v45, 4294901760
    %460 = vmatpush1.msra.mxu0 %v459
    %461 = vmatprep.subr.mxu0 0.0
    %v462 = vand.u32 %v46, 4294901760
    %463 = vmatpush1.msra.mxu0 %v462
    %464 = vmatprep.subr.mxu0 0.0
    %v465 = vand.u32 %v47, 4294901760
    %466 = vmatpush1.msra.mxu0 %v465
    %467 = vmatprep.subr.mxu0 0.0
    %468 = vmatpush1.msra.mxu0 0.0
    %469 = vmatprep.subr.mxu0 0.0
    %470 = vmatpush1.msra.mxu0 0.0
    %471 = vmatprep.subr.mxu0 0.0
    %472 = vmatpush1.msra.mxu0 0.0
    %473 = vmatprep.subr.mxu0 0.0
    %474 = vmatpush1.msra.mxu0 0.0
    %475 = vmatprep.subr.mxu0 0.0
    %476 = vmatpush1.msra.mxu0 0.0
    %477 = vmatprep.subr.mxu0 0.0
    %478 = vmatpush1.msra.mxu0 0.0
    %479 = vmatprep.subr.mxu0 0.0
    %480 = vmatpush1.msra.mxu0 0.0
    %481 = vmatprep.subr.mxu0 0.0
    %482 = vmatpush1.msra.mxu0 0.0
    %483 = vmatprep.subr.mxu0 0.0
    %484 = vmatpush1.msra.mxu0 0.0
    %485 = vmatprep.subr.mxu0 0.0
    %486 = vmatpush1.msra.mxu0 0.0
    %487 = vmatprep.subr.mxu0 0.0
    %488 = vmatpush1.msra.mxu0 0.0
    %489 = vmatprep.subr.mxu0 0.0
    %490 = vmatpush1.msra.mxu0 0.0
    %491 = vmatprep.subr.mxu0 0.0
    %492 = vmatpush1.msra.mxu0 0.0
    %493 = vmatprep.subr.mxu0 0.0
    %494 = vmatpush1.msra.mxu0 0.0
    %495 = vmatprep.subr.mxu0 0.0
    %496 = vmatpush1.msra.mxu0 0.0
    %497 = vmatprep.subr.mxu0 0.0
    %498 = vmatpush1.msra.mxu0 0.0
    %499 = vmatprep.mubr.f32.mxu0 0.0
    %v500 = vand.u32 %v31, 4294901760
    %v501 = vsub.f32 %v31, %v500
    %v502 = vand.u32 %v501, 4294901760
    %503 = vmatmul.mubr.f32.gmra.mrb[0].mxu0 %v502
    %v504 = vpop.f32.mrb[0].mxu0
    %v505 = vadd.f32 %v416, %v504
    %v506 = vpop.f32.mrb[0].mxu0
    %507 = vdwg.mxu0
    %508 = vmatprep.subr.mxu0 0.0
    %v509 = vand.u32 %v32, 4294901760
    %v510 = vsub.f32 %v32, %v509
    %v511 = vand.u32 %v510, 4294901760
    %512 = vmatpush1.msra.mxu0 %v511
    %513 = vmatprep.subr.mxu0 0.0
    %v514 = vand.u32 %v33, 4294901760
    %v515 = vsub.f32 %v33, %v514
    %v516 = vand.u32 %v515, 4294901760
    %517 = vmatpush1.msra.mxu0 %v516
    %518 = vmatprep.subr.mxu0 0.0
    %v519 = vand.u32 %v34, 4294901760
    %v520 = vsub.f32 %v34, %v519
    %v521 = vand.u32 %v520, 4294901760
    %522 = vmatpush1.msra.mxu0 %v521
    %523 = vmatprep.subr.mxu0 0.0
    %v524 = vand.u32 %v35, 4294901760
    %v525 = vsub.f32 %v35, %v524
    %v526 = vand.u32 %v525, 4294901760
    %527 = vmatpush1.msra.mxu0 %v526
    %528 = vmatprep.subr.mxu0 0.0
    %v529 = vand.u32 %v36, 4294901760
    %v530 = vsub.f32 %v36, %v529
    %v531 = vand.u32 %v530, 4294901760
    %532 = vmatpush1.msra.mxu0 %v531
    %533 = vmatprep.subr.mxu0 0.0
    %v534 = vand.u32 %v37, 4294901760
    %v535 = vsub.f32 %v37, %v534
    %v536 = vand.u32 %v535, 4294901760
    %537 = vmatpush1.msra.mxu0 %v536
    %538 = vmatprep.subr.mxu0 0.0
    %v539 = vand.u32 %v38, 4294901760
    %v540 = vsub.f32 %v38, %v539
    %v541 = vand.u32 %v540, 4294901760
    %542 = vmatpush1.msra.mxu0 %v541
    %543 = vmatprep.subr.mxu0 0.0
    %v544 = vand.u32 %v39, 4294901760
    %v545 = vsub.f32 %v39, %v544
    %v546 = vand.u32 %v545, 4294901760
    %547 = vmatpush1.msra.mxu0 %v546
    %548 = vmatprep.subr.mxu0 0.0
    %v549 = vand.u32 %v40, 4294901760
    %v550 = vsub.f32 %v40, %v549
    %v551 = vand.u32 %v550, 4294901760
    %552 = vmatpush1.msra.mxu0 %v551
    %553 = vmatprep.subr.mxu0 0.0
    %v554 = vand.u32 %v41, 4294901760
    %v555 = vsub.f32 %v41, %v554
    %v556 = vand.u32 %v555, 4294901760
    %557 = vmatpush1.msra.mxu0 %v556
    %558 = vmatprep.subr.mxu0 0.0
    %v559 = vand.u32 %v42, 4294901760
    %v560 = vsub.f32 %v42, %v559
    %v561 = vand.u32 %v560, 4294901760
    %562 = vmatpush1.msra.mxu0 %v561
    %563 = vmatprep.subr.mxu0 0.0
    %v564 = vand.u32 %v43, 4294901760
    %v565 = vsub.f32 %v43, %v564
    %v566 = vand.u32 %v565, 4294901760
    %567 = vmatpush1.msra.mxu0 %v566
    %568 = vmatprep.subr.mxu0 0.0
    %v569 = vand.u32 %v44, 4294901760
    %v570 = vsub.f32 %v44, %v569
    %v571 = vand.u32 %v570, 4294901760
    %572 = vmatpush1.msra.mxu0 %v571
    %573 = vmatprep.subr.mxu0 0.0
    %v574 = vand.u32 %v45, 4294901760
    %v575 = vsub.f32 %v45, %v574
    %v576 = vand.u32 %v575, 4294901760
    %577 = vmatpush1.msra.mxu0 %v576
    %578 = vmatprep.subr.mxu0 0.0
    %v579 = vand.u32 %v46, 4294901760
    %v580 = vsub.f32 %v46, %v579
    %v581 = vand.u32 %v580, 4294901760
    %582 = vmatpush1.msra.mxu0 %v581
    %583 = vmatprep.subr.mxu0 0.0
    %v584 = vand.u32 %v47, 4294901760
    %v585 = vsub.f32 %v47, %v584
    %v586 = vand.u32 %v585, 4294901760
    %587 = vmatpush1.msra.mxu0 %v586
    %588 = vmatprep.subr.mxu0 0.0
    %589 = vmatpush1.msra.mxu0 0.0
    %590 = vmatprep.subr.mxu0 0.0
    %591 = vmatpush1.msra.mxu0 0.0
    %592 = vmatprep.subr.mxu0 0.0
    %593 = vmatpush1.msra.mxu0 0.0
    %594 = vmatprep.subr.mxu0 0.0
    %595 = vmatpush1.msra.mxu0 0.0
    %596 = vmatprep.subr.mxu0 0.0
    %597 = vmatpush1.msra.mxu0 0.0
    %598 = vmatprep.subr.mxu0 0.0
    %599 = vmatpush1.msra.mxu0 0.0
    %600 = vmatprep.subr.mxu0 0.0
    %601 = vmatpush1.msra.mxu0 0.0
    %602 = vmatprep.subr.mxu0 0.0
    %603 = vmatpush1.msra.mxu0 0.0
    %604 = vmatprep.subr.mxu0 0.0
    %605 = vmatpush1.msra.mxu0 0.0
    %606 = vmatprep.subr.mxu0 0.0
    %607 = vmatpush1.msra.mxu0 0.0
    %608 = vmatprep.subr.mxu0 0.0
    %609 = vmatpush1.msra.mxu0 0.0
    %610 = vmatprep.subr.mxu0 0.0
    %611 = vmatpush1.msra.mxu0 0.0
    %612 = vmatprep.subr.mxu0 0.0
    %613 = vmatpush1.msra.mxu0 0.0
    %614 = vmatprep.subr.mxu0 0.0
    %615 = vmatpush1.msra.mxu0 0.0
    %616 = vmatprep.subr.mxu0 0.0
    %617 = vmatpush1.msra.mxu0 0.0
    %618 = vmatprep.subr.mxu0 0.0
    %619 = vmatpush1.msra.mxu0 0.0
    %620 = vmatprep.mubr.f32.mxu0 0.0
    %v621 = vand.u32 %v31, 4294901760
    %622 = vmatmul.mubr.f32.gmra.mrb[0].mxu0 %v621
    %v623 = vpop.f32.mrb[0].mxu0
    %v624 = vadd.f32 %v505, %v623
    %v625 = vpop.f32.mrb[0].mxu0
    %626 = vdwg.mxu0
    %627 = vmatprep.subr.mxu0 0.0
    %v628 = vand.u32 %v32, 4294901760
    %629 = vmatpush1.msra.mxu0 %v628
    %630 = vmatprep.subr.mxu0 0.0
    %v631 = vand.u32 %v33, 4294901760
    %632 = vmatpush1.msra.mxu0 %v631
    %633 = vmatprep.subr.mxu0 0.0
    %v634 = vand.u32 %v34, 4294901760
    %635 = vmatpush1.msra.mxu0 %v634
    %636 = vmatprep.subr.mxu0 0.0
    %v637 = vand.u32 %v35, 4294901760
    %638 = vmatpush1.msra.mxu0 %v637
    %639 = vmatprep.subr.mxu0 0.0
    %v640 = vand.u32 %v36, 4294901760
    %641 = vmatpush1.msra.mxu0 %v640
    %642 = vmatprep.subr.mxu0 0.0
    %v643 = vand.u32 %v37, 4294901760
    %644 = vmatpush1.msra.mxu0 %v643
    %645 = vmatprep.subr.mxu0 0.0
    %v646 = vand.u32 %v38, 4294901760
    %647 = vmatpush1.msra.mxu0 %v646
    %648 = vmatprep.subr.mxu0 0.0
    %v649 = vand.u32 %v39, 4294901760
    %650 = vmatpush1.msra.mxu0 %v649
    %651 = vmatprep.subr.mxu0 0.0
    %v652 = vand.u32 %v40, 4294901760
    %653 = vmatpush1.msra.mxu0 %v652
    %654 = vmatprep.subr.mxu0 0.0
    %v655 = vand.u32 %v41, 4294901760
    %656 = vmatpush1.msra.mxu0 %v655
    %657 = vmatprep.subr.mxu0 0.0
    %v658 = vand.u32 %v42, 4294901760
    %659 = vmatpush1.msra.mxu0 %v658
    %660 = vmatprep.subr.mxu0 0.0
    %v661 = vand.u32 %v43, 4294901760
    %662 = vmatpush1.msra.mxu0 %v661
    %663 = vmatprep.subr.mxu0 0.0
    %v664 = vand.u32 %v44, 4294901760
    %665 = vmatpush1.msra.mxu0 %v664
    %666 = vmatprep.subr.mxu0 0.0
    %v667 = vand.u32 %v45, 4294901760
    %668 = vmatpush1.msra.mxu0 %v667
    %669 = vmatprep.subr.mxu0 0.0
    %v670 = vand.u32 %v46, 4294901760
    %671 = vmatpush1.msra.mxu0 %v670
    %672 = vmatprep.subr.mxu0 0.0
    %v673 = vand.u32 %v47, 4294901760
    %674 = vmatpush1.msra.mxu0 %v673
    %675 = vmatprep.subr.mxu0 0.0
    %676 = vmatpush1.msra.mxu0 0.0
    %677 = vmatprep.subr.mxu0 0.0
    %678 = vmatpush1.msra.mxu0 0.0
    %679 = vmatprep.subr.mxu0 0.0
    %680 = vmatpush1.msra.mxu0 0.0
    %681 = vmatprep.subr.mxu0 0.0
    %682 = vmatpush1.msra.mxu0 0.0
    %683 = vmatprep.subr.mxu0 0.0
    %684 = vmatpush1.msra.mxu0 0.0
    %685 = vmatprep.subr.mxu0 0.0
    %686 = vmatpush1.msra.mxu0 0.0
    %687 = vmatprep.subr.mxu0 0.0
    %688 = vmatpush1.msra.mxu0 0.0
    %689 = vmatprep.subr.mxu0 0.0
    %690 = vmatpush1.msra.mxu0 0.0
    %691 = vmatprep.subr.mxu0 0.0
    %692 = vmatpush1.msra.mxu0 0.0
    %693 = vmatprep.subr.mxu0 0.0
    %694 = vmatpush1.msra.mxu0 0.0
    %695 = vmatprep.subr.mxu0 0.0
    %696 = vmatpush1.msra.mxu0 0.0
    %697 = vmatprep.subr.mxu0 0.0
    %698 = vmatpush1.msra.mxu0 0.0
    %699 = vmatprep.subr.mxu0 0.0
    %700 = vmatpush1.msra.mxu0 0.0
    %701 = vmatprep.subr.mxu0 0.0
    %702 = vmatpush1.msra.mxu0 0.0
    %703 = vmatprep.subr.mxu0 0.0
    %704 = vmatpush1.msra.mxu0 0.0
    %705 = vmatprep.subr.mxu0 0.0
    %706 = vmatpush1.msra.mxu0 0.0
    %707 = vmatprep.mubr.f32.mxu0 0.0
    %v708 = vand.u32 %v31, 4294901760
    %709 = vmatmul.mubr.f32.gmra.mrb[0].mxu0 %v708
    %v710 = vpop.f32.mrb[0].mxu0
    %v711 = vadd.f32 %v624, %v710
    %v712 = vpop.f32.mrb[0].mxu0
    %713 = vdwg.mxu0
    %v714 = vmax.f32 %v711, 0.0
    %v715 = vlaneseq
    %v716 = vshrl.u32 %v715, 7
    %v717 = vsub.s32 0, %v716
    %v718 = vrot.slane %v66, %v717
    %719 = vmatprep.subr.mxu0 0.0
    %v720 = vand.u32 %v49, 4294901760
    %721 = vmatpush1.msra.mxu0 %v720
    %722 = vmatprep.subr.mxu0 0.0
    %v723 = vand.u32 %v50, 4294901760
    %724 = vmatpush1.msra.mxu0 %v723
    %725 = vmatprep.subr.mxu0 0.0
    %v726 = vand.u32 %v51, 4294901760
    %727 = vmatpush1.msra.mxu0 %v726
    %728 = vmatprep.subr.mxu0 0.0
    %v729 = vand.u32 %v52, 4294901760
    %730 = vmatpush1.msra.mxu0 %v729
    %731 = vmatprep.subr.mxu0 0.0
    %v732 = vand.u32 %v53, 4294901760
    %733 = vmatpush1.msra.mxu0 %v732
    %734 = vmatprep.subr.mxu0 0.0
    %v735 = vand.u32 %v54, 4294901760
    %736 = vmatpush1.msra.mxu0 %v735
    %737 = vmatprep.subr.mxu0 0.0
    %v738 = vand.u32 %v55, 4294901760
    %739 = vmatpush1.msra.mxu0 %v738
    %740 = vmatprep.subr.mxu0 0.0
    %v741 = vand.u32 %v56, 4294901760
    %742 = vmatpush1.msra.mxu0 %v741
    %743 = vmatprep.subr.mxu0 0.0
    %v744 = vand.u32 %v57, 4294901760
    %745 = vmatpush1.msra.mxu0 %v744
    %746 = vmatprep.subr.mxu0 0.0
    %v747 = vand.u32 %v58, 4294901760
    %748 = vmatpush1.msra.mxu0 %v747
    %749 = vmatprep.subr.mxu0 0.0
    %v750 = vand.u32 %v59, 4294901760
    %751 = vmatpush1.msra.mxu0 %v750
    %752 = vmatprep.subr.mxu0 0.0
    %v753 = vand.u32 %v60, 4294901760
    %754 = vmatpush1.msra.mxu0 %v753
    %755 = vmatprep.subr.mxu0 0.0
    %v756 = vand.u32 %v61, 4294901760
    %757 = vmatpush1.msra.mxu0 %v756
    %758 = vmatprep.subr.mxu0 0.0
    %v759 = vand.u32 %v62, 4294901760
    %760 = vmatpush1.msra.mxu0 %v759
    %761 = vmatprep.subr.mxu0 0.0
    %v762 = vand.u32 %v63, 4294901760
    %763 = vmatpush1.msra.mxu0 %v762
    %764 = vmatprep.subr.mxu0 0.0
    %v765 = vand.u32 %v64, 4294901760
    %766 = vmatpush1.msra.mxu0 %v765
    %767 = vmatprep.subr.mxu0 0.0
    %768 = vmatpush1.msra.mxu0 0.0
    %769 = vmatprep.subr.mxu0 0.0
    %770 = vmatpush1.msra.mxu0 0.0
    %771 = vmatprep.subr.mxu0 0.0
    %772 = vmatpush1.msra.mxu0 0.0
    %773 = vmatprep.subr.mxu0 0.0
    %774 = vmatpush1.msra.mxu0 0.0
    %775 = vmatprep.subr.mxu0 0.0
    %776 = vmatpush1.msra.mxu0 0.0
    %777 = vmatprep.subr.mxu0 0.0
    %778 = vmatpush1.msra.mxu0 0.0
    %779 = vmatprep.subr.mxu0 0.0
    %780 = vmatpush1.msra.mxu0 0.0
    %781 = vmatprep.subr.mxu0 0.0
    %782 = vmatpush1.msra.mxu0 0.0
    %783 = vmatprep.subr.mxu0 0.0
    %784 = vmatpush1.msra.mxu0 0.0
    %785 = vmatprep.subr.mxu0 0.0
    %786 = vmatpush1.msra.mxu0 0.0
    %787 = vmatprep.subr.mxu0 0.0
    %788 = vmatpush1.msra.mxu0 0.0
    %789 = vmatprep.subr.mxu0 0.0
    %790 = vmatpush1.msra.mxu0 0.0
    %791 = vmatprep.subr.mxu0 0.0
    %792 = vmatpush1.msra.mxu0 0.0
    %793 = vmatprep.subr.mxu0 0.0
    %794 = vmatpush1.msra.mxu0 0.0
    %795 = vmatprep.subr.mxu0 0.0
    %796 = vmatpush1.msra.mxu0 0.0
    %797 = vmatprep.subr.mxu0 0.0
    %798 = vmatpush1.msra.mxu0 0.0
    %799 = vmatprep.mubr.f32.mxu0 0.0
    %v800 = vand.u32 %v714, 4294901760
    %v801 = vsub.f32 %v714, %v800
    %v802 = vand.u32 %v801, 4294901760
    %v803 = vsub.f32 %v801, %v802
    %v804 = vand.u32 %v803, 4294901760
    %805 = vmatmul.mubr.f32.gmra.mrb[0].mxu0 %v804
    %v806 = vpop.f32.mrb[0].mxu0
    %v807 = vadd.f32 %v718, %v806
    %v808 = vpop.f32.mrb[0].mxu0
    %809 = vdwg.mxu0
    %810 = vmatprep.subr.mxu0 0.0
    %v811 = vand.u32 %v49, 4294901760
    %v812 = vsub.f32 %v49, %v811
    %v813 = vand.u32 %v812, 4294901760
    %v814 = vsub.f32 %v812, %v813
    %v815 = vand.u32 %v814, 4294901760
    %816 = vmatpush1.msra.mxu0 %v815
    %817 = vmatprep.subr.mxu0 0.0
    %v818 = vand.u32 %v50, 4294901760
    %v819 = vsub.f32 %v50, %v818
    %v820 = vand.u32 %v819, 4294901760
    %v821 = vsub.f32 %v819, %v820
    %v822 = vand.u32 %v821, 4294901760
    %823 = vmatpush1.msra.mxu0 %v822
    %824 = vmatprep.subr.mxu0 0.0
    %v825 = vand.u32 %v51, 4294901760
    %v826 = vsub.f32 %v51, %v825
    %v827 = vand.u32 %v826, 4294901760
    %v828 = vsub.f32 %v826, %v827
    %v829 = vand.u32 %v828, 4294901760
    %830 = vmatpush1.msra.mxu0 %v829
    %831 = vmatprep.subr.mxu0 0.0
    %v832 = vand.u32 %v52, 4294901760
    %v833 = vsub.f32 %v52, %v832
    %v834 = vand.u32 %v833, 4294901760
    %v835 = vsub.f32 %v833, %v834
    %v836 = vand.u32 %v835, 4294901760
    %837 = vmatpush1.msra.mxu0 %v836
    %838 = vmatprep.subr.mxu0 0.0
    %v839 = vand.u32 %v53, 4294901760
    %v840 = vsub.f32 %v53, %v839
    %v841 = vand.u32 %v840, 4294901760
    %v842 = vsub.f32 %v840, %v841
    %v843 = vand.u32 %v842, 4294901760
    %844 = vmatpush1.msra.mxu0 %v843
    %845 = vmatprep.subr.mxu0 0.0
    %v846 = vand.u32 %v54, 4294901760
    %v847 = vsub.f32 %v54, %v846
    %v848 = vand.u32 %v847, 4294901760
    %v849 = vsub.f32 %v847, %v848
    %v850 = vand.u32 %v849, 4294901760
    %851 = vmatpush1.msra.mxu0 %v850
    %852 = vmatprep.subr.mxu0 0.0
    %v853 = vand.u32 %v55, 4294901760
    %v854 = vsub.f32 %v55, %v853
    %v855 = vand.u32 %v854, 4294901760
    %v856 = vsub.f32 %v854, %v855
    %v857 = vand.u32 %v856, 4294901760
    %858 = vmatpush1.msra.mxu0 %v857
    %859 = vmatprep.subr.mxu0 0.0
    %v860 = vand.u32 %v56, 4294901760
    %v861 = vsub.f32 %v56, %v860
    %v862 = vand.u32 %v861, 4294901760
    %v863 = vsub.f32 %v861, %v862
    %v864 = vand.u32 %v863, 4294901760
    %865 = vmatpush1.msra.mxu0 %v864
    %866 = vmatprep.subr.mxu0 0.0
    %v867 = vand.u32 %v57, 4294901760
    %v868 = vsub.f32 %v57, %v867
    %v869 = vand.u32 %v868, 4294901760
    %v870 = vsub.f32 %v868, %v869
    %v871 = vand.u32 %v870, 4294901760
    %872 = vmatpush1.msra.mxu0 %v871
    %873 = vmatprep.subr.mxu0 0.0
    %v874 = vand.u32 %v58, 4294901760
    %v875 = vsub.f32 %v58, %v874
    %v876 = vand.u32 %v875, 4294901760
    %v877 = vsub.f32 %v875, %v876
    %v878 = vand.u32 %v877, 4294901760
    %879 = vmatpush1.msra.mxu0 %v878
    %880 = vmatprep.subr.mxu0 0.0
    %v881 = vand.u32 %v59, 4294901760
    %v882 = vsub.f32 %v59, %v881
    %v883 = vand.u32 %v882, 4294901760
    %v884 = vsub.f32 %v882, %v883
    %v885 = vand.u32 %v884, 4294901760
    %886 = vmatpush1.msra.mxu0 %v885
    %887 = vmatprep.subr.mxu0 0.0
    %v888 = vand.u32 %v60, 4294901760
    %v889 = vsub.f32 %v60, %v888
    %v890 = vand.u32 %v889, 4294901760
    %v891 = vsub.f32 %v889, %v890
    %v892 = vand.u32 %v891, 4294901760
    %893 = vmatpush1.msra.mxu0 %v892
    %894 = vmatprep.subr.mxu0 0.0
    %v895 = vand.u32 %v61, 4294901760
    %v896 = vsub.f32 %v61, %v895
    %v897 = vand.u32 %v896, 4294901760
    %v898 = vsub.f32 %v896, %v897
    %v899 = vand.u32 %v898, 4294901760
    %900 = vmatpush1.msra.mxu0 %v899
    %901 = vmatprep.subr.mxu0 0.0
    %v902 = vand.u32 %v62, 4294901760
    %v903 = vsub.f32 %v62, %v902
    %v904 = vand.u32 %v903, 4294901760
    %v905 = vsub.f32 %v903, %v904
    %v906 = vand.u32 %v905, 4294901760
    %907 = vmatpush1.msra.mxu0 %v906
    %908 = vmatprep.subr.mxu0 0.0
    %v909 = vand.u32 %v63, 4294901760
    %v910 = vsub.f32 %v63, %v909
    %v911 = vand.u32 %v910, 4294901760
    %v912 = vsub.f32 %v910, %v911
    %v913 = vand.u32 %v912, 4294901760
    %914 = vmatpush1.msra.mxu0 %v913
    %915 = vmatprep.subr.mxu0 0.0
    %v916 = vand.u32 %v64, 4294901760
    %v917 = vsub.f32 %v64, %v916
    %v918 = vand.u32 %v917, 4294901760
    %v919 = vsub.f32 %v917, %v918
    %v920 = vand.u32 %v919, 4294901760
    %921 = vmatpush1.msra.mxu0 %v920
    %922 = vmatprep.subr.mxu0 0.0
    %923 = vmatpush1.msra.mxu0 0.0
    %924 = vmatprep.subr.mxu0 0.0
    %925 = vmatpush1.msra.mxu0 0.0
    %926 = vmatprep.subr.mxu0 0.0
    %927 = vmatpush1.msra.mxu0 0.0
    %928 = vmatprep.subr.mxu0 0.0
    %929 = vmatpush1.msra.mxu0 0.0
    %930 = vmatprep.subr.mxu0 0.0
    %931 = vmatpush1.msra.mxu0 0.0
    %932 = vmatprep.subr.mxu0 0.0
    %933 = vmatpush1.msra.mxu0 0.0
    %934 = vmatprep.subr.mxu0 0.0
    %935 = vmatpush1.msra.mxu0 0.0
    %936 = vmatprep.subr.mxu0 0.0
    %937 = vmatpush1.msra.mxu0 0.0
    %938 = vmatprep.subr.mxu0 0.0
    %939 = vmatpush1.msra.mxu0 0.0
    %940 = vmatprep.subr.mxu0 0.0
    %941 = vmatpush1.msra.mxu0 0.0
    %942 = vmatprep.subr.mxu0 0.0
    %943 = vmatpush1.msra.mxu0 0.0
    %944 = vmatprep.subr.mxu0 0.0
    %945 = vmatpush1.msra.mxu0 0.0
    %946 = vmatprep.subr.mxu0 0.0
    %947 = vmatpush1.msra.mxu0 0.0
    %948 = vmatprep.subr.mxu0 0.0
    %949 = vmatpush1.msra.mxu0 0.0
    %950 = vmatprep.subr.mxu0 0.0
    %951 = vmatpush1.msra.mxu0 0.0
    %952 = vmatprep.subr.mxu0 0.0
    %953 = vmatpush1.msra.mxu0 0.0
    %954 = vmatprep.mubr.f32.mxu0 0.0
    %v955 = vand.u32 %v714, 4294901760
    %956 = vmatmul.mubr.f32.gmra.mrb[0].mxu0 %v955
    %v957 = vpop.f32.mrb[0].mxu0
    %v958 = vadd.f32 %v807, %v957
    %v959 = vpop.f32.mrb[0].mxu0
    %960 = vdwg.mxu0
    %961 = vmatprep.subr.mxu0 0.0
    %v962 = vand.u32 %v49, 4294901760
    %v963 = vsub.f32 %v49, %v962
    %964 = vmatpush1.msra.mxu0 %v963
    %965 = vmatprep.subr.mxu0 0.0
    %v966 = vand.u32 %v50, 4294901760
    %v967 = vsub.f32 %v50, %v966
    %968 = vmatpush1.msra.mxu0 %v967
    %969 = vmatprep.subr.mxu0 0.0
    %v970 = vand.u32 %v51, 4294901760
    %v971 = vsub.f32 %v51, %v970
    %972 = vmatpush1.msra.mxu0 %v971
    %973 = vmatprep.subr.mxu0 0.0
    %v974 = vand.u32 %v52, 4294901760
    %v975 = vsub.f32 %v52, %v974
    %976 = vmatpush1.msra.mxu0 %v975
    %977 = vmatprep.subr.mxu0 0.0
    %v978 = vand.u32 %v53, 4294901760
    %v979 = vsub.f32 %v53, %v978
    %980 = vmatpush1.msra.mxu0 %v979
    %981 = vmatprep.subr.mxu0 0.0
    %v982 = vand.u32 %v54, 4294901760
    %v983 = vsub.f32 %v54, %v982
    %984 = vmatpush1.msra.mxu0 %v983
    %985 = vmatprep.subr.mxu0 0.0
    %v986 = vand.u32 %v55, 4294901760
    %v987 = vsub.f32 %v55, %v986
    %988 = vmatpush1.msra.mxu0 %v987
    %989 = vmatprep.subr.mxu0 0.0
    %v990 = vand.u32 %v56, 4294901760
    %v991 = vsub.f32 %v56, %v990
    %992 = vmatpush1.msra.mxu0 %v991
    %993 = vmatprep.subr.mxu0 0.0
    %v994 = vand.u32 %v57, 4294901760
    %v995 = vsub.f32 %v57, %v994
    %996 = vmatpush1.msra.mxu0 %v995
    %997 = vmatprep.subr.mxu0 0.0
    %v998 = vand.u32 %v58, 4294901760
    %v999 = vsub.f32 %v58, %v998
    %1000 = vmatpush1.msra.mxu0 %v999
    %1001 = vmatprep.subr.mxu0 0.0
    %v1002 = vand.u32 %v59, 4294901760
    %v1003 = vsub.f32 %v59, %v1002
    %1004 = vmatpush1.msra.mxu0 %v1003
    %1005 = vmatprep.subr.mxu0 0.0
    %v1006 = vand.u32 %v60, 4294901760
    %v1007 = vsub.f32 %v60, %v1006
    %1008 = vmatpush1.msra.mxu0 %v1007
    %1009 = vmatprep.subr.mxu0 0.0
    %v1010 = vand.u32 %v61, 4294901760
    %v1011 = vsub.f32 %v61, %v1010
    %1012 = vmatpush1.msra.mxu0 %v1011
    %1013 = vmatprep.subr.mxu0 0.0
    %v1014 = vand.u32 %v62, 4294901760
    %v1015 = vsub.f32 %v62, %v1014
    %1016 = vmatpush1.msra.mxu0 %v1015
    %1017 = vmatprep.subr.mxu0 0.0
    %v1018 = vand.u32 %v63, 4294901760
    %v1019 = vsub.f32 %v63, %v1018
    %1020 = vmatpush1.msra.mxu0 %v1019
    %1021 = vmatprep.subr.mxu0 0.0
    %v1022 = vand.u32 %v64, 4294901760
    %v1023 = vsub.f32 %v64, %v1022
    %1024 = vmatpush1.msra.mxu0 %v1023
    %1025 = vmatprep.subr.mxu0 0.0
    %1026 = vmatpush1.msra.mxu0 0.0
    %1027 = vmatprep.subr.mxu0 0.0
    %1028 = vmatpush1.msra.mxu0 0.0
    %1029 = vmatprep.subr.mxu0 0.0
    %1030 = vmatpush1.msra.mxu0 0.0
    %1031 = vmatprep.subr.mxu0 0.0
    %1032 = vmatpush1.msra.mxu0 0.0
    %1033 = vmatprep.subr.mxu0 0.0
    %1034 = vmatpush1.msra.mxu0 0.0
    %1035 = vmatprep.subr.mxu0 0.0
    %1036 = vmatpush1.msra.mxu0 0.0
    %1037 = vmatprep.subr.mxu0 0.0
    %1038 = vmatpush1.msra.mxu0 0.0
    %1039 = vmatprep.subr.mxu0 0.0
    %1040 = vmatpush1.msra.mxu0 0.0
    %1041 = vmatprep.subr.mxu0 0.0
    %1042 = vmatpush1.msra.mxu0 0.0
    %1043 = vmatprep.subr.mxu0 0.0
    %1044 = vmatpush1.msra.mxu0 0.0
    %1045 = vmatprep.subr.mxu0 0.0
    %1046 = vmatpush1.msra.mxu0 0.0
    %1047 = vmatprep.subr.mxu0 0.0
    %1048 = vmatpush1.msra.mxu0 0.0
    %1049 = vmatprep.subr.mxu0 0.0
    %1050 = vmatpush1.msra.mxu0 0.0
    %1051 = vmatprep.subr.mxu0 0.0
    %1052 = vmatpush1.msra.mxu0 0.0
    %1053 = vmatprep.subr.mxu0 0.0
    %1054 = vmatpush1.msra.mxu0 0.0
    %1055 = vmatprep.subr.mxu0 0.0
    %1056 = vmatpush1.msra.mxu0 0.0
    %1057 = vmatprep.mubr.f32.mxu0 0.0
    %v1058 = vand.u32 %v714, 4294901760
    %v1059 = vsub.f32 %v714, %v1058
    %1060 = vmatmul.mubr.f32.gmra.mrb[0].mxu0 %v1059
    %v1061 = vpop.f32.mrb[0].mxu0
    %v1062 = vadd.f32 %v958, %v1061
    %v1063 = vpop.f32.mrb[0].mxu0
    %1064 = vdwg.mxu0
    %1065 = vmatprep.subr.mxu0 0.0
    %v1066 = vand.u32 %v49, 4294901760
    %1067 = vmatpush1.msra.mxu0 %v1066
    %1068 = vmatprep.subr.mxu0 0.0
    %v1069 = vand.u32 %v50, 4294901760
    %1070 = vmatpush1.msra.mxu0 %v1069
    %1071 = vmatprep.subr.mxu0 0.0
    %v1072 = vand.u32 %v51, 4294901760
    %1073 = vmatpush1.msra.mxu0 %v1072
    %1074 = vmatprep.subr.mxu0 0.0
    %v1075 = vand.u32 %v52, 4294901760
    %1076 = vmatpush1.msra.mxu0 %v1075
    %1077 = vmatprep.subr.mxu0 0.0
    %v1078 = vand.u32 %v53, 4294901760
    %1079 = vmatpush1.msra.mxu0 %v1078
    %1080 = vmatprep.subr.mxu0 0.0
    %v1081 = vand.u32 %v54, 4294901760
    %1082 = vmatpush1.msra.mxu0 %v1081
    %1083 = vmatprep.subr.mxu0 0.0
    %v1084 = vand.u32 %v55, 4294901760
    %1085 = vmatpush1.msra.mxu0 %v1084
    %1086 = vmatprep.subr.mxu0 0.0
    %v1087 = vand.u32 %v56, 4294901760
    %1088 = vmatpush1.msra.mxu0 %v1087
    %1089 = vmatprep.subr.mxu0 0.0
    %v1090 = vand.u32 %v57, 4294901760
    %1091 = vmatpush1.msra.mxu0 %v1090
    %1092 = vmatprep.subr.mxu0 0.0
    %v1093 = vand.u32 %v58, 4294901760
    %1094 = vmatpush1.msra.mxu0 %v1093
    %1095 = vmatprep.subr.mxu0 0.0
    %v1096 = vand.u32 %v59, 4294901760
    %1097 = vmatpush1.msra.mxu0 %v1096
    %1098 = vmatprep.subr.mxu0 0.0
    %v1099 = vand.u32 %v60, 4294901760
    %1100 = vmatpush1.msra.mxu0 %v1099
    %1101 = vmatprep.subr.mxu0 0.0
    %v1102 = vand.u32 %v61, 4294901760
    %1103 = vmatpush1.msra.mxu0 %v1102
    %1104 = vmatprep.subr.mxu0 0.0
    %v1105 = vand.u32 %v62, 4294901760
    %1106 = vmatpush1.msra.mxu0 %v1105
    %1107 = vmatprep.subr.mxu0 0.0
    %v1108 = vand.u32 %v63, 4294901760
    %1109 = vmatpush1.msra.mxu0 %v1108
    %1110 = vmatprep.subr.mxu0 0.0
    %v1111 = vand.u32 %v64, 4294901760
    %1112 = vmatpush1.msra.mxu0 %v1111
    %1113 = vmatprep.subr.mxu0 0.0
    %1114 = vmatpush1.msra.mxu0 0.0
    %1115 = vmatprep.subr.mxu0 0.0
    %1116 = vmatpush1.msra.mxu0 0.0
    %1117 = vmatprep.subr.mxu0 0.0
    %1118 = vmatpush1.msra.mxu0 0.0
    %1119 = vmatprep.subr.mxu0 0.0
    %1120 = vmatpush1.msra.mxu0 0.0
    %1121 = vmatprep.subr.mxu0 0.0
    %1122 = vmatpush1.msra.mxu0 0.0
    %1123 = vmatprep.subr.mxu0 0.0
    %1124 = vmatpush1.msra.mxu0 0.0
    %1125 = vmatprep.subr.mxu0 0.0
    %1126 = vmatpush1.msra.mxu0 0.0
    %1127 = vmatprep.subr.mxu0 0.0
    %1128 = vmatpush1.msra.mxu0 0.0
    %1129 = vmatprep.subr.mxu0 0.0
    %1130 = vmatpush1.msra.mxu0 0.0
    %1131 = vmatprep.subr.mxu0 0.0
    %1132 = vmatpush1.msra.mxu0 0.0
    %1133 = vmatprep.subr.mxu0 0.0
    %1134 = vmatpush1.msra.mxu0 0.0
    %1135 = vmatprep.subr.mxu0 0.0
    %1136 = vmatpush1.msra.mxu0 0.0
    %1137 = vmatprep.subr.mxu0 0.0
    %1138 = vmatpush1.msra.mxu0 0.0
    %1139 = vmatprep.subr.mxu0 0.0
    %1140 = vmatpush1.msra.mxu0 0.0
    %1141 = vmatprep.subr.mxu0 0.0
    %1142 = vmatpush1.msra.mxu0 0.0
    %1143 = vmatprep.subr.mxu0 0.0
    %1144 = vmatpush1.msra.mxu0 0.0
    %1145 = vmatprep.mubr.f32.mxu0 0.0
    %v1146 = vand.u32 %v714, 4294901760
    %v1147 = vsub.f32 %v714, %v1146
    %v1148 = vand.u32 %v1147, 4294901760
    %1149 = vmatmul.mubr.f32.gmra.mrb[0].mxu0 %v1148
    %v1150 = vpop.f32.mrb[0].mxu0
    %v1151 = vadd.f32 %v1062, %v1150
    %v1152 = vpop.f32.mrb[0].mxu0
    %1153 = vdwg.mxu0
    %1154 = vmatprep.subr.mxu0 0.0
    %v1155 = vand.u32 %v49, 4294901760
    %v1156 = vsub.f32 %v49, %v1155
    %v1157 = vand.u32 %v1156, 4294901760
    %1158 = vmatpush1.msra.mxu0 %v1157
    %1159 = vmatprep.subr.mxu0 0.0
    %v1160 = vand.u32 %v50, 4294901760
    %v1161 = vsub.f32 %v50, %v1160
    %v1162 = vand.u32 %v1161, 4294901760
    %1163 = vmatpush1.msra.mxu0 %v1162
    %1164 = vmatprep.subr.mxu0 0.0
    %v1165 = vand.u32 %v51, 4294901760
    %v1166 = vsub.f32 %v51, %v1165
    %v1167 = vand.u32 %v1166, 4294901760
    %1168 = vmatpush1.msra.mxu0 %v1167
    %1169 = vmatprep.subr.mxu0 0.0
    %v1170 = vand.u32 %v52, 4294901760
    %v1171 = vsub.f32 %v52, %v1170
    %v1172 = vand.u32 %v1171, 4294901760
    %1173 = vmatpush1.msra.mxu0 %v1172
    %1174 = vmatprep.subr.mxu0 0.0
    %v1175 = vand.u32 %v53, 4294901760
    %v1176 = vsub.f32 %v53, %v1175
    %v1177 = vand.u32 %v1176, 4294901760
    %1178 = vmatpush1.msra.mxu0 %v1177
    %1179 = vmatprep.subr.mxu0 0.0
    %v1180 = vand.u32 %v54, 4294901760
    %v1181 = vsub.f32 %v54, %v1180
    %v1182 = vand.u32 %v1181, 4294901760
    %1183 = vmatpush1.msra.mxu0 %v1182
    %1184 = vmatprep.subr.mxu0 0.0
    %v1185 = vand.u32 %v55, 4294901760
    %v1186 = vsub.f32 %v55, %v1185
    %v1187 = vand.u32 %v1186, 4294901760
    %1188 = vmatpush1.msra.mxu0 %v1187
    %1189 = vmatprep.subr.mxu0 0.0
    %v1190 = vand.u32 %v56, 4294901760
    %v1191 = vsub.f32 %v56, %v1190
    %v1192 = vand.u32 %v1191, 4294901760
    %1193 = vmatpush1.msra.mxu0 %v1192
    %1194 = vmatprep.subr.mxu0 0.0
    %v1195 = vand.u32 %v57, 4294901760
    %v1196 = vsub.f32 %v57, %v1195
    %v1197 = vand.u32 %v1196, 4294901760
    %1198 = vmatpush1.msra.mxu0 %v1197
    %1199 = vmatprep.subr.mxu0 0.0
    %v1200 = vand.u32 %v58, 4294901760
    %v1201 = vsub.f32 %v58, %v1200
    %v1202 = vand.u32 %v1201, 4294901760
    %1203 = vmatpush1.msra.mxu0 %v1202
    %1204 = vmatprep.subr.mxu0 0.0
    %v1205 = vand.u32 %v59, 4294901760
    %v1206 = vsub.f32 %v59, %v1205
    %v1207 = vand.u32 %v1206, 4294901760
    %1208 = vmatpush1.msra.mxu0 %v1207
    %1209 = vmatprep.subr.mxu0 0.0
    %v1210 = vand.u32 %v60, 4294901760
    %v1211 = vsub.f32 %v60, %v1210
    %v1212 = vand.u32 %v1211, 4294901760
    %1213 = vmatpush1.msra.mxu0 %v1212
    %1214 = vmatprep.subr.mxu0 0.0
    %v1215 = vand.u32 %v61, 4294901760
    %v1216 = vsub.f32 %v61, %v1215
    %v1217 = vand.u32 %v1216, 4294901760
    %1218 = vmatpush1.msra.mxu0 %v1217
    %1219 = vmatprep.subr.mxu0 0.0
    %v1220 = vand.u32 %v62, 4294901760
    %v1221 = vsub.f32 %v62, %v1220
    %v1222 = vand.u32 %v1221, 4294901760
    %1223 = vmatpush1.msra.mxu0 %v1222
    %1224 = vmatprep.subr.mxu0 0.0
    %v1225 = vand.u32 %v63, 4294901760
    %v1226 = vsub.f32 %v63, %v1225
    %v1227 = vand.u32 %v1226, 4294901760
    %1228 = vmatpush1.msra.mxu0 %v1227
    %1229 = vmatprep.subr.mxu0 0.0
    %v1230 = vand.u32 %v64, 4294901760
    %v1231 = vsub.f32 %v64, %v1230
    %v1232 = vand.u32 %v1231, 4294901760
    %1233 = vmatpush1.msra.mxu0 %v1232
    %1234 = vmatprep.subr.mxu0 0.0
    %1235 = vmatpush1.msra.mxu0 0.0
    %1236 = vmatprep.subr.mxu0 0.0
    %1237 = vmatpush1.msra.mxu0 0.0
    %1238 = vmatprep.subr.mxu0 0.0
    %1239 = vmatpush1.msra.mxu0 0.0
    %1240 = vmatprep.subr.mxu0 0.0
    %1241 = vmatpush1.msra.mxu0 0.0
    %1242 = vmatprep.subr.mxu0 0.0
    %1243 = vmatpush1.msra.mxu0 0.0
    %1244 = vmatprep.subr.mxu0 0.0
    %1245 = vmatpush1.msra.mxu0 0.0
    %1246 = vmatprep.subr.mxu0 0.0
    %1247 = vmatpush1.msra.mxu0 0.0
    %1248 = vmatprep.subr.mxu0 0.0
    %1249 = vmatpush1.msra.mxu0 0.0
    %1250 = vmatprep.subr.mxu0 0.0
    %1251 = vmatpush1.msra.mxu0 0.0
    %1252 = vmatprep.subr.mxu0 0.0
    %1253 = vmatpush1.msra.mxu0 0.0
    %1254 = vmatprep.subr.mxu0 0.0
    %1255 = vmatpush1.msra.mxu0 0.0
    %1256 = vmatprep.subr.mxu0 0.0
    %1257 = vmatpush1.msra.mxu0 0.0
    %1258 = vmatprep.subr.mxu0 0.0
    %1259 = vmatpush1.msra.mxu0 0.0
    %1260 = vmatprep.subr.mxu0 0.0
    %1261 = vmatpush1.msra.mxu0 0.0
    %1262 = vmatprep.subr.mxu0 0.0
    %1263 = vmatpush1.msra.mxu0 0.0
    %1264 = vmatprep.subr.mxu0 0.0
    %1265 = vmatpush1.msra.mxu0 0.0
    %1266 = vmatprep.mubr.f32.mxu0 0.0
    %v1267 = vand.u32 %v714, 4294901760
    %1268 = vmatmul.mubr.f32.gmra.mrb[0].mxu0 %v1267
    %v1269 = vpop.f32.mrb[0].mxu0
    %v1270 = vadd.f32 %v1151, %v1269
    %v1271 = vpop.f32.mrb[0].mxu0
    %1272 = vdwg.mxu0
    %1273 = vmatprep.subr.mxu0 0.0
    %v1274 = vand.u32 %v49, 4294901760
    %1275 = vmatpush1.msra.mxu0 %v1274
    %1276 = vmatprep.subr.mxu0 0.0
    %v1277 = vand.u32 %v50, 4294901760
    %1278 = vmatpush1.msra.mxu0 %v1277
    %1279 = vmatprep.subr.mxu0 0.0
    %v1280 = vand.u32 %v51, 4294901760
    %1281 = vmatpush1.msra.mxu0 %v1280
    %1282 = vmatprep.subr.mxu0 0.0
    %v1283 = vand.u32 %v52, 4294901760
    %1284 = vmatpush1.msra.mxu0 %v1283
    %1285 = vmatprep.subr.mxu0 0.0
    %v1286 = vand.u32 %v53, 4294901760
    %1287 = vmatpush1.msra.mxu0 %v1286
    %1288 = vmatprep.subr.mxu0 0.0
    %v1289 = vand.u32 %v54, 4294901760
    %1290 = vmatpush1.msra.mxu0 %v1289
    %1291 = vmatprep.subr.mxu0 0.0
    %v1292 = vand.u32 %v55, 4294901760
    %1293 = vmatpush1.msra.mxu0 %v1292
    %1294 = vmatprep.subr.mxu0 0.0
    %v1295 = vand.u32 %v56, 4294901760
    %1296 = vmatpush1.msra.mxu0 %v1295
    %1297 = vmatprep.subr.mxu0 0.0
    %v1298 = vand.u32 %v57, 4294901760
    %1299 = vmatpush1.msra.mxu0 %v1298
    %1300 = vmatprep.subr.mxu0 0.0
    %v1301 = vand.u32 %v58, 4294901760
    %1302 = vmatpush1.msra.mxu0 %v1301
    %1303 = vmatprep.subr.mxu0 0.0
    %v1304 = vand.u32 %v59, 4294901760
    %1305 = vmatpush1.msra.mxu0 %v1304
    %1306 = vmatprep.subr.mxu0 0.0
    %v1307 = vand.u32 %v60, 4294901760
    %1308 = vmatpush1.msra.mxu0 %v1307
    %1309 = vmatprep.subr.mxu0 0.0
    %v1310 = vand.u32 %v61, 4294901760
    %1311 = vmatpush1.msra.mxu0 %v1310
    %1312 = vmatprep.subr.mxu0 0.0
    %v1313 = vand.u32 %v62, 4294901760
    %1314 = vmatpush1.msra.mxu0 %v1313
    %1315 = vmatprep.subr.mxu0 0.0
    %v1316 = vand.u32 %v63, 4294901760
    %1317 = vmatpush1.msra.mxu0 %v1316
    %1318 = vmatprep.subr.mxu0 0.0
    %v1319 = vand.u32 %v64, 4294901760
    %1320 = vmatpush1.msra.mxu0 %v1319
    %1321 = vmatprep.subr.mxu0 0.0
    %1322 = vmatpush1.msra.mxu0 0.0
    %1323 = vmatprep.subr.mxu0 0.0
    %1324 = vmatpush1.msra.mxu0 0.0
    %1325 = vmatprep.subr.mxu0 0.0
    %1326 = vmatpush1.msra.mxu0 0.0
    %1327 = vmatprep.subr.mxu0 0.0
    %1328 = vmatpush1.msra.mxu0 0.0
    %1329 = vmatprep.subr.mxu0 0.0
    %1330 = vmatpush1.msra.mxu0 0.0
    %1331 = vmatprep.subr.mxu0 0.0
    %1332 = vmatpush1.msra.mxu0 0.0
    %1333 = vmatprep.subr.mxu0 0.0
    %1334 = vmatpush1.msra.mxu0 0.0
    %1335 = vmatprep.subr.mxu0 0.0
    %1336 = vmatpush1.msra.mxu0 0.0
    %1337 = vmatprep.subr.mxu0 0.0
    %1338 = vmatpush1.msra.mxu0 0.0
    %1339 = vmatprep.subr.mxu0 0.0
    %1340 = vmatpush1.msra.mxu0 0.0
    %1341 = vmatprep.subr.mxu0 0.0
    %1342 = vmatpush1.msra.mxu0 0.0
    %1343 = vmatprep.subr.mxu0 0.0
    %1344 = vmatpush1.msra.mxu0 0.0
    %1345 = vmatprep.subr.mxu0 0.0
    %1346 = vmatpush1.msra.mxu0 0.0
    %1347 = vmatprep.subr.mxu0 0.0
    %1348 = vmatpush1.msra.mxu0 0.0
    %1349 = vmatprep.subr.mxu0 0.0
    %1350 = vmatpush1.msra.mxu0 0.0
    %1351 = vmatprep.subr.mxu0 0.0
    %1352 = vmatpush1.msra.mxu0 0.0
    %1353 = vmatprep.mubr.f32.mxu0 0.0
    %v1354 = vand.u32 %v714, 4294901760
    %1355 = vmatmul.mubr.f32.gmra.mrb[0].mxu0 %v1354
    %v1356 = vpop.f32.mrb[0].mxu0
    %v1357 = vadd.f32 %v1270, %v1356
    %v1358 = vpop.f32.mrb[0].mxu0
    %1359 = vdwg.mxu0
    %v1360 = vrot.slane %v1357, 4
    %v1361 = vadd.f32 %v1357, %v1360
    %v1362 = vrot.slane %v1361, 2
    %v1363 = vadd.f32 %v1361, %v1362
    %v1364 = vrot.slane %v1363, 1
    %v1365 = vadd.f32 %v1363, %v1364
    %v1366 = vmul.f32 %v1357, %v1357
    %v1367 = vrot.slane %v1366, 4
    %v1368 = vadd.f32 %v1366, %v1367
    %v1369 = vrot.slane %v1368, 2
    %v1370 = vadd.f32 %v1368, %v1369
    %v1371 = vrot.slane %v1370, 1
    %v1372 = vadd.f32 %v1370, %v1371
    %v1373 = vmul.f32 %v1365, 0.125
    %v1374 = vmul.f32 %v1372, 0.125
    %v1375 = vmul.f32 %v1373, %v1373
    %v1376 = vsub.f32 %v1374, %v1375
    %v1377 = vmax.f32 %v1376, 0.0
    %v1378 = vsub.f32 %v1357, %v1373
    %v1379 = vadd.f32 %v1377, 1e-05
    %v1380 = vrsqrt.pop %v1379
    %v1381 = vmul.f32 %v1378, %v1380
    %v1382 = vlaneseq
    %v1383 = vshrl.u32 %v1382, 7
    %v1384 = vsub.s32 0, %v1383
    %v1385 = vrot.slane %v67, %v1384
    %v1386 = vmul.f32 %v1381, %v1385
    %v1387 = vlaneseq
    %v1388 = vshrl.u32 %v1387, 7
    %v1389 = vsub.s32 0, %v1388
    %v1390 = vrot.slane %v68, %v1389
    %v1391 = vadd.f32 %v1386, %v1390
    %v1392 = vld [vmem:[%s3] sm:$0xff]
    %v1393 = vmul.f32 %v1392, 0.05
    %v1394 = vadd.f32 %v1391, %v1393
    %s1395 = scalar_lea.vmem [#allocation2], 256
    %v1396 = vld [vmem:[%s1395] sm:$0xff]
    %v1397 = vld [vmem:[%s1395 + $0x8] sm:$0xff]
    %v1398 = vld [vmem:[%s1395 + $0x10] sm:$0xff]
    %v1399 = vld [vmem:[%s1395 + $0x18] sm:$0xff]
    %v1400 = vld [vmem:[%s1395 + $0x20] sm:$0xff]
    %v1401 = vld [vmem:[%s1395 + $0x28] sm:$0xff]
    %v1402 = vld [vmem:[%s1395 + $0x30] sm:$0xff]
    %v1403 = vld [vmem:[%s1395 + $0x38] sm:$0xff]
    %v1404 = vld [vmem:[%s1395 + $0x40] sm:$0xff]
    %v1405 = vld [vmem:[%s1395 + $0x48] sm:$0xff]
    %v1406 = vld [vmem:[%s1395 + $0x50] sm:$0xff]
    %v1407 = vld [vmem:[%s1395 + $0x58] sm:$0xff]
    %v1408 = vld [vmem:[%s1395 + $0x60] sm:$0xff]
    %v1409 = vld [vmem:[%s1395 + $0x68] sm:$0xff]
    %v1410 = vld [vmem:[%s1395 + $0x70] sm:$0xff]
    %v1411 = vld [vmem:[%s1395 + $0x78] sm:$0xff]
    %s1412 = scalar_lea.vmem [#allocation2], 384
    %v1413 = vld [vmem:[%s1412] sm:$0xff]
    %v1414 = vld [vmem:[%s1412 + $0x8] sm:$0xff]
    %v1415 = vld [vmem:[%s1412 + $0x10] sm:$0xff]
    %v1416 = vld [vmem:[%s1412 + $0x18] sm:$0xff]
    %v1417 = vld [vmem:[%s1412 + $0x20] sm:$0xff]
    %v1418 = vld [vmem:[%s1412 + $0x28] sm:$0xff]
    %v1419 = vld [vmem:[%s1412 + $0x30] sm:$0xff]
    %v1420 = vld [vmem:[%s1412 + $0x38] sm:$0xff]
    %v1421 = vld [vmem:[%s1412 + $0x40] sm:$0xff]
    %v1422 = vld [vmem:[%s1412 + $0x48] sm:$0xff]
    %v1423 = vld [vmem:[%s1412 + $0x50] sm:$0xff]
    %v1424 = vld [vmem:[%s1412 + $0x58] sm:$0xff]
    %v1425 = vld [vmem:[%s1412 + $0x60] sm:$0xff]
    %v1426 = vld [vmem:[%s1412 + $0x68] sm:$0xff]
    %v1427 = vld [vmem:[%s1412 + $0x70] sm:$0xff]
    %v1428 = vld [vmem:[%s1412 + $0x78] sm:$0xff]
    %v1429 = vld [vmem:[%s2 + $0x4] sm:$0x1]
    %v1430 = vld [vmem:[%s2 + $0x5] sm:$0x1]
    %v1431 = vld [vmem:[%s2 + $0x6] sm:$0x1]
    %v1432 = vld [vmem:[%s2 + $0x7] sm:$0x1]
    %v1433 = vlaneseq
    %v1434 = vshrl.u32 %v1433, 7
    %v1435 = vsub.s32 0, %v1434
    %v1436 = vrot.slane %v1429, %v1435
    %1437 = vmatprep.subr.mxu0 0.0
    %v1438 = vand.u32 %v1396, 4294901760
    %1439 = vmatpush1.msra.mxu0 %v1438
    %1440 = vmatprep.subr.mxu0 0.0
    %v1441 = vand.u32 %v1397, 4294901760
    %1442 = vmatpush1.msra.mxu0 %v1441
    %1443 = vmatprep.subr.mxu0 0.0
    %v1444 = vand.u32 %v1398, 4294901760
    %1445 = vmatpush1.msra.mxu0 %v1444
    %1446 = vmatprep.subr.mxu0 0.0
    %v1447 = vand.u32 %v1399, 4294901760
    %1448 = vmatpush1.msra.mxu0 %v1447
    %1449 = vmatprep.subr.mxu0 0.0
    %v1450 = vand.u32 %v1400, 4294901760
    %1451 = vmatpush1.msra.mxu0 %v1450
    %1452 = vmatprep.subr.mxu0 0.0
    %v1453 = vand.u32 %v1401, 4294901760
    %1454 = vmatpush1.msra.mxu0 %v1453
    %1455 = vmatprep.subr.mxu0 0.0
    %v1456 = vand.u32 %v1402, 4294901760
    %1457 = vmatpush1.msra.mxu0 %v1456
    %1458 = vmatprep.subr.mxu0 0.0
    %v1459 = vand.u32 %v1403, 4294901760
    %1460 = vmatpush1.msra.mxu0 %v1459
    %1461 = vmatprep.subr.mxu0 0.0
    %v1462 = vand.u32 %v1404, 4294901760
    %1463 = vmatpush1.msra.mxu0 %v1462
    %1464 = vmatprep.subr.mxu0 0.0
    %v1465 = vand.u32 %v1405, 4294901760
    %1466 = vmatpush1.msra.mxu0 %v1465
    %1467 = vmatprep.subr.mxu0 0.0
    %v1468 = vand.u32 %v1406, 4294901760
    %1469 = vmatpush1.msra.mxu0 %v1468
    %1470 = vmatprep.subr.mxu0 0.0
    %v1471 = vand.u32 %v1407, 4294901760
    %1472 = vmatpush1.msra.mxu0 %v1471
    %1473 = vmatprep.subr.mxu0 0.0
    %v1474 = vand.u32 %v1408, 4294901760
    %1475 = vmatpush1.msra.mxu0 %v1474
    %1476 = vmatprep.subr.mxu0 0.0
    %v1477 = vand.u32 %v1409, 4294901760
    %1478 = vmatpush1.msra.mxu0 %v1477
    %1479 = vmatprep.subr.mxu0 0.0
    %v1480 = vand.u32 %v1410, 4294901760
    %1481 = vmatpush1.msra.mxu0 %v1480
    %1482 = vmatprep.subr.mxu0 0.0
    %v1483 = vand.u32 %v1411, 4294901760
    %1484 = vmatpush1.msra.mxu0 %v1483
    %1485 = vmatprep.subr.mxu0 0.0
    %1486 = vmatpush1.msra.mxu0 0.0
    %1487 = vmatprep.subr.mxu0 0.0
    %1488 = vmatpush1.msra.mxu0 0.0
    %1489 = vmatprep.subr.mxu0 0.0
    %1490 = vmatpush1.msra.mxu0 0.0
    %1491 = vmatprep.subr.mxu0 0.0
    %1492 = vmatpush1.msra.mxu0 0.0
    %1493 = vmatprep.subr.mxu0 0.0
    %1494 = vmatpush1.msra.mxu0 0.0
    %1495 = vmatprep.subr.mxu0 0.0
    %1496 = vmatpush1.msra.mxu0 0.0
    %1497 = vmatprep.subr.mxu0 0.0
    %1498 = vmatpush1.msra.mxu0 0.0
    %1499 = vmatprep.subr.mxu0 0.0
    %1500 = vmatpush1.msra.mxu0 0.0
    %1501 = vmatprep.subr.mxu0 0.0
    %1502 = vmatpush1.msra.mxu0 0.0
    %1503 = vmatprep.subr.mxu0 0.0
    %1504 = vmatpush1.msra.mxu0 0.0
    %1505 = vmatprep.subr.mxu0 0.0
    %1506 = vmatpush1.msra.mxu0 0.0
    %1507 = vmatprep.subr.mxu0 0.0
    %1508 = vmatpush1.msra.mxu0 0.0
    %1509 = vmatprep.subr.mxu0 0.0
    %1510 = vmatpush1.msra.mxu0 0.0
    %1511 = vmatprep.subr.mxu0 0.0
    %1512 = vmatpush1.msra.mxu0 0.0
    %1513 = vmatprep.subr.mxu0 0.0
    %1514 = vmatpush1.msra.mxu0 0.0
    %1515 = vmatprep.subr.mxu0 0.0
    %1516 = vmatpush1.msra.mxu0 0.0
    %1517 = vmatprep.mubr.f32.mxu0 0.0
    %v1518 = vand.u32 %v1394, 4294901760
    %v1519 = vsub.f32 %v1394, %v1518
    %v1520 = vand.u32 %v1519, 4294901760
    %v1521 = vsub.f32 %v1519, %v1520
    %v1522 = vand.u32 %v1521, 4294901760
    %1523 = vmatmul.mubr.f32.gmra.mrb[0].mxu0 %v1522
    %v1524 = vpop.f32.mrb[0].mxu0
    %v1525 = vadd.f32 %v1436, %v1524
    %v1526 = vpop.f32.mrb[0].mxu0
    %1527 = vdwg.mxu0
    %1528 = vmatprep.subr.mxu0 0.0
    %v1529 = vand.u32 %v1396, 4294901760
    %v1530 = vsub.f32 %v1396, %v1529
    %v1531 = vand.u32 %v1530, 4294901760
    %v1532 = vsub.f32 %v1530, %v1531
    %v1533 = vand.u32 %v1532, 4294901760
    %1534 = vmatpush1.msra.mxu0 %v1533
    %1535 = vmatprep.subr.mxu0 0.0
    %v1536 = vand.u32 %v1397, 4294901760
    %v1537 = vsub.f32 %v1397, %v1536
    %v1538 = vand.u32 %v1537, 4294901760
    %v1539 = vsub.f32 %v1537, %v1538
    %v1540 = vand.u32 %v1539, 4294901760
    %1541 = vmatpush1.msra.mxu0 %v1540
    %1542 = vmatprep.subr.mxu0 0.0
    %v1543 = vand.u32 %v1398, 4294901760
    %v1544 = vsub.f32 %v1398, %v1543
    %v1545 = vand.u32 %v1544, 4294901760
    %v1546 = vsub.f32 %v1544, %v1545
    %v1547 = vand.u32 %v1546, 4294901760
    %1548 = vmatpush1.msra.mxu0 %v1547
    %1549 = vmatprep.subr.mxu0 0.0
    %v1550 = vand.u32 %v1399, 4294901760
    %v1551 = vsub.f32 %v1399, %v1550
    %v1552 = vand.u32 %v1551, 4294901760
    %v1553 = vsub.f32 %v1551, %v1552
    %v1554 = vand.u32 %v1553, 4294901760
    %1555 = vmatpush1.msra.mxu0 %v1554
    %1556 = vmatprep.subr.mxu0 0.0
    %v1557 = vand.u32 %v1400, 4294901760
    %v1558 = vsub.f32 %v1400, %v1557
    %v1559 = vand.u32 %v1558, 4294901760
    %v1560 = vsub.f32 %v1558, %v1559
    %v1561 = vand.u32 %v1560, 4294901760
    %1562 = vmatpush1.msra.mxu0 %v1561
    %1563 = vmatprep.subr.mxu0 0.0
    %v1564 = vand.u32 %v1401, 4294901760
    %v1565 = vsub.f32 %v1401, %v1564
    %v1566 = vand.u32 %v1565, 4294901760
    %v1567 = vsub.f32 %v1565, %v1566
    %v1568 = vand.u32 %v1567, 4294901760
    %1569 = vmatpush1.msra.mxu0 %v1568
    %1570 = vmatprep.subr.mxu0 0.0
    %v1571 = vand.u32 %v1402, 4294901760
    %v1572 = vsub.f32 %v1402, %v1571
    %v1573 = vand.u32 %v1572, 4294901760
    %v1574 = vsub.f32 %v1572, %v1573
    %v1575 = vand.u32 %v1574, 4294901760
    %1576 = vmatpush1.msra.mxu0 %v1575
    %1577 = vmatprep.subr.mxu0 0.0
    %v1578 = vand.u32 %v1403, 4294901760
    %v1579 = vsub.f32 %v1403, %v1578
    %v1580 = vand.u32 %v1579, 4294901760
    %v1581 = vsub.f32 %v1579, %v1580
    %v1582 = vand.u32 %v1581, 4294901760
    %1583 = vmatpush1.msra.mxu0 %v1582
    %1584 = vmatprep.subr.mxu0 0.0
    %v1585 = vand.u32 %v1404, 4294901760
    %v1586 = vsub.f32 %v1404, %v1585
    %v1587 = vand.u32 %v1586, 4294901760
    %v1588 = vsub.f32 %v1586, %v1587
    %v1589 = vand.u32 %v1588, 4294901760
    %1590 = vmatpush1.msra.mxu0 %v1589
    %1591 = vmatprep.subr.mxu0 0.0
    %v1592 = vand.u32 %v1405, 4294901760
    %v1593 = vsub.f32 %v1405, %v1592
    %v1594 = vand.u32 %v1593, 4294901760
    %v1595 = vsub.f32 %v1593, %v1594
    %v1596 = vand.u32 %v1595, 4294901760
    %1597 = vmatpush1.msra.mxu0 %v1596
    %1598 = vmatprep.subr.mxu0 0.0
    %v1599 = vand.u32 %v1406, 4294901760
    %v1600 = vsub.f32 %v1406, %v1599
    %v1601 = vand.u32 %v1600, 4294901760
    %v1602 = vsub.f32 %v1600, %v1601
    %v1603 = vand.u32 %v1602, 4294901760
    %1604 = vmatpush1.msra.mxu0 %v1603
    %1605 = vmatprep.subr.mxu0 0.0
    %v1606 = vand.u32 %v1407, 4294901760
    %v1607 = vsub.f32 %v1407, %v1606
    %v1608 = vand.u32 %v1607, 4294901760
    %v1609 = vsub.f32 %v1607, %v1608
    %v1610 = vand.u32 %v1609, 4294901760
    %1611 = vmatpush1.msra.mxu0 %v1610
    %1612 = vmatprep.subr.mxu0 0.0
    %v1613 = vand.u32 %v1408, 4294901760
    %v1614 = vsub.f32 %v1408, %v1613
    %v1615 = vand.u32 %v1614, 4294901760
    %v1616 = vsub.f32 %v1614, %v1615
    %v1617 = vand.u32 %v1616, 4294901760
    %1618 = vmatpush1.msra.mxu0 %v1617
    %1619 = vmatprep.subr.mxu0 0.0
    %v1620 = vand.u32 %v1409, 4294901760
    %v1621 = vsub.f32 %v1409, %v1620
    %v1622 = vand.u32 %v1621, 4294901760
    %v1623 = vsub.f32 %v1621, %v1622
    %v1624 = vand.u32 %v1623, 4294901760
    %1625 = vmatpush1.msra.mxu0 %v1624
    %1626 = vmatprep.subr.mxu0 0.0
    %v1627 = vand.u32 %v1410, 4294901760
    %v1628 = vsub.f32 %v1410, %v1627
    %v1629 = vand.u32 %v1628, 4294901760
    %v1630 = vsub.f32 %v1628, %v1629
    %v1631 = vand.u32 %v1630, 4294901760
    %1632 = vmatpush1.msra.mxu0 %v1631
    %1633 = vmatprep.subr.mxu0 0.0
    %v1634 = vand.u32 %v1411, 4294901760
    %v1635 = vsub.f32 %v1411, %v1634
    %v1636 = vand.u32 %v1635, 4294901760
    %v1637 = vsub.f32 %v1635, %v1636
    %v1638 = vand.u32 %v1637, 4294901760
    %1639 = vmatpush1.msra.mxu0 %v1638
    %1640 = vmatprep.subr.mxu0 0.0
    %1641 = vmatpush1.msra.mxu0 0.0
    %1642 = vmatprep.subr.mxu0 0.0
    %1643 = vmatpush1.msra.mxu0 0.0
    %1644 = vmatprep.subr.mxu0 0.0
    %1645 = vmatpush1.msra.mxu0 0.0
    %1646 = vmatprep.subr.mxu0 0.0
    %1647 = vmatpush1.msra.mxu0 0.0
    %1648 = vmatprep.subr.mxu0 0.0
    %1649 = vmatpush1.msra.mxu0 0.0
    %1650 = vmatprep.subr.mxu0 0.0
    %1651 = vmatpush1.msra.mxu0 0.0
    %1652 = vmatprep.subr.mxu0 0.0
    %1653 = vmatpush1.msra.mxu0 0.0
    %1654 = vmatprep.subr.mxu0 0.0
    %1655 = vmatpush1.msra.mxu0 0.0
    %1656 = vmatprep.subr.mxu0 0.0
    %1657 = vmatpush1.msra.mxu0 0.0
    %1658 = vmatprep.subr.mxu0 0.0
    %1659 = vmatpush1.msra.mxu0 0.0
    %1660 = vmatprep.subr.mxu0 0.0
    %1661 = vmatpush1.msra.mxu0 0.0
    %1662 = vmatprep.subr.mxu0 0.0
    %1663 = vmatpush1.msra.mxu0 0.0
    %1664 = vmatprep.subr.mxu0 0.0
    %1665 = vmatpush1.msra.mxu0 0.0
    %1666 = vmatprep.subr.mxu0 0.0
    %1667 = vmatpush1.msra.mxu0 0.0
    %1668 = vmatprep.subr.mxu0 0.0
    %1669 = vmatpush1.msra.mxu0 0.0
    %1670 = vmatprep.subr.mxu0 0.0
    %1671 = vmatpush1.msra.mxu0 0.0
    %1672 = vmatprep.mubr.f32.mxu0 0.0
    %v1673 = vand.u32 %v1394, 4294901760
    %1674 = vmatmul.mubr.f32.gmra.mrb[0].mxu0 %v1673
    %v1675 = vpop.f32.mrb[0].mxu0
    %v1676 = vadd.f32 %v1525, %v1675
    %v1677 = vpop.f32.mrb[0].mxu0
    %1678 = vdwg.mxu0
    %1679 = vmatprep.subr.mxu0 0.0
    %v1680 = vand.u32 %v1396, 4294901760
    %v1681 = vsub.f32 %v1396, %v1680
    %1682 = vmatpush1.msra.mxu0 %v1681
    %1683 = vmatprep.subr.mxu0 0.0
    %v1684 = vand.u32 %v1397, 4294901760
    %v1685 = vsub.f32 %v1397, %v1684
    %1686 = vmatpush1.msra.mxu0 %v1685
    %1687 = vmatprep.subr.mxu0 0.0
    %v1688 = vand.u32 %v1398, 4294901760
    %v1689 = vsub.f32 %v1398, %v1688
    %1690 = vmatpush1.msra.mxu0 %v1689
    %1691 = vmatprep.subr.mxu0 0.0
    %v1692 = vand.u32 %v1399, 4294901760
    %v1693 = vsub.f32 %v1399, %v1692
    %1694 = vmatpush1.msra.mxu0 %v1693
    %1695 = vmatprep.subr.mxu0 0.0
    %v1696 = vand.u32 %v1400, 4294901760
    %v1697 = vsub.f32 %v1400, %v1696
    %1698 = vmatpush1.msra.mxu0 %v1697
    %1699 = vmatprep.subr.mxu0 0.0
    %v1700 = vand.u32 %v1401, 4294901760
    %v1701 = vsub.f32 %v1401, %v1700
    %1702 = vmatpush1.msra.mxu0 %v1701
    %1703 = vmatprep.subr.mxu0 0.0
    %v1704 = vand.u32 %v1402, 4294901760
    %v1705 = vsub.f32 %v1402, %v1704
    %1706 = vmatpush1.msra.mxu0 %v1705
    %1707 = vmatprep.subr.mxu0 0.0
    %v1708 = vand.u32 %v1403, 4294901760
    %v1709 = vsub.f32 %v1403, %v1708
    %1710 = vmatpush1.msra.mxu0 %v1709
    %1711 = vmatprep.subr.mxu0 0.0
    %v1712 = vand.u32 %v1404, 4294901760
    %v1713 = vsub.f32 %v1404, %v1712
    %1714 = vmatpush1.msra.mxu0 %v1713
    %1715 = vmatprep.subr.mxu0 0.0
    %v1716 = vand.u32 %v1405, 4294901760
    %v1717 = vsub.f32 %v1405, %v1716
    %1718 = vmatpush1.msra.mxu0 %v1717
    %1719 = vmatprep.subr.mxu0 0.0
    %v1720 = vand.u32 %v1406, 4294901760
    %v1721 = vsub.f32 %v1406, %v1720
    %1722 = vmatpush1.msra.mxu0 %v1721
    %1723 = vmatprep.subr.mxu0 0.0
    %v1724 = vand.u32 %v1407, 4294901760
    %v1725 = vsub.f32 %v1407, %v1724
    %1726 = vmatpush1.msra.mxu0 %v1725
    %1727 = vmatprep.subr.mxu0 0.0
    %v1728 = vand.u32 %v1408, 4294901760
    %v1729 = vsub.f32 %v1408, %v1728
    %1730 = vmatpush1.msra.mxu0 %v1729
    %1731 = vmatprep.subr.mxu0 0.0
    %v1732 = vand.u32 %v1409, 4294901760
    %v1733 = vsub.f32 %v1409, %v1732
    %1734 = vmatpush1.msra.mxu0 %v1733
    %1735 = vmatprep.subr.mxu0 0.0
    %v1736 = vand.u32 %v1410, 4294901760
    %v1737 = vsub.f32 %v1410, %v1736
    %1738 = vmatpush1.msra.mxu0 %v1737
    %1739 = vmatprep.subr.mxu0 0.0
    %v1740 = vand.u32 %v1411, 4294901760
    %v1741 = vsub.f32 %v1411, %v1740
    %1742 = vmatpush1.msra.mxu0 %v1741
    %1743 = vmatprep.subr.mxu0 0.0
    %1744 = vmatpush1.msra.mxu0 0.0
    %1745 = vmatprep.subr.mxu0 0.0
    %1746 = vmatpush1.msra.mxu0 0.0
    %1747 = vmatprep.subr.mxu0 0.0
    %1748 = vmatpush1.msra.mxu0 0.0
    %1749 = vmatprep.subr.mxu0 0.0
    %1750 = vmatpush1.msra.mxu0 0.0
    %1751 = vmatprep.subr.mxu0 0.0
    %1752 = vmatpush1.msra.mxu0 0.0
    %1753 = vmatprep.subr.mxu0 0.0
    %1754 = vmatpush1.msra.mxu0 0.0
    %1755 = vmatprep.subr.mxu0 0.0
    %1756 = vmatpush1.msra.mxu0 0.0
    %1757 = vmatprep.subr.mxu0 0.0
    %1758 = vmatpush1.msra.mxu0 0.0
    %1759 = vmatprep.subr.mxu0 0.0
    %1760 = vmatpush1.msra.mxu0 0.0
    %1761 = vmatprep.subr.mxu0 0.0
    %1762 = vmatpush1.msra.mxu0 0.0
    %1763 = vmatprep.subr.mxu0 0.0
    %1764 = vmatpush1.msra.mxu0 0.0
    %1765 = vmatprep.subr.mxu0 0.0
    %1766 = vmatpush1.msra.mxu0 0.0
    %1767 = vmatprep.subr.mxu0 0.0
    %1768 = vmatpush1.msra.mxu0 0.0
    %1769 = vmatprep.subr.mxu0 0.0
    %1770 = vmatpush1.msra.mxu0 0.0
    %1771 = vmatprep.subr.mxu0 0.0
    %1772 = vmatpush1.msra.mxu0 0.0
    %1773 = vmatprep.subr.mxu0 0.0
    %1774 = vmatpush1.msra.mxu0 0.0
    %1775 = vmatprep.mubr.f32.mxu0 0.0
    %v1776 = vand.u32 %v1394, 4294901760
    %v1777 = vsub.f32 %v1394, %v1776
    %1778 = vmatmul.mubr.f32.gmra.mrb[0].mxu0 %v1777
    %v1779 = vpop.f32.mrb[0].mxu0
    %v1780 = vadd.f32 %v1676, %v1779
    %v1781 = vpop.f32.mrb[0].mxu0
    %1782 = vdwg.mxu0
    %1783 = vmatprep.subr.mxu0 0.0
    %v1784 = vand.u32 %v1396, 4294901760
    %1785 = vmatpush1.msra.mxu0 %v1784
    %1786 = vmatprep.subr.mxu0 0.0
    %v1787 = vand.u32 %v1397, 4294901760
    %1788 = vmatpush1.msra.mxu0 %v1787
    %1789 = vmatprep.subr.mxu0 0.0
    %v1790 = vand.u32 %v1398, 4294901760
    %1791 = vmatpush1.msra.mxu0 %v1790
    %1792 = vmatprep.subr.mxu0 0.0
    %v1793 = vand.u32 %v1399, 4294901760
    %1794 = vmatpush1.msra.mxu0 %v1793
    %1795 = vmatprep.subr.mxu0 0.0
    %v1796 = vand.u32 %v1400, 4294901760
    %1797 = vmatpush1.msra.mxu0 %v1796
    %1798 = vmatprep.subr.mxu0 0.0
    %v1799 = vand.u32 %v1401, 4294901760
    %1800 = vmatpush1.msra.mxu0 %v1799
    %1801 = vmatprep.subr.mxu0 0.0
    %v1802 = vand.u32 %v1402, 4294901760
    %1803 = vmatpush1.msra.mxu0 %v1802
    %1804 = vmatprep.subr.mxu0 0.0
    %v1805 = vand.u32 %v1403, 4294901760
    %1806 = vmatpush1.msra.mxu0 %v1805
    %1807 = vmatprep.subr.mxu0 0.0
    %v1808 = vand.u32 %v1404, 4294901760
    %1809 = vmatpush1.msra.mxu0 %v1808
    %1810 = vmatprep.subr.mxu0 0.0
    %v1811 = vand.u32 %v1405, 4294901760
    %1812 = vmatpush1.msra.mxu0 %v1811
    %1813 = vmatprep.subr.mxu0 0.0
    %v1814 = vand.u32 %v1406, 4294901760
    %1815 = vmatpush1.msra.mxu0 %v1814
    %1816 = vmatprep.subr.mxu0 0.0
    %v1817 = vand.u32 %v1407, 4294901760
    %1818 = vmatpush1.msra.mxu0 %v1817
    %1819 = vmatprep.subr.mxu0 0.0
    %v1820 = vand.u32 %v1408, 4294901760
    %1821 = vmatpush1.msra.mxu0 %v1820
    %1822 = vmatprep.subr.mxu0 0.0
    %v1823 = vand.u32 %v1409, 4294901760
    %1824 = vmatpush1.msra.mxu0 %v1823
    %1825 = vmatprep.subr.mxu0 0.0
    %v1826 = vand.u32 %v1410, 4294901760
    %1827 = vmatpush1.msra.mxu0 %v1826
    %1828 = vmatprep.subr.mxu0 0.0
    %v1829 = vand.u32 %v1411, 4294901760
    %1830 = vmatpush1.msra.mxu0 %v1829
    %1831 = vmatprep.subr.mxu0 0.0
    %1832 = vmatpush1.msra.mxu0 0.0
    %1833 = vmatprep.subr.mxu0 0.0
    %1834 = vmatpush1.msra.mxu0 0.0
    %1835 = vmatprep.subr.mxu0 0.0
    %1836 = vmatpush1.msra.mxu0 0.0
    %1837 = vmatprep.subr.mxu0 0.0
    %1838 = vmatpush1.msra.mxu0 0.0
    %1839 = vmatprep.subr.mxu0 0.0
    %1840 = vmatpush1.msra.mxu0 0.0
    %1841 = vmatprep.subr.mxu0 0.0
    %1842 = vmatpush1.msra.mxu0 0.0
    %1843 = vmatprep.subr.mxu0 0.0
    %1844 = vmatpush1.msra.mxu0 0.0
    %1845 = vmatprep.subr.mxu0 0.0
    %1846 = vmatpush1.msra.mxu0 0.0
    %1847 = vmatprep.subr.mxu0 0.0
    %1848 = vmatpush1.msra.mxu0 0.0
    %1849 = vmatprep.subr.mxu0 0.0
    %1850 = vmatpush1.msra.mxu0 0.0
    %1851 = vmatprep.subr.mxu0 0.0
    %1852 = vmatpush1.msra.mxu0 0.0
    %1853 = vmatprep.subr.mxu0 0.0
    %1854 = vmatpush1.msra.mxu0 0.0
    %1855 = vmatprep.subr.mxu0 0.0
    %1856 = vmatpush1.msra.mxu0 0.0
    %1857 = vmatprep.subr.mxu0 0.0
    %1858 = vmatpush1.msra.mxu0 0.0
    %1859 = vmatprep.subr.mxu0 0.0
    %1860 = vmatpush1.msra.mxu0 0.0
    %1861 = vmatprep.subr.mxu0 0.0
    %1862 = vmatpush1.msra.mxu0 0.0
    %1863 = vmatprep.mubr.f32.mxu0 0.0
    %v1864 = vand.u32 %v1394, 4294901760
    %v1865 = vsub.f32 %v1394, %v1864
    %v1866 = vand.u32 %v1865, 4294901760
    %1867 = vmatmul.mubr.f32.gmra.mrb[0].mxu0 %v1866
    %v1868 = vpop.f32.mrb[0].mxu0
    %v1869 = vadd.f32 %v1780, %v1868
    %v1870 = vpop.f32.mrb[0].mxu0
    %1871 = vdwg.mxu0
    %1872 = vmatprep.subr.mxu0 0.0
    %v1873 = vand.u32 %v1396, 4294901760
    %v1874 = vsub.f32 %v1396, %v1873
    %v1875 = vand.u32 %v1874, 4294901760
    %1876 = vmatpush1.msra.mxu0 %v1875
    %1877 = vmatprep.subr.mxu0 0.0
    %v1878 = vand.u32 %v1397, 4294901760
    %v1879 = vsub.f32 %v1397, %v1878
    %v1880 = vand.u32 %v1879, 4294901760
    %1881 = vmatpush1.msra.mxu0 %v1880
    %1882 = vmatprep.subr.mxu0 0.0
    %v1883 = vand.u32 %v1398, 4294901760
    %v1884 = vsub.f32 %v1398, %v1883
    %v1885 = vand.u32 %v1884, 4294901760
    %1886 = vmatpush1.msra.mxu0 %v1885
    %1887 = vmatprep.subr.mxu0 0.0
    %v1888 = vand.u32 %v1399, 4294901760
    %v1889 = vsub.f32 %v1399, %v1888
    %v1890 = vand.u32 %v1889, 4294901760
    %1891 = vmatpush1.msra.mxu0 %v1890
    %1892 = vmatprep.subr.mxu0 0.0
    %v1893 = vand.u32 %v1400, 4294901760
    %v1894 = vsub.f32 %v1400, %v1893
    %v1895 = vand.u32 %v1894, 4294901760
    %1896 = vmatpush1.msra.mxu0 %v1895
    %1897 = vmatprep.subr.mxu0 0.0
    %v1898 = vand.u32 %v1401, 4294901760
    %v1899 = vsub.f32 %v1401, %v1898
    %v1900 = vand.u32 %v1899, 4294901760
    %1901 = vmatpush1.msra.mxu0 %v1900
    %1902 = vmatprep.subr.mxu0 0.0
    %v1903 = vand.u32 %v1402, 4294901760
    %v1904 = vsub.f32 %v1402, %v1903
    %v1905 = vand.u32 %v1904, 4294901760
    %1906 = vmatpush1.msra.mxu0 %v1905
    %1907 = vmatprep.subr.mxu0 0.0
    %v1908 = vand.u32 %v1403, 4294901760
    %v1909 = vsub.f32 %v1403, %v1908
    %v1910 = vand.u32 %v1909, 4294901760
    %1911 = vmatpush1.msra.mxu0 %v1910
    %1912 = vmatprep.subr.mxu0 0.0
    %v1913 = vand.u32 %v1404, 4294901760
    %v1914 = vsub.f32 %v1404, %v1913
    %v1915 = vand.u32 %v1914, 4294901760
    %1916 = vmatpush1.msra.mxu0 %v1915
    %1917 = vmatprep.subr.mxu0 0.0
    %v1918 = vand.u32 %v1405, 4294901760
    %v1919 = vsub.f32 %v1405, %v1918
    %v1920 = vand.u32 %v1919, 4294901760
    %1921 = vmatpush1.msra.mxu0 %v1920
    %1922 = vmatprep.subr.mxu0 0.0
    %v1923 = vand.u32 %v1406, 4294901760
    %v1924 = vsub.f32 %v1406, %v1923
    %v1925 = vand.u32 %v1924, 4294901760
    %1926 = vmatpush1.msra.mxu0 %v1925
    %1927 = vmatprep.subr.mxu0 0.0
    %v1928 = vand.u32 %v1407, 4294901760
    %v1929 = vsub.f32 %v1407, %v1928
    %v1930 = vand.u32 %v1929, 4294901760
    %1931 = vmatpush1.msra.mxu0 %v1930
    %1932 = vmatprep.subr.mxu0 0.0
    %v1933 = vand.u32 %v1408, 4294901760
    %v1934 = vsub.f32 %v1408, %v1933
    %v1935 = vand.u32 %v1934, 4294901760
    %1936 = vmatpush1.msra.mxu0 %v1935
    %1937 = vmatprep.subr.mxu0 0.0
    %v1938 = vand.u32 %v1409, 4294901760
    %v1939 = vsub.f32 %v1409, %v1938
    %v1940 = vand.u32 %v1939, 4294901760
    %1941 = vmatpush1.msra.mxu0 %v1940
    %1942 = vmatprep.subr.mxu0 0.0
    %v1943 = vand.u32 %v1410, 4294901760
    %v1944 = vsub.f32 %v1410, %v1943
    %v1945 = vand.u32 %v1944, 4294901760
    %1946 = vmatpush1.msra.mxu0 %v1945
    %1947 = vmatprep.subr.mxu0 0.0
    %v1948 = vand.u32 %v1411, 4294901760
    %v1949 = vsub.f32 %v1411, %v1948
    %v1950 = vand.u32 %v1949, 4294901760
    %1951 = vmatpush1.msra.mxu0 %v1950
    %1952 = vmatprep.subr.mxu0 0.0
    %1953 = vmatpush1.msra.mxu0 0.0
    %1954 = vmatprep.subr.mxu0 0.0
    %1955 = vmatpush1.msra.mxu0 0.0
    %1956 = vmatprep.subr.mxu0 0.0
    %1957 = vmatpush1.msra.mxu0 0.0
    %1958 = vmatprep.subr.mxu0 0.0
    %1959 = vmatpush1.msra.mxu0 0.0
    %1960 = vmatprep.subr.mxu0 0.0
    %1961 = vmatpush1.msra.mxu0 0.0
    %1962 = vmatprep.subr.mxu0 0.0
    %1963 = vmatpush1.msra.mxu0 0.0
    %1964 = vmatprep.subr.mxu0 0.0
    %1965 = vmatpush1.msra.mxu0 0.0
    %1966 = vmatprep.subr.mxu0 0.0
    %1967 = vmatpush1.msra.mxu0 0.0
    %1968 = vmatprep.subr.mxu0 0.0
    %1969 = vmatpush1.msra.mxu0 0.0
    %1970 = vmatprep.subr.mxu0 0.0
    %1971 = vmatpush1.msra.mxu0 0.0
    %1972 = vmatprep.subr.mxu0 0.0
    %1973 = vmatpush1.msra.mxu0 0.0
    %1974 = vmatprep.subr.mxu0 0.0
    %1975 = vmatpush1.msra.mxu0 0.0
    %1976 = vmatprep.subr.mxu0 0.0
    %1977 = vmatpush1.msra.mxu0 0.0
    %1978 = vmatprep.subr.mxu0 0.0
    %1979 = vmatpush1.msra.mxu0 0.0
    %1980 = vmatprep.subr.mxu0 0.0
    %1981 = vmatpush1.msra.mxu0 0.0
    %1982 = vmatprep.subr.mxu0 0.0
    %1983 = vmatpush1.msra.mxu0 0.0
    %1984 = vmatprep.mubr.f32.mxu0 0.0
    %v1985 = vand.u32 %v1394, 4294901760
    %1986 = vmatmul.mubr.f32.gmra.mrb[0].mxu0 %v1985
    %v1987 = vpop.f32.mrb[0].mxu0
    %v1988 = vadd.f32 %v1869, %v1987
    %v1989 = vpop.f32.mrb[0].mxu0
    %1990 = vdwg.mxu0
    %1991 = vmatprep.subr.mxu0 0.0
    %v1992 = vand.u32 %v1396, 4294901760
    %1993 = vmatpush1.msra.mxu0 %v1992
    %1994 = vmatprep.subr.mxu0 0.0
    %v1995 = vand.u32 %v1397, 4294901760
    %1996 = vmatpush1.msra.mxu0 %v1995
    %1997 = vmatprep.subr.mxu0 0.0
    %v1998 = vand.u32 %v1398, 4294901760
    %1999 = vmatpush1.msra.mxu0 %v1998
    %2000 = vmatprep.subr.mxu0 0.0
    %v2001 = vand.u32 %v1399, 4294901760
    %2002 = vmatpush1.msra.mxu0 %v2001
    %2003 = vmatprep.subr.mxu0 0.0
    %v2004 = vand.u32 %v1400, 4294901760
    %2005 = vmatpush1.msra.mxu0 %v2004
    %2006 = vmatprep.subr.mxu0 0.0
    %v2007 = vand.u32 %v1401, 4294901760
    %2008 = vmatpush1.msra.mxu0 %v2007
    %2009 = vmatprep.subr.mxu0 0.0
    %v2010 = vand.u32 %v1402, 4294901760
    %2011 = vmatpush1.msra.mxu0 %v2010
    %2012 = vmatprep.subr.mxu0 0.0
    %v2013 = vand.u32 %v1403, 4294901760
    %2014 = vmatpush1.msra.mxu0 %v2013
    %2015 = vmatprep.subr.mxu0 0.0
    %v2016 = vand.u32 %v1404, 4294901760
    %2017 = vmatpush1.msra.mxu0 %v2016
    %2018 = vmatprep.subr.mxu0 0.0
    %v2019 = vand.u32 %v1405, 4294901760
    %2020 = vmatpush1.msra.mxu0 %v2019
    %2021 = vmatprep.subr.mxu0 0.0
    %v2022 = vand.u32 %v1406, 4294901760
    %2023 = vmatpush1.msra.mxu0 %v2022
    %2024 = vmatprep.subr.mxu0 0.0
    %v2025 = vand.u32 %v1407, 4294901760
    %2026 = vmatpush1.msra.mxu0 %v2025
    %2027 = vmatprep.subr.mxu0 0.0
    %v2028 = vand.u32 %v1408, 4294901760
    %2029 = vmatpush1.msra.mxu0 %v2028
    %2030 = vmatprep.subr.mxu0 0.0
    %v2031 = vand.u32 %v1409, 4294901760
    %2032 = vmatpush1.msra.mxu0 %v2031
    %2033 = vmatprep.subr.mxu0 0.0
    %v2034 = vand.u32 %v1410, 4294901760
    %2035 = vmatpush1.msra.mxu0 %v2034
    %2036 = vmatprep.subr.mxu0 0.0
    %v2037 = vand.u32 %v1411, 4294901760
    %2038 = vmatpush1.msra.mxu0 %v2037
    %2039 = vmatprep.subr.mxu0 0.0
    %2040 = vmatpush1.msra.mxu0 0.0
    %2041 = vmatprep.subr.mxu0 0.0
    %2042 = vmatpush1.msra.mxu0 0.0
    %2043 = vmatprep.subr.mxu0 0.0
    %2044 = vmatpush1.msra.mxu0 0.0
    %2045 = vmatprep.subr.mxu0 0.0
    %2046 = vmatpush1.msra.mxu0 0.0
    %2047 = vmatprep.subr.mxu0 0.0
    %2048 = vmatpush1.msra.mxu0 0.0
    %2049 = vmatprep.subr.mxu0 0.0
    %2050 = vmatpush1.msra.mxu0 0.0
    %2051 = vmatprep.subr.mxu0 0.0
    %2052 = vmatpush1.msra.mxu0 0.0
    %2053 = vmatprep.subr.mxu0 0.0
    %2054 = vmatpush1.msra.mxu0 0.0
    %2055 = vmatprep.subr.mxu0 0.0
    %2056 = vmatpush1.msra.mxu0 0.0
    %2057 = vmatprep.subr.mxu0 0.0
    %2058 = vmatpush1.msra.mxu0 0.0
    %2059 = vmatprep.subr.mxu0 0.0
    %2060 = vmatpush1.msra.mxu0 0.0
    %2061 = vmatprep.subr.mxu0 0.0
    %2062 = vmatpush1.msra.mxu0 0.0
    %2063 = vmatprep.subr.mxu0 0.0
    %2064 = vmatpush1.msra.mxu0 0.0
    %2065 = vmatprep.subr.mxu0 0.0
    %2066 = vmatpush1.msra.mxu0 0.0
    %2067 = vmatprep.subr.mxu0 0.0
    %2068 = vmatpush1.msra.mxu0 0.0
    %2069 = vmatprep.subr.mxu0 0.0
    %2070 = vmatpush1.msra.mxu0 0.0
    %2071 = vmatprep.mubr.f32.mxu0 0.0
    %v2072 = vand.u32 %v1394, 4294901760
    %2073 = vmatmul.mubr.f32.gmra.mrb[0].mxu0 %v2072
    %v2074 = vpop.f32.mrb[0].mxu0
    %v2075 = vadd.f32 %v1988, %v2074
    %v2076 = vpop.f32.mrb[0].mxu0
    %2077 = vdwg.mxu0
    %v2078 = vmax.f32 %v2075, 0.0
    %v2079 = vlaneseq
    %v2080 = vshrl.u32 %v2079, 7
    %v2081 = vsub.s32 0, %v2080
    %v2082 = vrot.slane %v1430, %v2081
    %2083 = vmatprep.subr.mxu0 0.0
    %v2084 = vand.u32 %v1413, 4294901760
    %2085 = vmatpush1.msra.mxu0 %v2084
    %2086 = vmatprep.subr.mxu0 0.0
    %v2087 = vand.u32 %v1414, 4294901760
    %2088 = vmatpush1.msra.mxu0 %v2087
    %2089 = vmatprep.subr.mxu0 0.0
    %v2090 = vand.u32 %v1415, 4294901760
    %2091 = vmatpush1.msra.mxu0 %v2090
    %2092 = vmatprep.subr.mxu0 0.0
    %v2093 = vand.u32 %v1416, 4294901760
    %2094 = vmatpush1.msra.mxu0 %v2093
    %2095 = vmatprep.subr.mxu0 0.0
    %v2096 = vand.u32 %v1417, 4294901760
    %2097 = vmatpush1.msra.mxu0 %v2096
    %2098 = vmatprep.subr.mxu0 0.0
    %v2099 = vand.u32 %v1418, 4294901760
    %2100 = vmatpush1.msra.mxu0 %v2099
    %2101 = vmatprep.subr.mxu0 0.0
    %v2102 = vand.u32 %v1419, 4294901760
    %2103 = vmatpush1.msra.mxu0 %v2102
    %2104 = vmatprep.subr.mxu0 0.0
    %v2105 = vand.u32 %v1420, 4294901760
    %2106 = vmatpush1.msra.mxu0 %v2105
    %2107 = vmatprep.subr.mxu0 0.0
    %v2108 = vand.u32 %v1421, 4294901760
    %2109 = vmatpush1.msra.mxu0 %v2108
    %2110 = vmatprep.subr.mxu0 0.0
    %v2111 = vand.u32 %v1422, 4294901760
    %2112 = vmatpush1.msra.mxu0 %v2111
    %2113 = vmatprep.subr.mxu0 0.0
    %v2114 = vand.u32 %v1423, 4294901760
    %2115 = vmatpush1.msra.mxu0 %v2114
    %2116 = vmatprep.subr.mxu0 0.0
    %v2117 = vand.u32 %v1424, 4294901760
    %2118 = vmatpush1.msra.mxu0 %v2117
    %2119 = vmatprep.subr.mxu0 0.0
    %v2120 = vand.u32 %v1425, 4294901760
    %2121 = vmatpush1.msra.mxu0 %v2120
    %2122 = vmatprep.subr.mxu0 0.0
    %v2123 = vand.u32 %v1426, 4294901760
    %2124 = vmatpush1.msra.mxu0 %v2123
    %2125 = vmatprep.subr.mxu0 0.0
    %v2126 = vand.u32 %v1427, 4294901760
    %2127 = vmatpush1.msra.mxu0 %v2126
    %2128 = vmatprep.subr.mxu0 0.0
    %v2129 = vand.u32 %v1428, 4294901760
    %2130 = vmatpush1.msra.mxu0 %v2129
    %2131 = vmatprep.subr.mxu0 0.0
    %2132 = vmatpush1.msra.mxu0 0.0
    %2133 = vmatprep.subr.mxu0 0.0
    %2134 = vmatpush1.msra.mxu0 0.0
    %2135 = vmatprep.subr.mxu0 0.0
    %2136 = vmatpush1.msra.mxu0 0.0
    %2137 = vmatprep.subr.mxu0 0.0
    %2138 = vmatpush1.msra.mxu0 0.0
    %2139 = vmatprep.subr.mxu0 0.0
    %2140 = vmatpush1.msra.mxu0 0.0
    %2141 = vmatprep.subr.mxu0 0.0
    %2142 = vmatpush1.msra.mxu0 0.0
    %2143 = vmatprep.subr.mxu0 0.0
    %2144 = vmatpush1.msra.mxu0 0.0
    %2145 = vmatprep.subr.mxu0 0.0
    %2146 = vmatpush1.msra.mxu0 0.0
    %2147 = vmatprep.subr.mxu0 0.0
    %2148 = vmatpush1.msra.mxu0 0.0
    %2149 = vmatprep.subr.mxu0 0.0
    %2150 = vmatpush1.msra.mxu0 0.0
    %2151 = vmatprep.subr.mxu0 0.0
    %2152 = vmatpush1.msra.mxu0 0.0
    %2153 = vmatprep.subr.mxu0 0.0
    %2154 = vmatpush1.msra.mxu0 0.0
    %2155 = vmatprep.subr.mxu0 0.0
    %2156 = vmatpush1.msra.mxu0 0.0
    %2157 = vmatprep.subr.mxu0 0.0
    %2158 = vmatpush1.msra.mxu0 0.0
    %2159 = vmatprep.subr.mxu0 0.0
    %2160 = vmatpush1.msra.mxu0 0.0
    %2161 = vmatprep.subr.mxu0 0.0
    %2162 = vmatpush1.msra.mxu0 0.0
    %2163 = vmatprep.mubr.f32.mxu0 0.0
    %v2164 = vand.u32 %v2078, 4294901760
    %v2165 = vsub.f32 %v2078, %v2164
    %v2166 = vand.u32 %v2165, 4294901760
    %v2167 = vsub.f32 %v2165, %v2166
    %v2168 = vand.u32 %v2167, 4294901760
    %2169 = vmatmul.mubr.f32.gmra.mrb[0].mxu0 %v2168
    %v2170 = vpop.f32.mrb[0].mxu0
    %v2171 = vadd.f32 %v2082, %v2170
    %v2172 = vpop.f32.mrb[0].mxu0
    %2173 = vdwg.mxu0
    %2174 = vmatprep.subr.mxu0 0.0
    %v2175 = vand.u32 %v1413, 4294901760
    %v2176 = vsub.f32 %v1413, %v2175
    %v2177 = vand.u32 %v2176, 4294901760
    %v2178 = vsub.f32 %v2176, %v2177
    %v2179 = vand.u32 %v2178, 4294901760
    %2180 = vmatpush1.msra.mxu0 %v2179
    %2181 = vmatprep.subr.mxu0 0.0
    %v2182 = vand.u32 %v1414, 4294901760
    %v2183 = vsub.f32 %v1414, %v2182
    %v2184 = vand.u32 %v2183, 4294901760
    %v2185 = vsub.f32 %v2183, %v2184
    %v2186 = vand.u32 %v2185, 4294901760
    %2187 = vmatpush1.msra.mxu0 %v2186
    %2188 = vmatprep.subr.mxu0 0.0
    %v2189 = vand.u32 %v1415, 4294901760
    %v2190 = vsub.f32 %v1415, %v2189
    %v2191 = vand.u32 %v2190, 4294901760
    %v2192 = vsub.f32 %v2190, %v2191
    %v2193 = vand.u32 %v2192, 4294901760
    %2194 = vmatpush1.msra.mxu0 %v2193
    %2195 = vmatprep.subr.mxu0 0.0
    %v2196 = vand.u32 %v1416, 4294901760
    %v2197 = vsub.f32 %v1416, %v2196
    %v2198 = vand.u32 %v2197, 4294901760
    %v2199 = vsub.f32 %v2197, %v2198
    %v2200 = vand.u32 %v2199, 4294901760
    %2201 = vmatpush1.msra.mxu0 %v2200
    %2202 = vmatprep.subr.mxu0 0.0
    %v2203 = vand.u32 %v1417, 4294901760
    %v2204 = vsub.f32 %v1417, %v2203
    %v2205 = vand.u32 %v2204, 4294901760
    %v2206 = vsub.f32 %v2204, %v2205
    %v2207 = vand.u32 %v2206, 4294901760
    %2208 = vmatpush1.msra.mxu0 %v2207
    %2209 = vmatprep.subr.mxu0 0.0
    %v2210 = vand.u32 %v1418, 4294901760
    %v2211 = vsub.f32 %v1418, %v2210
    %v2212 = vand.u32 %v2211, 4294901760
    %v2213 = vsub.f32 %v2211, %v2212
    %v2214 = vand.u32 %v2213, 4294901760
    %2215 = vmatpush1.msra.mxu0 %v2214
    %2216 = vmatprep.subr.mxu0 0.0
    %v2217 = vand.u32 %v1419, 4294901760
    %v2218 = vsub.f32 %v1419, %v2217
    %v2219 = vand.u32 %v2218, 4294901760
    %v2220 = vsub.f32 %v2218, %v2219
    %v2221 = vand.u32 %v2220, 4294901760
    %2222 = vmatpush1.msra.mxu0 %v2221
    %2223 = vmatprep.subr.mxu0 0.0
    %v2224 = vand.u32 %v1420, 4294901760
    %v2225 = vsub.f32 %v1420, %v2224
    %v2226 = vand.u32 %v2225, 4294901760
    %v2227 = vsub.f32 %v2225, %v2226
    %v2228 = vand.u32 %v2227, 4294901760
    %2229 = vmatpush1.msra.mxu0 %v2228
    %2230 = vmatprep.subr.mxu0 0.0
    %v2231 = vand.u32 %v1421, 4294901760
    %v2232 = vsub.f32 %v1421, %v2231
    %v2233 = vand.u32 %v2232, 4294901760
    %v2234 = vsub.f32 %v2232, %v2233
    %v2235 = vand.u32 %v2234, 4294901760
    %2236 = vmatpush1.msra.mxu0 %v2235
    %2237 = vmatprep.subr.mxu0 0.0
    %v2238 = vand.u32 %v1422, 4294901760
    %v2239 = vsub.f32 %v1422, %v2238
    %v2240 = vand.u32 %v2239, 4294901760
    %v2241 = vsub.f32 %v2239, %v2240
    %v2242 = vand.u32 %v2241, 4294901760
    %2243 = vmatpush1.msra.mxu0 %v2242
    %2244 = vmatprep.subr.mxu0 0.0
    %v2245 = vand.u32 %v1423, 4294901760
    %v2246 = vsub.f32 %v1423, %v2245
    %v2247 = vand.u32 %v2246, 4294901760
    %v2248 = vsub.f32 %v2246, %v2247
    %v2249 = vand.u32 %v2248, 4294901760
    %2250 = vmatpush1.msra.mxu0 %v2249
    %2251 = vmatprep.subr.mxu0 0.0
    %v2252 = vand.u32 %v1424, 4294901760
    %v2253 = vsub.f32 %v1424, %v2252
    %v2254 = vand.u32 %v2253, 4294901760
    %v2255 = vsub.f32 %v2253, %v2254
    %v2256 = vand.u32 %v2255, 4294901760
    %2257 = vmatpush1.msra.mxu0 %v2256
    %2258 = vmatprep.subr.mxu0 0.0
    %v2259 = vand.u32 %v1425, 4294901760
    %v2260 = vsub.f32 %v1425, %v2259
    %v2261 = vand.u32 %v2260, 4294901760
    %v2262 = vsub.f32 %v2260, %v2261
    %v2263 = vand.u32 %v2262, 4294901760
    %2264 = vmatpush1.msra.mxu0 %v2263
    %2265 = vmatprep.subr.mxu0 0.0
    %v2266 = vand.u32 %v1426, 4294901760
    %v2267 = vsub.f32 %v1426, %v2266
    %v2268 = vand.u32 %v2267, 4294901760
    %v2269 = vsub.f32 %v2267, %v2268
    %v2270 = vand.u32 %v2269, 4294901760
    %2271 = vmatpush1.msra.mxu0 %v2270
    %2272 = vmatprep.subr.mxu0 0.0
    %v2273 = vand.u32 %v1427, 4294901760
    %v2274 = vsub.f32 %v1427, %v2273
    %v2275 = vand.u32 %v2274, 4294901760
    %v2276 = vsub.f32 %v2274, %v2275
    %v2277 = vand.u32 %v2276, 4294901760
    %2278 = vmatpush1.msra.mxu0 %v2277
    %2279 = vmatprep.subr.mxu0 0.0
    %v2280 = vand.u32 %v1428, 4294901760
    %v2281 = vsub.f32 %v1428, %v2280
    %v2282 = vand.u32 %v2281, 4294901760
    %v2283 = vsub.f32 %v2281, %v2282
    %v2284 = vand.u32 %v2283, 4294901760
    %2285 = vmatpush1.msra.mxu0 %v2284
    %2286 = vmatprep.subr.mxu0 0.0
    %2287 = vmatpush1.msra.mxu0 0.0
    %2288 = vmatprep.subr.mxu0 0.0
    %2289 = vmatpush1.msra.mxu0 0.0
    %2290 = vmatprep.subr.mxu0 0.0
    %2291 = vmatpush1.msra.mxu0 0.0
    %2292 = vmatprep.subr.mxu0 0.0
    %2293 = vmatpush1.msra.mxu0 0.0
    %2294 = vmatprep.subr.mxu0 0.0
    %2295 = vmatpush1.msra.mxu0 0.0
    %2296 = vmatprep.subr.mxu0 0.0
    %2297 = vmatpush1.msra.mxu0 0.0
    %2298 = vmatprep.subr.mxu0 0.0
    %2299 = vmatpush1.msra.mxu0 0.0
    %2300 = vmatprep.subr.mxu0 0.0
    %2301 = vmatpush1.msra.mxu0 0.0
    %2302 = vmatprep.subr.mxu0 0.0
    %2303 = vmatpush1.msra.mxu0 0.0
    %2304 = vmatprep.subr.mxu0 0.0
    %2305 = vmatpush1.msra.mxu0 0.0
    %2306 = vmatprep.subr.mxu0 0.0
    %2307 = vmatpush1.msra.mxu0 0.0
    %2308 = vmatprep.subr.mxu0 0.0
    %2309 = vmatpush1.msra.mxu0 0.0
    %2310 = vmatprep.subr.mxu0 0.0
    %2311 = vmatpush1.msra.mxu0 0.0
    %2312 = vmatprep.subr.mxu0 0.0
    %2313 = vmatpush1.msra.mxu0 0.0
    %2314 = vmatprep.subr.mxu0 0.0
    %2315 = vmatpush1.msra.mxu0 0.0
    %2316 = vmatprep.subr.mxu0 0.0
    %2317 = vmatpush1.msra.mxu0 0.0
    %2318 = vmatprep.mubr.f32.mxu0 0.0
    %v2319 = vand.u32 %v2078, 4294901760
    %2320 = vmatmul.mubr.f32.gmra.mrb[0].mxu0 %v2319
    %v2321 = vpop.f32.mrb[0].mxu0
    %v2322 = vadd.f32 %v2171, %v2321
    %v2323 = vpop.f32.mrb[0].mxu0
    %2324 = vdwg.mxu0
    %2325 = vmatprep.subr.mxu0 0.0
    %v2326 = vand.u32 %v1413, 4294901760
    %v2327 = vsub.f32 %v1413, %v2326
    %2328 = vmatpush1.msra.mxu0 %v2327
    %2329 = vmatprep.subr.mxu0 0.0
    %v2330 = vand.u32 %v1414, 4294901760
    %v2331 = vsub.f32 %v1414, %v2330
    %2332 = vmatpush1.msra.mxu0 %v2331
    %2333 = vmatprep.subr.mxu0 0.0
    %v2334 = vand.u32 %v1415, 4294901760
    %v2335 = vsub.f32 %v1415, %v2334
    %2336 = vmatpush1.msra.mxu0 %v2335
    %2337 = vmatprep.subr.mxu0 0.0
    %v2338 = vand.u32 %v1416, 4294901760
    %v2339 = vsub.f32 %v1416, %v2338
    %2340 = vmatpush1.msra.mxu0 %v2339
    %2341 = vmatprep.subr.mxu0 0.0
    %v2342 = vand.u32 %v1417, 4294901760
    %v2343 = vsub.f32 %v1417, %v2342
    %2344 = vmatpush1.msra.mxu0 %v2343
    %2345 = vmatprep.subr.mxu0 0.0
    %v2346 = vand.u32 %v1418, 4294901760
    %v2347 = vsub.f32 %v1418, %v2346
    %2348 = vmatpush1.msra.mxu0 %v2347
    %2349 = vmatprep.subr.mxu0 0.0
    %v2350 = vand.u32 %v1419, 4294901760
    %v2351 = vsub.f32 %v1419, %v2350
    %2352 = vmatpush1.msra.mxu0 %v2351
    %2353 = vmatprep.subr.mxu0 0.0
    %v2354 = vand.u32 %v1420, 4294901760
    %v2355 = vsub.f32 %v1420, %v2354
    %2356 = vmatpush1.msra.mxu0 %v2355
    %2357 = vmatprep.subr.mxu0 0.0
    %v2358 = vand.u32 %v1421, 4294901760
    %v2359 = vsub.f32 %v1421, %v2358
    %2360 = vmatpush1.msra.mxu0 %v2359
    %2361 = vmatprep.subr.mxu0 0.0
    %v2362 = vand.u32 %v1422, 4294901760
    %v2363 = vsub.f32 %v1422, %v2362
    %2364 = vmatpush1.msra.mxu0 %v2363
    %2365 = vmatprep.subr.mxu0 0.0
    %v2366 = vand.u32 %v1423, 4294901760
    %v2367 = vsub.f32 %v1423, %v2366
    %2368 = vmatpush1.msra.mxu0 %v2367
    %2369 = vmatprep.subr.mxu0 0.0
    %v2370 = vand.u32 %v1424, 4294901760
    %v2371 = vsub.f32 %v1424, %v2370
    %2372 = vmatpush1.msra.mxu0 %v2371
    %2373 = vmatprep.subr.mxu0 0.0
    %v2374 = vand.u32 %v1425, 4294901760
    %v2375 = vsub.f32 %v1425, %v2374
    %2376 = vmatpush1.msra.mxu0 %v2375
    %2377 = vmatprep.subr.mxu0 0.0
    %v2378 = vand.u32 %v1426, 4294901760
    %v2379 = vsub.f32 %v1426, %v2378
    %2380 = vmatpush1.msra.mxu0 %v2379
    %2381 = vmatprep.subr.mxu0 0.0
    %v2382 = vand.u32 %v1427, 4294901760
    %v2383 = vsub.f32 %v1427, %v2382
    %2384 = vmatpush1.msra.mxu0 %v2383
    %2385 = vmatprep.subr.mxu0 0.0
    %v2386 = vand.u32 %v1428, 4294901760
    %v2387 = vsub.f32 %v1428, %v2386
    %2388 = vmatpush1.msra.mxu0 %v2387
    %2389 = vmatprep.subr.mxu0 0.0
    %2390 = vmatpush1.msra.mxu0 0.0
    %2391 = vmatprep.subr.mxu0 0.0
    %2392 = vmatpush1.msra.mxu0 0.0
    %2393 = vmatprep.subr.mxu0 0.0
    %2394 = vmatpush1.msra.mxu0 0.0
    %2395 = vmatprep.subr.mxu0 0.0
    %2396 = vmatpush1.msra.mxu0 0.0
    %2397 = vmatprep.subr.mxu0 0.0
    %2398 = vmatpush1.msra.mxu0 0.0
    %2399 = vmatprep.subr.mxu0 0.0
    %2400 = vmatpush1.msra.mxu0 0.0
    %2401 = vmatprep.subr.mxu0 0.0
    %2402 = vmatpush1.msra.mxu0 0.0
    %2403 = vmatprep.subr.mxu0 0.0
    %2404 = vmatpush1.msra.mxu0 0.0
    %2405 = vmatprep.subr.mxu0 0.0
    %2406 = vmatpush1.msra.mxu0 0.0
    %2407 = vmatprep.subr.mxu0 0.0
    %2408 = vmatpush1.msra.mxu0 0.0
    %2409 = vmatprep.subr.mxu0 0.0
    %2410 = vmatpush1.msra.mxu0 0.0
    %2411 = vmatprep.subr.mxu0 0.0
    %2412 = vmatpush1.msra.mxu0 0.0
    %2413 = vmatprep.subr.mxu0 0.0
    %2414 = vmatpush1.msra.mxu0 0.0
    %2415 = vmatprep.subr.mxu0 0.0
    %2416 = vmatpush1.msra.mxu0 0.0
    %2417 = vmatprep.subr.mxu0 0.0
    %2418 = vmatpush1.msra.mxu0 0.0
    %2419 = vmatprep.subr.mxu0 0.0
    %2420 = vmatpush1.msra.mxu0 0.0
    %2421 = vmatprep.mubr.f32.mxu0 0.0
    %v2422 = vand.u32 %v2078, 4294901760
    %v2423 = vsub.f32 %v2078, %v2422
    %2424 = vmatmul.mubr.f32.gmra.mrb[0].mxu0 %v2423
    %v2425 = vpop.f32.mrb[0].mxu0
    %v2426 = vadd.f32 %v2322, %v2425
    %v2427 = vpop.f32.mrb[0].mxu0
    %2428 = vdwg.mxu0
    %2429 = vmatprep.subr.mxu0 0.0
    %v2430 = vand.u32 %v1413, 4294901760
    %2431 = vmatpush1.msra.mxu0 %v2430
    %2432 = vmatprep.subr.mxu0 0.0
    %v2433 = vand.u32 %v1414, 4294901760
    %2434 = vmatpush1.msra.mxu0 %v2433
    %2435 = vmatprep.subr.mxu0 0.0
    %v2436 = vand.u32 %v1415, 4294901760
    %2437 = vmatpush1.msra.mxu0 %v2436
    %2438 = vmatprep.subr.mxu0 0.0
    %v2439 = vand.u32 %v1416, 4294901760
    %2440 = vmatpush1.msra.mxu0 %v2439
    %2441 = vmatprep.subr.mxu0 0.0
    %v2442 = vand.u32 %v1417, 4294901760
    %2443 = vmatpush1.msra.mxu0 %v2442
    %2444 = vmatprep.subr.mxu0 0.0
    %v2445 = vand.u32 %v1418, 4294901760
    %2446 = vmatpush1.msra.mxu0 %v2445
    %2447 = vmatprep.subr.mxu0 0.0
    %v2448 = vand.u32 %v1419, 4294901760
    %2449 = vmatpush1.msra.mxu0 %v2448
    %2450 = vmatprep.subr.mxu0 0.0
    %v2451 = vand.u32 %v1420, 4294901760
    %2452 = vmatpush1.msra.mxu0 %v2451
    %2453 = vmatprep.subr.mxu0 0.0
    %v2454 = vand.u32 %v1421, 4294901760
    %2455 = vmatpush1.msra.mxu0 %v2454
    %2456 = vmatprep.subr.mxu0 0.0
    %v2457 = vand.u32 %v1422, 4294901760
    %2458 = vmatpush1.msra.mxu0 %v2457
    %2459 = vmatprep.subr.mxu0 0.0
    %v2460 = vand.u32 %v1423, 4294901760
    %2461 = vmatpush1.msra.mxu0 %v2460
    %2462 = vmatprep.subr.mxu0 0.0
    %v2463 = vand.u32 %v1424, 4294901760
    %2464 = vmatpush1.msra.mxu0 %v2463
    %2465 = vmatprep.subr.mxu0 0.0
    %v2466 = vand.u32 %v1425, 4294901760
    %2467 = vmatpush1.msra.mxu0 %v2466
    %2468 = vmatprep.subr.mxu0 0.0
    %v2469 = vand.u32 %v1426, 4294901760
    %2470 = vmatpush1.msra.mxu0 %v2469
    %2471 = vmatprep.subr.mxu0 0.0
    %v2472 = vand.u32 %v1427, 4294901760
    %2473 = vmatpush1.msra.mxu0 %v2472
    %2474 = vmatprep.subr.mxu0 0.0
    %v2475 = vand.u32 %v1428, 4294901760
    %2476 = vmatpush1.msra.mxu0 %v2475
    %2477 = vmatprep.subr.mxu0 0.0
    %2478 = vmatpush1.msra.mxu0 0.0
    %2479 = vmatprep.subr.mxu0 0.0
    %2480 = vmatpush1.msra.mxu0 0.0
    %2481 = vmatprep.subr.mxu0 0.0
    %2482 = vmatpush1.msra.mxu0 0.0
    %2483 = vmatprep.subr.mxu0 0.0
    %2484 = vmatpush1.msra.mxu0 0.0
    %2485 = vmatprep.subr.mxu0 0.0
    %2486 = vmatpush1.msra.mxu0 0.0
    %2487 = vmatprep.subr.mxu0 0.0
    %2488 = vmatpush1.msra.mxu0 0.0
    %2489 = vmatprep.subr.mxu0 0.0
    %2490 = vmatpush1.msra.mxu0 0.0
    %2491 = vmatprep.subr.mxu0 0.0
    %2492 = vmatpush1.msra.mxu0 0.0
    %2493 = vmatprep.subr.mxu0 0.0
    %2494 = vmatpush1.msra.mxu0 0.0
    %2495 = vmatprep.subr.mxu0 0.0
    %2496 = vmatpush1.msra.mxu0 0.0
    %2497 = vmatprep.subr.mxu0 0.0
    %2498 = vmatpush1.msra.mxu0 0.0
    %2499 = vmatprep.subr.mxu0 0.0
    %2500 = vmatpush1.msra.mxu0 0.0
    %2501 = vmatprep.subr.mxu0 0.0
    %2502 = vmatpush1.msra.mxu0 0.0
    %2503 = vmatprep.subr.mxu0 0.0
    %2504 = vmatpush1.msra.mxu0 0.0
    %2505 = vmatprep.subr.mxu0 0.0
    %2506 = vmatpush1.msra.mxu0 0.0
    %2507 = vmatprep.subr.mxu0 0.0
    %2508 = vmatpush1.msra.mxu0 0.0
    %2509 = vmatprep.mubr.f32.mxu0 0.0
    %v2510 = vand.u32 %v2078, 4294901760
    %v2511 = vsub.f32 %v2078, %v2510
    %v2512 = vand.u32 %v2511, 4294901760
    %2513 = vmatmul.mubr.f32.gmra.mrb[0].mxu0 %v2512
    %v2514 = vpop.f32.mrb[0].mxu0
    %v2515 = vadd.f32 %v2426, %v2514
    %v2516 = vpop.f32.mrb[0].mxu0
    %2517 = vdwg.mxu0
    %2518 = vmatprep.subr.mxu0 0.0
    %v2519 = vand.u32 %v1413, 4294901760
    %v2520 = vsub.f32 %v1413, %v2519
    %v2521 = vand.u32 %v2520, 4294901760
    %2522 = vmatpush1.msra.mxu0 %v2521
    %2523 = vmatprep.subr.mxu0 0.0
    %v2524 = vand.u32 %v1414, 4294901760
    %v2525 = vsub.f32 %v1414, %v2524
    %v2526 = vand.u32 %v2525, 4294901760
    %2527 = vmatpush1.msra.mxu0 %v2526
    %2528 = vmatprep.subr.mxu0 0.0
    %v2529 = vand.u32 %v1415, 4294901760
    %v2530 = vsub.f32 %v1415, %v2529
    %v2531 = vand.u32 %v2530, 4294901760
    %2532 = vmatpush1.msra.mxu0 %v2531
    %2533 = vmatprep.subr.mxu0 0.0
    %v2534 = vand.u32 %v1416, 4294901760
    %v2535 = vsub.f32 %v1416, %v2534
    %v2536 = vand.u32 %v2535, 4294901760
    %2537 = vmatpush1.msra.mxu0 %v2536
    %2538 = vmatprep.subr.mxu0 0.0
    %v2539 = vand.u32 %v1417, 4294901760
    %v2540 = vsub.f32 %v1417, %v2539
    %v2541 = vand.u32 %v2540, 4294901760
    %2542 = vmatpush1.msra.mxu0 %v2541
    %2543 = vmatprep.subr.mxu0 0.0
    %v2544 = vand.u32 %v1418, 4294901760
    %v2545 = vsub.f32 %v1418, %v2544
    %v2546 = vand.u32 %v2545, 4294901760
    %2547 = vmatpush1.msra.mxu0 %v2546
    %2548 = vmatprep.subr.mxu0 0.0
    %v2549 = vand.u32 %v1419, 4294901760
    %v2550 = vsub.f32 %v1419, %v2549
    %v2551 = vand.u32 %v2550, 4294901760
    %2552 = vmatpush1.msra.mxu0 %v2551
    %2553 = vmatprep.subr.mxu0 0.0
    %v2554 = vand.u32 %v1420, 4294901760
    %v2555 = vsub.f32 %v1420, %v2554
    %v2556 = vand.u32 %v2555, 4294901760
    %2557 = vmatpush1.msra.mxu0 %v2556
    %2558 = vmatprep.subr.mxu0 0.0
    %v2559 = vand.u32 %v1421, 4294901760
    %v2560 = vsub.f32 %v1421, %v2559
    %v2561 = vand.u32 %v2560, 4294901760
    %2562 = vmatpush1.msra.mxu0 %v2561
    %2563 = vmatprep.subr.mxu0 0.0
    %v2564 = vand.u32 %v1422, 4294901760
    %v2565 = vsub.f32 %v1422, %v2564
    %v2566 = vand.u32 %v2565, 4294901760
    %2567 = vmatpush1.msra.mxu0 %v2566
    %2568 = vmatprep.subr.mxu0 0.0
    %v2569 = vand.u32 %v1423, 4294901760
    %v2570 = vsub.f32 %v1423, %v2569
    %v2571 = vand.u32 %v2570, 4294901760
    %2572 = vmatpush1.msra.mxu0 %v2571
    %2573 = vmatprep.subr.mxu0 0.0
    %v2574 = vand.u32 %v1424, 4294901760
    %v2575 = vsub.f32 %v1424, %v2574
    %v2576 = vand.u32 %v2575, 4294901760
    %2577 = vmatpush1.msra.mxu0 %v2576
    %2578 = vmatprep.subr.mxu0 0.0
    %v2579 = vand.u32 %v1425, 4294901760
    %v2580 = vsub.f32 %v1425, %v2579
    %v2581 = vand.u32 %v2580, 4294901760
    %2582 = vmatpush1.msra.mxu0 %v2581
    %2583 = vmatprep.subr.mxu0 0.0
    %v2584 = vand.u32 %v1426, 4294901760
    %v2585 = vsub.f32 %v1426, %v2584
    %v2586 = vand.u32 %v2585, 4294901760
    %2587 = vmatpush1.msra.mxu0 %v2586
    %2588 = vmatprep.subr.mxu0 0.0
    %v2589 = vand.u32 %v1427, 4294901760
    %v2590 = vsub.f32 %v1427, %v2589
    %v2591 = vand.u32 %v2590, 4294901760
    %2592 = vmatpush1.msra.mxu0 %v2591
    %2593 = vmatprep.subr.mxu0 0.0
    %v2594 = vand.u32 %v1428, 4294901760
    %v2595 = vsub.f32 %v1428, %v2594
    %v2596 = vand.u32 %v2595, 4294901760
    %2597 = vmatpush1.msra.mxu0 %v2596
    %2598 = vmatprep.subr.mxu0 0.0
    %2599 = vmatpush1.msra.mxu0 0.0
    %2600 = vmatprep.subr.mxu0 0.0
    %2601 = vmatpush1.msra.mxu0 0.0
    %2602 = vmatprep.subr.mxu0 0.0
    %2603 = vmatpush1.msra.mxu0 0.0
    %2604 = vmatprep.subr.mxu0 0.0
    %2605 = vmatpush1.msra.mxu0 0.0
    %2606 = vmatprep.subr.mxu0 0.0
    %2607 = vmatpush1.msra.mxu0 0.0
    %2608 = vmatprep.subr.mxu0 0.0
    %2609 = vmatpush1.msra.mxu0 0.0
    %2610 = vmatprep.subr.mxu0 0.0
    %2611 = vmatpush1.msra.mxu0 0.0
    %2612 = vmatprep.subr.mxu0 0.0
    %2613 = vmatpush1.msra.mxu0 0.0
    %2614 = vmatprep.subr.mxu0 0.0
    %2615 = vmatpush1.msra.mxu0 0.0
    %2616 = vmatprep.subr.mxu0 0.0
    %2617 = vmatpush1.msra.mxu0 0.0
    %2618 = vmatprep.subr.mxu0 0.0
    %2619 = vmatpush1.msra.mxu0 0.0
    %2620 = vmatprep.subr.mxu0 0.0
    %2621 = vmatpush1.msra.mxu0 0.0
    %2622 = vmatprep.subr.mxu0 0.0
    %2623 = vmatpush1.msra.mxu0 0.0
    %2624 = vmatprep.subr.mxu0 0.0
    %2625 = vmatpush1.msra.mxu0 0.0
    %2626 = vmatprep.subr.mxu0 0.0
    %2627 = vmatpush1.msra.mxu0 0.0
    %2628 = vmatprep.subr.mxu0 0.0
    %2629 = vmatpush1.msra.mxu0 0.0
    %2630 = vmatprep.mubr.f32.mxu0 0.0
    %v2631 = vand.u32 %v2078, 4294901760
    %2632 = vmatmul.mubr.f32.gmra.mrb[0].mxu0 %v2631
    %v2633 = vpop.f32.mrb[0].mxu0
    %v2634 = vadd.f32 %v2515, %v2633
    %v2635 = vpop.f32.mrb[0].mxu0
    %2636 = vdwg.mxu0
    %2637 = vmatprep.subr.mxu0 0.0
    %v2638 = vand.u32 %v1413, 4294901760
    %2639 = vmatpush1.msra.mxu0 %v2638
    %2640 = vmatprep.subr.mxu0 0.0
    %v2641 = vand.u32 %v1414, 4294901760
    %2642 = vmatpush1.msra.mxu0 %v2641
    %2643 = vmatprep.subr.mxu0 0.0
    %v2644 = vand.u32 %v1415, 4294901760
    %2645 = vmatpush1.msra.mxu0 %v2644
    %2646 = vmatprep.subr.mxu0 0.0
    %v2647 = vand.u32 %v1416, 4294901760
    %2648 = vmatpush1.msra.mxu0 %v2647
    %2649 = vmatprep.subr.mxu0 0.0
    %v2650 = vand.u32 %v1417, 4294901760
    %2651 = vmatpush1.msra.mxu0 %v2650
    %2652 = vmatprep.subr.mxu0 0.0
    %v2653 = vand.u32 %v1418, 4294901760
    %2654 = vmatpush1.msra.mxu0 %v2653
    %2655 = vmatprep.subr.mxu0 0.0
    %v2656 = vand.u32 %v1419, 4294901760
    %2657 = vmatpush1.msra.mxu0 %v2656
    %2658 = vmatprep.subr.mxu0 0.0
    %v2659 = vand.u32 %v1420, 4294901760
    %2660 = vmatpush1.msra.mxu0 %v2659
    %2661 = vmatprep.subr.mxu0 0.0
    %v2662 = vand.u32 %v1421, 4294901760
    %2663 = vmatpush1.msra.mxu0 %v2662
    %2664 = vmatprep.subr.mxu0 0.0
    %v2665 = vand.u32 %v1422, 4294901760
    %2666 = vmatpush1.msra.mxu0 %v2665
    %2667 = vmatprep.subr.mxu0 0.0
    %v2668 = vand.u32 %v1423, 4294901760
    %2669 = vmatpush1.msra.mxu0 %v2668
    %2670 = vmatprep.subr.mxu0 0.0
    %v2671 = vand.u32 %v1424, 4294901760
    %2672 = vmatpush1.msra.mxu0 %v2671
    %2673 = vmatprep.subr.mxu0 0.0
    %v2674 = vand.u32 %v1425, 4294901760
    %2675 = vmatpush1.msra.mxu0 %v2674
    %2676 = vmatprep.subr.mxu0 0.0
    %v2677 = vand.u32 %v1426, 4294901760
    %2678 = vmatpush1.msra.mxu0 %v2677
    %2679 = vmatprep.subr.mxu0 0.0
    %v2680 = vand.u32 %v1427, 4294901760
    %2681 = vmatpush1.msra.mxu0 %v2680
    %2682 = vmatprep.subr.mxu0 0.0
    %v2683 = vand.u32 %v1428, 4294901760
    %2684 = vmatpush1.msra.mxu0 %v2683
    %2685 = vmatprep.subr.mxu0 0.0
    %2686 = vmatpush1.msra.mxu0 0.0
    %2687 = vmatprep.subr.mxu0 0.0
    %2688 = vmatpush1.msra.mxu0 0.0
    %2689 = vmatprep.subr.mxu0 0.0
    %2690 = vmatpush1.msra.mxu0 0.0
    %2691 = vmatprep.subr.mxu0 0.0
    %2692 = vmatpush1.msra.mxu0 0.0
    %2693 = vmatprep.subr.mxu0 0.0
    %2694 = vmatpush1.msra.mxu0 0.0
    %2695 = vmatprep.subr.mxu0 0.0
    %2696 = vmatpush1.msra.mxu0 0.0
    %2697 = vmatprep.subr.mxu0 0.0
    %2698 = vmatpush1.msra.mxu0 0.0
    %2699 = vmatprep.subr.mxu0 0.0
    %2700 = vmatpush1.msra.mxu0 0.0
    %2701 = vmatprep.subr.mxu0 0.0
    %2702 = vmatpush1.msra.mxu0 0.0
    %2703 = vmatprep.subr.mxu0 0.0
    %2704 = vmatpush1.msra.mxu0 0.0
    %2705 = vmatprep.subr.mxu0 0.0
    %2706 = vmatpush1.msra.mxu0 0.0
    %2707 = vmatprep.subr.mxu0 0.0
    %2708 = vmatpush1.msra.mxu0 0.0
    %2709 = vmatprep.subr.mxu0 0.0
    %2710 = vmatpush1.msra.mxu0 0.0
    %2711 = vmatprep.subr.mxu0 0.0
    %2712 = vmatpush1.msra.mxu0 0.0
    %2713 = vmatprep.subr.mxu0 0.0
    %2714 = vmatpush1.msra.mxu0 0.0
    %2715 = vmatprep.subr.mxu0 0.0
    %2716 = vmatpush1.msra.mxu0 0.0
    %2717 = vmatprep.mubr.f32.mxu0 0.0
    %v2718 = vand.u32 %v2078, 4294901760
    %2719 = vmatmul.mubr.f32.gmra.mrb[0].mxu0 %v2718
    %v2720 = vpop.f32.mrb[0].mxu0
    %v2721 = vadd.f32 %v2634, %v2720
    %v2722 = vpop.f32.mrb[0].mxu0
    %2723 = vdwg.mxu0
    %v2724 = vrot.slane %v2721, 4
    %v2725 = vadd.f32 %v2721, %v2724
    %v2726 = vrot.slane %v2725, 2
    %v2727 = vadd.f32 %v2725, %v2726
    %v2728 = vrot.slane %v2727, 1
    %v2729 = vadd.f32 %v2727, %v2728
    %v2730 = vmul.f32 %v2721, %v2721
    %v2731 = vrot.slane %v2730, 4
    %v2732 = vadd.f32 %v2730, %v2731
    %v2733 = vrot.slane %v2732, 2
    %v2734 = vadd.f32 %v2732, %v2733
    %v2735 = vrot.slane %v2734, 1
    %v2736 = vadd.f32 %v2734, %v2735
    %v2737 = vmul.f32 %v2729, 0.125
    %v2738 = vmul.f32 %v2736, 0.125
    %v2739 = vmul.f32 %v2737, %v2737
    %v2740 = vsub.f32 %v2738, %v2739
    %v2741 = vmax.f32 %v2740, 0.0
    %v2742 = vsub.f32 %v2721, %v2737
    %v2743 = vadd.f32 %v2741, 1e-05
    %v2744 = vrsqrt.pop %v2743
    %v2745 = vmul.f32 %v2742, %v2744
    %v2746 = vlaneseq
    %v2747 = vshrl.u32 %v2746, 7
    %v2748 = vsub.s32 0, %v2747
    %v2749 = vrot.slane %v1431, %v2748
    %v2750 = vmul.f32 %v2745, %v2749
    %v2751 = vlaneseq
    %v2752 = vshrl.u32 %v2751, 7
    %v2753 = vsub.s32 0, %v2752
    %v2754 = vrot.slane %v1432, %v2753
    %v2755 = vadd.f32 %v2750, %v2754
    %s2756 = scalar_lea.vmem %s3, 8
    %v2757 = vld [vmem:[%s2756] sm:$0xff]
    %v2758 = vmul.f32 %v2757, 0.05
    %v2759 = vadd.f32 %v2755, %v2758
    %s2760 = scalar_lea.vmem [#allocation2], 512
    %v2761 = vld [vmem:[%s2760] sm:$0xff]
    %v2762 = vld [vmem:[%s2760 + $0x8] sm:$0xff]
    %v2763 = vld [vmem:[%s2760 + $0x10] sm:$0xff]
    %v2764 = vld [vmem:[%s2760 + $0x18] sm:$0xff]
    %v2765 = vld [vmem:[%s2760 + $0x20] sm:$0xff]
    %v2766 = vld [vmem:[%s2760 + $0x28] sm:$0xff]
    %v2767 = vld [vmem:[%s2760 + $0x30] sm:$0xff]
    %v2768 = vld [vmem:[%s2760 + $0x38] sm:$0xff]
    %v2769 = vld [vmem:[%s2760 + $0x40] sm:$0xff]
    %v2770 = vld [vmem:[%s2760 + $0x48] sm:$0xff]
    %v2771 = vld [vmem:[%s2760 + $0x50] sm:$0xff]
    %v2772 = vld [vmem:[%s2760 + $0x58] sm:$0xff]
    %v2773 = vld [vmem:[%s2760 + $0x60] sm:$0xff]
    %v2774 = vld [vmem:[%s2760 + $0x68] sm:$0xff]
    %v2775 = vld [vmem:[%s2760 + $0x70] sm:$0xff]
    %v2776 = vld [vmem:[%s2760 + $0x78] sm:$0xff]
    %s2777 = scalar_lea.vmem [#allocation2], 640
    %v2778 = vld [vmem:[%s2777] sm:$0xff]
    %v2779 = vld [vmem:[%s2777 + $0x8] sm:$0xff]
    %v2780 = vld [vmem:[%s2777 + $0x10] sm:$0xff]
    %v2781 = vld [vmem:[%s2777 + $0x18] sm:$0xff]
    %v2782 = vld [vmem:[%s2777 + $0x20] sm:$0xff]
    %v2783 = vld [vmem:[%s2777 + $0x28] sm:$0xff]
    %v2784 = vld [vmem:[%s2777 + $0x30] sm:$0xff]
    %v2785 = vld [vmem:[%s2777 + $0x38] sm:$0xff]
    %v2786 = vld [vmem:[%s2777 + $0x40] sm:$0xff]
    %v2787 = vld [vmem:[%s2777 + $0x48] sm:$0xff]
    %v2788 = vld [vmem:[%s2777 + $0x50] sm:$0xff]
    %v2789 = vld [vmem:[%s2777 + $0x58] sm:$0xff]
    %v2790 = vld [vmem:[%s2777 + $0x60] sm:$0xff]
    %v2791 = vld [vmem:[%s2777 + $0x68] sm:$0xff]
    %v2792 = vld [vmem:[%s2777 + $0x70] sm:$0xff]
    %v2793 = vld [vmem:[%s2777 + $0x78] sm:$0xff]
    %v2794 = vld [vmem:[%s2 + $0x8] sm:$0x1]
    %v2795 = vld [vmem:[%s2 + $0x9] sm:$0x1]
    %v2796 = vld [vmem:[%s2 + $0xa] sm:$0x1]
    %v2797 = vld [vmem:[%s2 + $0xb] sm:$0x1]
    %v2798 = vlaneseq
    %v2799 = vshrl.u32 %v2798, 7
    %v2800 = vsub.s32 0, %v2799
    %v2801 = vrot.slane %v2794, %v2800
    %2802 = vmatprep.subr.mxu0 0.0
    %v2803 = vand.u32 %v2761, 4294901760
    %2804 = vmatpush1.msra.mxu0 %v2803
    %2805 = vmatprep.subr.mxu0 0.0
    %v2806 = vand.u32 %v2762, 4294901760
    %2807 = vmatpush1.msra.mxu0 %v2806
    %2808 = vmatprep.subr.mxu0 0.0
    %v2809 = vand.u32 %v2763, 4294901760
    %2810 = vmatpush1.msra.mxu0 %v2809
    %2811 = vmatprep.subr.mxu0 0.0
    %v2812 = vand.u32 %v2764, 4294901760
    %2813 = vmatpush1.msra.mxu0 %v2812
    %2814 = vmatprep.subr.mxu0 0.0
    %v2815 = vand.u32 %v2765, 4294901760
    %2816 = vmatpush1.msra.mxu0 %v2815
    %2817 = vmatprep.subr.mxu0 0.0
    %v2818 = vand.u32 %v2766, 4294901760
    %2819 = vmatpush1.msra.mxu0 %v2818
    %2820 = vmatprep.subr.mxu0 0.0
    %v2821 = vand.u32 %v2767, 4294901760
    %2822 = vmatpush1.msra.mxu0 %v2821
    %2823 = vmatprep.subr.mxu0 0.0
    %v2824 = vand.u32 %v2768, 4294901760
    %2825 = vmatpush1.msra.mxu0 %v2824
    %2826 = vmatprep.subr.mxu0 0.0
    %v2827 = vand.u32 %v2769, 4294901760
    %2828 = vmatpush1.msra.mxu0 %v2827
    %2829 = vmatprep.subr.mxu0 0.0
    %v2830 = vand.u32 %v2770, 4294901760
    %2831 = vmatpush1.msra.mxu0 %v2830
    %2832 = vmatprep.subr.mxu0 0.0
    %v2833 = vand.u32 %v2771, 4294901760
    %2834 = vmatpush1.msra.mxu0 %v2833
    %2835 = vmatprep.subr.mxu0 0.0
    %v2836 = vand.u32 %v2772, 4294901760
    %2837 = vmatpush1.msra.mxu0 %v2836
    %2838 = vmatprep.subr.mxu0 0.0
    %v2839 = vand.u32 %v2773, 4294901760
    %2840 = vmatpush1.msra.mxu0 %v2839
    %2841 = vmatprep.subr.mxu0 0.0
    %v2842 = vand.u32 %v2774, 4294901760
    %2843 = vmatpush1.msra.mxu0 %v2842
    %2844 = vmatprep.subr.mxu0 0.0
    %v2845 = vand.u32 %v2775, 4294901760
    %2846 = vmatpush1.msra.mxu0 %v2845
    %2847 = vmatprep.subr.mxu0 0.0
    %v2848 = vand.u32 %v2776, 4294901760
    %2849 = vmatpush1.msra.mxu0 %v2848
    %2850 = vmatprep.subr.mxu0 0.0
    %2851 = vmatpush1.msra.mxu0 0.0
    %2852 = vmatprep.subr.mxu0 0.0
    %2853 = vmatpush1.msra.mxu0 0.0
    %2854 = vmatprep.subr.mxu0 0.0
    %2855 = vmatpush1.msra.mxu0 0.0
    %2856 = vmatprep.subr.mxu0 0.0
    %2857 = vmatpush1.msra.mxu0 0.0
    %2858 = vmatprep.subr.mxu0 0.0
    %2859 = vmatpush1.msra.mxu0 0.0
    %2860 = vmatprep.subr.mxu0 0.0
    %2861 = vmatpush1.msra.mxu0 0.0
    %2862 = vmatprep.subr.mxu0 0.0
    %2863 = vmatpush1.msra.mxu0 0.0
    %2864 = vmatprep.subr.mxu0 0.0
    %2865 = vmatpush1.msra.mxu0 0.0
    %2866 = vmatprep.subr.mxu0 0.0
    %2867 = vmatpush1.msra.mxu0 0.0
    %2868 = vmatprep.subr.mxu0 0.0
    %2869 = vmatpush1.msra.mxu0 0.0
    %2870 = vmatprep.subr.mxu0 0.0
    %2871 = vmatpush1.msra.mxu0 0.0
    %2872 = vmatprep.subr.mxu0 0.0
    %2873 = vmatpush1.msra.mxu0 0.0
    %2874 = vmatprep.subr.mxu0 0.0
    %2875 = vmatpush1.msra.mxu0 0.0
    %2876 = vmatprep.subr.mxu0 0.0
    %2877 = vmatpush1.msra.mxu0 0.0
    %2878 = vmatprep.subr.mxu0 0.0
    %2879 = vmatpush1.msra.mxu0 0.0
    %2880 = vmatprep.subr.mxu0 0.0
    %2881 = vmatpush1.msra.mxu0 0.0
    %2882 = vmatprep.mubr.f32.mxu0 0.0
    %v2883 = vand.u32 %v2759, 4294901760
    %v2884 = vsub.f32 %v2759, %v2883
    %v2885 = vand.u32 %v2884, 4294901760
    %v2886 = vsub.f32 %v2884, %v2885
    %v2887 = vand.u32 %v2886, 4294901760
    %2888 = vmatmul.mubr.f32.gmra.mrb[0].mxu0 %v2887
    %v2889 = vpop.f32.mrb[0].mxu0
    %v2890 = vadd.f32 %v2801, %v2889
    %v2891 = vpop.f32.mrb[0].mxu0
    %2892 = vdwg.mxu0
    %2893 = vmatprep.subr.mxu0 0.0
    %v2894 = vand.u32 %v2761, 4294901760
    %v2895 = vsub.f32 %v2761, %v2894
    %v2896 = vand.u32 %v2895, 4294901760
    %v2897 = vsub.f32 %v2895, %v2896
    %v2898 = vand.u32 %v2897, 4294901760
    %2899 = vmatpush1.msra.mxu0 %v2898
    %2900 = vmatprep.subr.mxu0 0.0
    %v2901 = vand.u32 %v2762, 4294901760
    %v2902 = vsub.f32 %v2762, %v2901
    %v2903 = vand.u32 %v2902, 4294901760
    %v2904 = vsub.f32 %v2902, %v2903
    %v2905 = vand.u32 %v2904, 4294901760
    %2906 = vmatpush1.msra.mxu0 %v2905
    %2907 = vmatprep.subr.mxu0 0.0
    %v2908 = vand.u32 %v2763, 4294901760
    %v2909 = vsub.f32 %v2763, %v2908
    %v2910 = vand.u32 %v2909, 4294901760
    %v2911 = vsub.f32 %v2909, %v2910
    %v2912 = vand.u32 %v2911, 4294901760
    %2913 = vmatpush1.msra.mxu0 %v2912
    %2914 = vmatprep.subr.mxu0 0.0
    %v2915 = vand.u32 %v2764, 4294901760
    %v2916 = vsub.f32 %v2764, %v2915
    %v2917 = vand.u32 %v2916, 4294901760
    %v2918 = vsub.f32 %v2916, %v2917
    %v2919 = vand.u32 %v2918, 4294901760
    %2920 = vmatpush1.msra.mxu0 %v2919
    %2921 = vmatprep.subr.mxu0 0.0
    %v2922 = vand.u32 %v2765, 4294901760
    %v2923 = vsub.f32 %v2765, %v2922
    %v2924 = vand.u32 %v2923, 4294901760
    %v2925 = vsub.f32 %v2923, %v2924
    %v2926 = vand.u32 %v2925, 4294901760
    %2927 = vmatpush1.msra.mxu0 %v2926
    %2928 = vmatprep.subr.mxu0 0.0
    %v2929 = vand.u32 %v2766, 4294901760
    %v2930 = vsub.f32 %v2766, %v2929
    %v2931 = vand.u32 %v2930, 4294901760
    %v2932 = vsub.f32 %v2930, %v2931
    %v2933 = vand.u32 %v2932, 4294901760
    %2934 = vmatpush1.msra.mxu0 %v2933
    %2935 = vmatprep.subr.mxu0 0.0
    %v2936 = vand.u32 %v2767, 4294901760
    %v2937 = vsub.f32 %v2767, %v2936
    %v2938 = vand.u32 %v2937, 4294901760
    %v2939 = vsub.f32 %v2937, %v2938
    %v2940 = vand.u32 %v2939, 4294901760
    %2941 = vmatpush1.msra.mxu0 %v2940
    %2942 = vmatprep.subr.mxu0 0.0
    %v2943 = vand.u32 %v2768, 4294901760
    %v2944 = vsub.f32 %v2768, %v2943
    %v2945 = vand.u32 %v2944, 4294901760
    %v2946 = vsub.f32 %v2944, %v2945
    %v2947 = vand.u32 %v2946, 4294901760
    %2948 = vmatpush1.msra.mxu0 %v2947
    %2949 = vmatprep.subr.mxu0 0.0
    %v2950 = vand.u32 %v2769, 4294901760
    %v2951 = vsub.f32 %v2769, %v2950
    %v2952 = vand.u32 %v2951, 4294901760
    %v2953 = vsub.f32 %v2951, %v2952
    %v2954 = vand.u32 %v2953, 4294901760
    %2955 = vmatpush1.msra.mxu0 %v2954
    %2956 = vmatprep.subr.mxu0 0.0
    %v2957 = vand.u32 %v2770, 4294901760
    %v2958 = vsub.f32 %v2770, %v2957
    %v2959 = vand.u32 %v2958, 4294901760
    %v2960 = vsub.f32 %v2958, %v2959
    %v2961 = vand.u32 %v2960, 4294901760
    %2962 = vmatpush1.msra.mxu0 %v2961
    %2963 = vmatprep.subr.mxu0 0.0
    %v2964 = vand.u32 %v2771, 4294901760
    %v2965 = vsub.f32 %v2771, %v2964
    %v2966 = vand.u32 %v2965, 4294901760
    %v2967 = vsub.f32 %v2965, %v2966
    %v2968 = vand.u32 %v2967, 4294901760
    %2969 = vmatpush1.msra.mxu0 %v2968
    %2970 = vmatprep.subr.mxu0 0.0
    %v2971 = vand.u32 %v2772, 4294901760
    %v2972 = vsub.f32 %v2772, %v2971
    %v2973 = vand.u32 %v2972, 4294901760
    %v2974 = vsub.f32 %v2972, %v2973
    %v2975 = vand.u32 %v2974, 4294901760
    %2976 = vmatpush1.msra.mxu0 %v2975
    %2977 = vmatprep.subr.mxu0 0.0
    %v2978 = vand.u32 %v2773, 4294901760
    %v2979 = vsub.f32 %v2773, %v2978
    %v2980 = vand.u32 %v2979, 4294901760
    %v2981 = vsub.f32 %v2979, %v2980
    %v2982 = vand.u32 %v2981, 4294901760
    %2983 = vmatpush1.msra.mxu0 %v2982
    %2984 = vmatprep.subr.mxu0 0.0
    %v2985 = vand.u32 %v2774, 4294901760
    %v2986 = vsub.f32 %v2774, %v2985
    %v2987 = vand.u32 %v2986, 4294901760
    %v2988 = vsub.f32 %v2986, %v2987
    %v2989 = vand.u32 %v2988, 4294901760
    %2990 = vmatpush1.msra.mxu0 %v2989
    %2991 = vmatprep.subr.mxu0 0.0
    %v2992 = vand.u32 %v2775, 4294901760
    %v2993 = vsub.f32 %v2775, %v2992
    %v2994 = vand.u32 %v2993, 4294901760
    %v2995 = vsub.f32 %v2993, %v2994
    %v2996 = vand.u32 %v2995, 4294901760
    %2997 = vmatpush1.msra.mxu0 %v2996
    %2998 = vmatprep.subr.mxu0 0.0
    %v2999 = vand.u32 %v2776, 4294901760
    %v3000 = vsub.f32 %v2776, %v2999
    %v3001 = vand.u32 %v3000, 4294901760
    %v3002 = vsub.f32 %v3000, %v3001
    %v3003 = vand.u32 %v3002, 4294901760
    %3004 = vmatpush1.msra.mxu0 %v3003
    %3005 = vmatprep.subr.mxu0 0.0
    %3006 = vmatpush1.msra.mxu0 0.0
    %3007 = vmatprep.subr.mxu0 0.0
    %3008 = vmatpush1.msra.mxu0 0.0
    %3009 = vmatprep.subr.mxu0 0.0
    %3010 = vmatpush1.msra.mxu0 0.0
    %3011 = vmatprep.subr.mxu0 0.0
    %3012 = vmatpush1.msra.mxu0 0.0
    %3013 = vmatprep.subr.mxu0 0.0
    %3014 = vmatpush1.msra.mxu0 0.0
    %3015 = vmatprep.subr.mxu0 0.0
    %3016 = vmatpush1.msra.mxu0 0.0
    %3017 = vmatprep.subr.mxu0 0.0
    %3018 = vmatpush1.msra.mxu0 0.0
    %3019 = vmatprep.subr.mxu0 0.0
    %3020 = vmatpush1.msra.mxu0 0.0
    %3021 = vmatprep.subr.mxu0 0.0
    %3022 = vmatpush1.msra.mxu0 0.0
    %3023 = vmatprep.subr.mxu0 0.0
    %3024 = vmatpush1.msra.mxu0 0.0
    %3025 = vmatprep.subr.mxu0 0.0
    %3026 = vmatpush1.msra.mxu0 0.0
    %3027 = vmatprep.subr.mxu0 0.0
    %3028 = vmatpush1.msra.mxu0 0.0
    %3029 = vmatprep.subr.mxu0 0.0
    %3030 = vmatpush1.msra.mxu0 0.0
    %3031 = vmatprep.subr.mxu0 0.0
    %3032 = vmatpush1.msra.mxu0 0.0
    %3033 = vmatprep.subr.mxu0 0.0
    %3034 = vmatpush1.msra.mxu0 0.0
    %3035 = vmatprep.subr.mxu0 0.0
    %3036 = vmatpush1.msra.mxu0 0.0
    %3037 = vmatprep.mubr.f32.mxu0 0.0
    %v3038 = vand.u32 %v2759, 4294901760
    %3039 = vmatmul.mubr.f32.gmra.mrb[0].mxu0 %v3038
    %v3040 = vpop.f32.mrb[0].mxu0
    %v3041 = vadd.f32 %v2890, %v3040
    %v3042 = vpop.f32.mrb[0].mxu0
    %3043 = vdwg.mxu0
    %3044 = vmatprep.subr.mxu0 0.0
    %v3045 = vand.u32 %v2761, 4294901760
    %v3046 = vsub.f32 %v2761, %v3045
    %3047 = vmatpush1.msra.mxu0 %v3046
    %3048 = vmatprep.subr.mxu0 0.0
    %v3049 = vand.u32 %v2762, 4294901760
    %v3050 = vsub.f32 %v2762, %v3049
    %3051 = vmatpush1.msra.mxu0 %v3050
    %3052 = vmatprep.subr.mxu0 0.0
    %v3053 = vand.u32 %v2763, 4294901760
    %v3054 = vsub.f32 %v2763, %v3053
    %3055 = vmatpush1.msra.mxu0 %v3054
    %3056 = vmatprep.subr.mxu0 0.0
    %v3057 = vand.u32 %v2764, 4294901760
    %v3058 = vsub.f32 %v2764, %v3057
    %3059 = vmatpush1.msra.mxu0 %v3058
    %3060 = vmatprep.subr.mxu0 0.0
    %v3061 = vand.u32 %v2765, 4294901760
    %v3062 = vsub.f32 %v2765, %v3061
    %3063 = vmatpush1.msra.mxu0 %v3062
    %3064 = vmatprep.subr.mxu0 0.0
    %v3065 = vand.u32 %v2766, 4294901760
    %v3066 = vsub.f32 %v2766, %v3065
    %3067 = vmatpush1.msra.mxu0 %v3066
    %3068 = vmatprep.subr.mxu0 0.0
    %v3069 = vand.u32 %v2767, 4294901760
    %v3070 = vsub.f32 %v2767, %v3069
    %3071 = vmatpush1.msra.mxu0 %v3070
    %3072 = vmatprep.subr.mxu0 0.0
    %v3073 = vand.u32 %v2768, 4294901760
    %v3074 = vsub.f32 %v2768, %v3073
    %3075 = vmatpush1.msra.mxu0 %v3074
    %3076 = vmatprep.subr.mxu0 0.0
    %v3077 = vand.u32 %v2769, 4294901760
    %v3078 = vsub.f32 %v2769, %v3077
    %3079 = vmatpush1.msra.mxu0 %v3078
    %3080 = vmatprep.subr.mxu0 0.0
    %v3081 = vand.u32 %v2770, 4294901760
    %v3082 = vsub.f32 %v2770, %v3081
    %3083 = vmatpush1.msra.mxu0 %v3082
    %3084 = vmatprep.subr.mxu0 0.0
    %v3085 = vand.u32 %v2771, 4294901760
    %v3086 = vsub.f32 %v2771, %v3085
    %3087 = vmatpush1.msra.mxu0 %v3086
    %3088 = vmatprep.subr.mxu0 0.0
    %v3089 = vand.u32 %v2772, 4294901760
    %v3090 = vsub.f32 %v2772, %v3089
    %3091 = vmatpush1.msra.mxu0 %v3090
    %3092 = vmatprep.subr.mxu0 0.0
    %v3093 = vand.u32 %v2773, 4294901760
    %v3094 = vsub.f32 %v2773, %v3093
    %3095 = vmatpush1.msra.mxu0 %v3094
    %3096 = vmatprep.subr.mxu0 0.0
    %v3097 = vand.u32 %v2774, 4294901760
    %v3098 = vsub.f32 %v2774, %v3097
    %3099 = vmatpush1.msra.mxu0 %v3098
    %3100 = vmatprep.subr.mxu0 0.0
    %v3101 = vand.u32 %v2775, 4294901760
    %v3102 = vsub.f32 %v2775, %v3101
    %3103 = vmatpush1.msra.mxu0 %v3102
    %3104 = vmatprep.subr.mxu0 0.0
    %v3105 = vand.u32 %v2776, 4294901760
    %v3106 = vsub.f32 %v2776, %v3105
    %3107 = vmatpush1.msra.mxu0 %v3106
    %3108 = vmatprep.subr.mxu0 0.0
    %3109 = vmatpush1.msra.mxu0 0.0
    %3110 = vmatprep.subr.mxu0 0.0
    %3111 = vmatpush1.msra.mxu0 0.0
    %3112 = vmatprep.subr.mxu0 0.0
    %3113 = vmatpush1.msra.mxu0 0.0
    %3114 = vmatprep.subr.mxu0 0.0
    %3115 = vmatpush1.msra.mxu0 0.0
    %3116 = vmatprep.subr.mxu0 0.0
    %3117 = vmatpush1.msra.mxu0 0.0
    %3118 = vmatprep.subr.mxu0 0.0
    %3119 = vmatpush1.msra.mxu0 0.0
    %3120 = vmatprep.subr.mxu0 0.0
    %3121 = vmatpush1.msra.mxu0 0.0
    %3122 = vmatprep.subr.mxu0 0.0
    %3123 = vmatpush1.msra.mxu0 0.0
    %3124 = vmatprep.subr.mxu0 0.0
    %3125 = vmatpush1.msra.mxu0 0.0
    %3126 = vmatprep.subr.mxu0 0.0
    %3127 = vmatpush1.msra.mxu0 0.0
    %3128 = vmatprep.subr.mxu0 0.0
    %3129 = vmatpush1.msra.mxu0 0.0
    %3130 = vmatprep.subr.mxu0 0.0
    %3131 = vmatpush1.msra.mxu0 0.0
    %3132 = vmatprep.subr.mxu0 0.0
    %3133 = vmatpush1.msra.mxu0 0.0
    %3134 = vmatprep.subr.mxu0 0.0
    %3135 = vmatpush1.msra.mxu0 0.0
    %3136 = vmatprep.subr.mxu0 0.0
    %3137 = vmatpush1.msra.mxu0 0.0
    %3138 = vmatprep.subr.mxu0 0.0
    %3139 = vmatpush1.msra.mxu0 0.0
    %3140 = vmatprep.mubr.f32.mxu0 0.0
    %v3141 = vand.u32 %v2759, 4294901760
    %v3142 = vsub.f32 %v2759, %v3141
    %3143 = vmatmul.mubr.f32.gmra.mrb[0].mxu0 %v3142
    %v3144 = vpop.f32.mrb[0].mxu0
    %v3145 = vadd.f32 %v3041, %v3144
    %v3146 = vpop.f32.mrb[0].mxu0
    %3147 = vdwg.mxu0
    %3148 = vmatprep.subr.mxu0 0.0
    %v3149 = vand.u32 %v2761, 4294901760
    %3150 = vmatpush1.msra.mxu0 %v3149
    %3151 = vmatprep.subr.mxu0 0.0
    %v3152 = vand.u32 %v2762, 4294901760
    %3153 = vmatpush1.msra.mxu0 %v3152
    %3154 = vmatprep.subr.mxu0 0.0
    %v3155 = vand.u32 %v2763, 4294901760
    %3156 = vmatpush1.msra.mxu0 %v3155
    %3157 = vmatprep.subr.mxu0 0.0
    %v3158 = vand.u32 %v2764, 4294901760
    %3159 = vmatpush1.msra.mxu0 %v3158
    %3160 = vmatprep.subr.mxu0 0.0
    %v3161 = vand.u32 %v2765, 4294901760
    %3162 = vmatpush1.msra.mxu0 %v3161
    %3163 = vmatprep.subr.mxu0 0.0
    %v3164 = vand.u32 %v2766, 4294901760
    %3165 = vmatpush1.msra.mxu0 %v3164
    %3166 = vmatprep.subr.mxu0 0.0
    %v3167 = vand.u32 %v2767, 4294901760
    %3168 = vmatpush1.msra.mxu0 %v3167
    %3169 = vmatprep.subr.mxu0 0.0
    %v3170 = vand.u32 %v2768, 4294901760
    %3171 = vmatpush1.msra.mxu0 %v3170
    %3172 = vmatprep.subr.mxu0 0.0
    %v3173 = vand.u32 %v2769, 4294901760
    %3174 = vmatpush1.msra.mxu0 %v3173
    %3175 = vmatprep.subr.mxu0 0.0
    %v3176 = vand.u32 %v2770, 4294901760
    %3177 = vmatpush1.msra.mxu0 %v3176
    %3178 = vmatprep.subr.mxu0 0.0
    %v3179 = vand.u32 %v2771, 4294901760
    %3180 = vmatpush1.msra.mxu0 %v3179
    %3181 = vmatprep.subr.mxu0 0.0
    %v3182 = vand.u32 %v2772, 4294901760
    %3183 = vmatpush1.msra.mxu0 %v3182
    %3184 = vmatprep.subr.mxu0 0.0
    %v3185 = vand.u32 %v2773, 4294901760
    %3186 = vmatpush1.msra.mxu0 %v3185
    %3187 = vmatprep.subr.mxu0 0.0
    %v3188 = vand.u32 %v2774, 4294901760
    %3189 = vmatpush1.msra.mxu0 %v3188
    %3190 = vmatprep.subr.mxu0 0.0
    %v3191 = vand.u32 %v2775, 4294901760
    %3192 = vmatpush1.msra.mxu0 %v3191
    %3193 = vmatprep.subr.mxu0 0.0
    %v3194 = vand.u32 %v2776, 4294901760
    %3195 = vmatpush1.msra.mxu0 %v3194
    %3196 = vmatprep.subr.mxu0 0.0
    %3197 = vmatpush1.msra.mxu0 0.0
    %3198 = vmatprep.subr.mxu0 0.0
    %3199 = vmatpush1.msra.mxu0 0.0
    %3200 = vmatprep.subr.mxu0 0.0
    %3201 = vmatpush1.msra.mxu0 0.0
    %3202 = vmatprep.subr.mxu0 0.0
    %3203 = vmatpush1.msra.mxu0 0.0
    %3204 = vmatprep.subr.mxu0 0.0
    %3205 = vmatpush1.msra.mxu0 0.0
    %3206 = vmatprep.subr.mxu0 0.0
    %3207 = vmatpush1.msra.mxu0 0.0
    %3208 = vmatprep.subr.mxu0 0.0
    %3209 = vmatpush1.msra.mxu0 0.0
    %3210 = vmatprep.subr.mxu0 0.0
    %3211 = vmatpush1.msra.mxu0 0.0
    %3212 = vmatprep.subr.mxu0 0.0
    %3213 = vmatpush1.msra.mxu0 0.0
    %3214 = vmatprep.subr.mxu0 0.0
    %3215 = vmatpush1.msra.mxu0 0.0
    %3216 = vmatprep.subr.mxu0 0.0
    %3217 = vmatpush1.msra.mxu0 0.0
    %3218 = vmatprep.subr.mxu0 0.0
    %3219 = vmatpush1.msra.mxu0 0.0
    %3220 = vmatprep.subr.mxu0 0.0
    %3221 = vmatpush1.msra.mxu0 0.0
    %3222 = vmatprep.subr.mxu0 0.0
    %3223 = vmatpush1.msra.mxu0 0.0
    %3224 = vmatprep.subr.mxu0 0.0
    %3225 = vmatpush1.msra.mxu0 0.0
    %3226 = vmatprep.subr.mxu0 0.0
    %3227 = vmatpush1.msra.mxu0 0.0
    %3228 = vmatprep.mubr.f32.mxu0 0.0
    %v3229 = vand.u32 %v2759, 4294901760
    %v3230 = vsub.f32 %v2759, %v3229
    %v3231 = vand.u32 %v3230, 4294901760
    %3232 = vmatmul.mubr.f32.gmra.mrb[0].mxu0 %v3231
    %v3233 = vpop.f32.mrb[0].mxu0
    %v3234 = vadd.f32 %v3145, %v3233
    %v3235 = vpop.f32.mrb[0].mxu0
    %3236 = vdwg.mxu0
    %3237 = vmatprep.subr.mxu0 0.0
    %v3238 = vand.u32 %v2761, 4294901760
    %v3239 = vsub.f32 %v2761, %v3238
    %v3240 = vand.u32 %v3239, 4294901760
    %3241 = vmatpush1.msra.mxu0 %v3240
    %3242 = vmatprep.subr.mxu0 0.0
    %v3243 = vand.u32 %v2762, 4294901760
    %v3244 = vsub.f32 %v2762, %v3243
    %v3245 = vand.u32 %v3244, 4294901760
    %3246 = vmatpush1.msra.mxu0 %v3245
    %3247 = vmatprep.subr.mxu0 0.0
    %v3248 = vand.u32 %v2763, 4294901760
    %v3249 = vsub.f32 %v2763, %v3248
    %v3250 = vand.u32 %v3249, 4294901760
    %3251 = vmatpush1.msra.mxu0 %v3250
    %3252 = vmatprep.subr.mxu0 0.0
    %v3253 = vand.u32 %v2764, 4294901760
    %v3254 = vsub.f32 %v2764, %v3253
    %v3255 = vand.u32 %v3254, 4294901760
    %3256 = vmatpush1.msra.mxu0 %v3255
    %3257 = vmatprep.subr.mxu0 0.0
    %v3258 = vand.u32 %v2765, 4294901760
    %v3259 = vsub.f32 %v2765, %v3258
    %v3260 = vand.u32 %v3259, 4294901760
    %3261 = vmatpush1.msra.mxu0 %v3260
    %3262 = vmatprep.subr.mxu0 0.0
    %v3263 = vand.u32 %v2766, 4294901760
    %v3264 = vsub.f32 %v2766, %v3263
    %v3265 = vand.u32 %v3264, 4294901760
    %3266 = vmatpush1.msra.mxu0 %v3265
    %3267 = vmatprep.subr.mxu0 0.0
    %v3268 = vand.u32 %v2767, 4294901760
    %v3269 = vsub.f32 %v2767, %v3268
    %v3270 = vand.u32 %v3269, 4294901760
    %3271 = vmatpush1.msra.mxu0 %v3270
    %3272 = vmatprep.subr.mxu0 0.0
    %v3273 = vand.u32 %v2768, 4294901760
    %v3274 = vsub.f32 %v2768, %v3273
    %v3275 = vand.u32 %v3274, 4294901760
    %3276 = vmatpush1.msra.mxu0 %v3275
    %3277 = vmatprep.subr.mxu0 0.0
    %v3278 = vand.u32 %v2769, 4294901760
    %v3279 = vsub.f32 %v2769, %v3278
    %v3280 = vand.u32 %v3279, 4294901760
    %3281 = vmatpush1.msra.mxu0 %v3280
    %3282 = vmatprep.subr.mxu0 0.0
    %v3283 = vand.u32 %v2770, 4294901760
    %v3284 = vsub.f32 %v2770, %v3283
    %v3285 = vand.u32 %v3284, 4294901760
    %3286 = vmatpush1.msra.mxu0 %v3285
    %3287 = vmatprep.subr.mxu0 0.0
    %v3288 = vand.u32 %v2771, 4294901760
    %v3289 = vsub.f32 %v2771, %v3288
    %v3290 = vand.u32 %v3289, 4294901760
    %3291 = vmatpush1.msra.mxu0 %v3290
    %3292 = vmatprep.subr.mxu0 0.0
    %v3293 = vand.u32 %v2772, 4294901760
    %v3294 = vsub.f32 %v2772, %v3293
    %v3295 = vand.u32 %v3294, 4294901760
    %3296 = vmatpush1.msra.mxu0 %v3295
    %3297 = vmatprep.subr.mxu0 0.0
    %v3298 = vand.u32 %v2773, 4294901760
    %v3299 = vsub.f32 %v2773, %v3298
    %v3300 = vand.u32 %v3299, 4294901760
    %3301 = vmatpush1.msra.mxu0 %v3300
    %3302 = vmatprep.subr.mxu0 0.0
    %v3303 = vand.u32 %v2774, 4294901760
    %v3304 = vsub.f32 %v2774, %v3303
    %v3305 = vand.u32 %v3304, 4294901760
    %3306 = vmatpush1.msra.mxu0 %v3305
    %3307 = vmatprep.subr.mxu0 0.0
    %v3308 = vand.u32 %v2775, 4294901760
    %v3309 = vsub.f32 %v2775, %v3308
    %v3310 = vand.u32 %v3309, 4294901760
    %3311 = vmatpush1.msra.mxu0 %v3310
    %3312 = vmatprep.subr.mxu0 0.0
    %v3313 = vand.u32 %v2776, 4294901760
    %v3314 = vsub.f32 %v2776, %v3313
    %v3315 = vand.u32 %v3314, 4294901760
    %3316 = vmatpush1.msra.mxu0 %v3315
    %3317 = vmatprep.subr.mxu0 0.0
    %3318 = vmatpush1.msra.mxu0 0.0
    %3319 = vmatprep.subr.mxu0 0.0
    %3320 = vmatpush1.msra.mxu0 0.0
    %3321 = vmatprep.subr.mxu0 0.0
    %3322 = vmatpush1.msra.mxu0 0.0
    %3323 = vmatprep.subr.mxu0 0.0
    %3324 = vmatpush1.msra.mxu0 0.0
    %3325 = vmatprep.subr.mxu0 0.0
    %3326 = vmatpush1.msra.mxu0 0.0
    %3327 = vmatprep.subr.mxu0 0.0
    %3328 = vmatpush1.msra.mxu0 0.0
    %3329 = vmatprep.subr.mxu0 0.0
    %3330 = vmatpush1.msra.mxu0 0.0
    %3331 = vmatprep.subr.mxu0 0.0
    %3332 = vmatpush1.msra.mxu0 0.0
    %3333 = vmatprep.subr.mxu0 0.0
    %3334 = vmatpush1.msra.mxu0 0.0
    %3335 = vmatprep.subr.mxu0 0.0
    %3336 = vmatpush1.msra.mxu0 0.0
    %3337 = vmatprep.subr.mxu0 0.0
    %3338 = vmatpush1.msra.mxu0 0.0
    %3339 = vmatprep.subr.mxu0 0.0
    %3340 = vmatpush1.msra.mxu0 0.0
    %3341 = vmatprep.subr.mxu0 0.0
    %3342 = vmatpush1.msra.mxu0 0.0
    %3343 = vmatprep.subr.mxu0 0.0
    %3344 = vmatpush1.msra.mxu0 0.0
    %3345 = vmatprep.subr.mxu0 0.0
    %3346 = vmatpush1.msra.mxu0 0.0
    %3347 = vmatprep.subr.mxu0 0.0
    %3348 = vmatpush1.msra.mxu0 0.0
    %3349 = vmatprep.mubr.f32.mxu0 0.0
    %v3350 = vand.u32 %v2759, 4294901760
    %3351 = vmatmul.mubr.f32.gmra.mrb[0].mxu0 %v3350
    %v3352 = vpop.f32.mrb[0].mxu0
    %v3353 = vadd.f32 %v3234, %v3352
    %v3354 = vpop.f32.mrb[0].mxu0
    %3355 = vdwg.mxu0
    %3356 = vmatprep.subr.mxu0 0.0
    %v3357 = vand.u32 %v2761, 4294901760
    %3358 = vmatpush1.msra.mxu0 %v3357
    %3359 = vmatprep.subr.mxu0 0.0
    %v3360 = vand.u32 %v2762, 4294901760
    %3361 = vmatpush1.msra.mxu0 %v3360
    %3362 = vmatprep.subr.mxu0 0.0
    %v3363 = vand.u32 %v2763, 4294901760
    %3364 = vmatpush1.msra.mxu0 %v3363
    %3365 = vmatprep.subr.mxu0 0.0
    %v3366 = vand.u32 %v2764, 4294901760
    %3367 = vmatpush1.msra.mxu0 %v3366
    %3368 = vmatprep.subr.mxu0 0.0
    %v3369 = vand.u32 %v2765, 4294901760
    %3370 = vmatpush1.msra.mxu0 %v3369
    %3371 = vmatprep.subr.mxu0 0.0
    %v3372 = vand.u32 %v2766, 4294901760
    %3373 = vmatpush1.msra.mxu0 %v3372
    %3374 = vmatprep.subr.mxu0 0.0
    %v3375 = vand.u32 %v2767, 4294901760
    %3376 = vmatpush1.msra.mxu0 %v3375
    %3377 = vmatprep.subr.mxu0 0.0
    %v3378 = vand.u32 %v2768, 4294901760
    %3379 = vmatpush1.msra.mxu0 %v3378
    %3380 = vmatprep.subr.mxu0 0.0
    %v3381 = vand.u32 %v2769, 4294901760
    %3382 = vmatpush1.msra.mxu0 %v3381
    %3383 = vmatprep.subr.mxu0 0.0
    %v3384 = vand.u32 %v2770, 4294901760
    %3385 = vmatpush1.msra.mxu0 %v3384
    %3386 = vmatprep.subr.mxu0 0.0
    %v3387 = vand.u32 %v2771, 4294901760
    %3388 = vmatpush1.msra.mxu0 %v3387
    %3389 = vmatprep.subr.mxu0 0.0
    %v3390 = vand.u32 %v2772, 4294901760
    %3391 = vmatpush1.msra.mxu0 %v3390
    %3392 = vmatprep.subr.mxu0 0.0
    %v3393 = vand.u32 %v2773, 4294901760
    %3394 = vmatpush1.msra.mxu0 %v3393
    %3395 = vmatprep.subr.mxu0 0.0
    %v3396 = vand.u32 %v2774, 4294901760
    %3397 = vmatpush1.msra.mxu0 %v3396
    %3398 = vmatprep.subr.mxu0 0.0
    %v3399 = vand.u32 %v2775, 4294901760
    %3400 = vmatpush1.msra.mxu0 %v3399
    %3401 = vmatprep.subr.mxu0 0.0
    %v3402 = vand.u32 %v2776, 4294901760
    %3403 = vmatpush1.msra.mxu0 %v3402
    %3404 = vmatprep.subr.mxu0 0.0
    %3405 = vmatpush1.msra.mxu0 0.0
    %3406 = vmatprep.subr.mxu0 0.0
    %3407 = vmatpush1.msra.mxu0 0.0
    %3408 = vmatprep.subr.mxu0 0.0
    %3409 = vmatpush1.msra.mxu0 0.0
    %3410 = vmatprep.subr.mxu0 0.0
    %3411 = vmatpush1.msra.mxu0 0.0
    %3412 = vmatprep.subr.mxu0 0.0
    %3413 = vmatpush1.msra.mxu0 0.0
    %3414 = vmatprep.subr.mxu0 0.0
    %3415 = vmatpush1.msra.mxu0 0.0
    %3416 = vmatprep.subr.mxu0 0.0
    %3417 = vmatpush1.msra.mxu0 0.0
    %3418 = vmatprep.subr.mxu0 0.0
    %3419 = vmatpush1.msra.mxu0 0.0
    %3420 = vmatprep.subr.mxu0 0.0
    %3421 = vmatpush1.msra.mxu0 0.0
    %3422 = vmatprep.subr.mxu0 0.0
    %3423 = vmatpush1.msra.mxu0 0.0
    %3424 = vmatprep.subr.mxu0 0.0
    %3425 = vmatpush1.msra.mxu0 0.0
    %3426 = vmatprep.subr.mxu0 0.0
    %3427 = vmatpush1.msra.mxu0 0.0
    %3428 = vmatprep.subr.mxu0 0.0
    %3429 = vmatpush1.msra.mxu0 0.0
    %3430 = vmatprep.subr.mxu0 0.0
    %3431 = vmatpush1.msra.mxu0 0.0
    %3432 = vmatprep.subr.mxu0 0.0
    %3433 = vmatpush1.msra.mxu0 0.0
    %3434 = vmatprep.subr.mxu0 0.0
    %3435 = vmatpush1.msra.mxu0 0.0
    %3436 = vmatprep.mubr.f32.mxu0 0.0
    %v3437 = vand.u32 %v2759, 4294901760
    %3438 = vmatmul.mubr.f32.gmra.mrb[0].mxu0 %v3437
    %v3439 = vpop.f32.mrb[0].mxu0
    %v3440 = vadd.f32 %v3353, %v3439
    %v3441 = vpop.f32.mrb[0].mxu0
    %3442 = vdwg.mxu0
    %v3443 = vmax.f32 %v3440, 0.0
    %v3444 = vlaneseq
    %v3445 = vshrl.u32 %v3444, 7
    %v3446 = vsub.s32 0, %v3445
    %v3447 = vrot.slane %v2795, %v3446
    %3448 = vmatprep.subr.mxu0 0.0
    %v3449 = vand.u32 %v2778, 4294901760
    %3450 = vmatpush1.msra.mxu0 %v3449
    %3451 = vmatprep.subr.mxu0 0.0
    %v3452 = vand.u32 %v2779, 4294901760
    %3453 = vmatpush1.msra.mxu0 %v3452
    %3454 = vmatprep.subr.mxu0 0.0
    %v3455 = vand.u32 %v2780, 4294901760
    %3456 = vmatpush1.msra.mxu0 %v3455
    %3457 = vmatprep.subr.mxu0 0.0
    %v3458 = vand.u32 %v2781, 4294901760
    %3459 = vmatpush1.msra.mxu0 %v3458
    %3460 = vmatprep.subr.mxu0 0.0
    %v3461 = vand.u32 %v2782, 4294901760
    %3462 = vmatpush1.msra.mxu0 %v3461
    %3463 = vmatprep.subr.mxu0 0.0
    %v3464 = vand.u32 %v2783, 4294901760
    %3465 = vmatpush1.msra.mxu0 %v3464
    %3466 = vmatprep.subr.mxu0 0.0
    %v3467 = vand.u32 %v2784, 4294901760
    %3468 = vmatpush1.msra.mxu0 %v3467
    %3469 = vmatprep.subr.mxu0 0.0
    %v3470 = vand.u32 %v2785, 4294901760
    %3471 = vmatpush1.msra.mxu0 %v3470
    %3472 = vmatprep.subr.mxu0 0.0
    %v3473 = vand.u32 %v2786, 4294901760
    %3474 = vmatpush1.msra.mxu0 %v3473
    %3475 = vmatprep.subr.mxu0 0.0
    %v3476 = vand.u32 %v2787, 4294901760
    %3477 = vmatpush1.msra.mxu0 %v3476
    %3478 = vmatprep.subr.mxu0 0.0
    %v3479 = vand.u32 %v2788, 4294901760
    %3480 = vmatpush1.msra.mxu0 %v3479
    %3481 = vmatprep.subr.mxu0 0.0
    %v3482 = vand.u32 %v2789, 4294901760
    %3483 = vmatpush1.msra.mxu0 %v3482
    %3484 = vmatprep.subr.mxu0 0.0
    %v3485 = vand.u32 %v2790, 4294901760
    %3486 = vmatpush1.msra.mxu0 %v3485
    %3487 = vmatprep.subr.mxu0 0.0
    %v3488 = vand.u32 %v2791, 4294901760
    %3489 = vmatpush1.msra.mxu0 %v3488
    %3490 = vmatprep.subr.mxu0 0.0
    %v3491 = vand.u32 %v2792, 4294901760
    %3492 = vmatpush1.msra.mxu0 %v3491
    %3493 = vmatprep.subr.mxu0 0.0
    %v3494 = vand.u32 %v2793, 4294901760
    %3495 = vmatpush1.msra.mxu0 %v3494
    %3496 = vmatprep.subr.mxu0 0.0
    %3497 = vmatpush1.msra.mxu0 0.0
    %3498 = vmatprep.subr.mxu0 0.0
    %3499 = vmatpush1.msra.mxu0 0.0
    %3500 = vmatprep.subr.mxu0 0.0
    %3501 = vmatpush1.msra.mxu0 0.0
    %3502 = vmatprep.subr.mxu0 0.0
    %3503 = vmatpush1.msra.mxu0 0.0
    %3504 = vmatprep.subr.mxu0 0.0
    %3505 = vmatpush1.msra.mxu0 0.0
    %3506 = vmatprep.subr.mxu0 0.0
    %3507 = vmatpush1.msra.mxu0 0.0
    %3508 = vmatprep.subr.mxu0 0.0
    %3509 = vmatpush1.msra.mxu0 0.0
    %3510 = vmatprep.subr.mxu0 0.0
    %3511 = vmatpush1.msra.mxu0 0.0
    %3512 = vmatprep.subr.mxu0 0.0
    %3513 = vmatpush1.msra.mxu0 0.0
    %3514 = vmatprep.subr.mxu0 0.0
    %3515 = vmatpush1.msra.mxu0 0.0
    %3516 = vmatprep.subr.mxu0 0.0
    %3517 = vmatpush1.msra.mxu0 0.0
    %3518 = vmatprep.subr.mxu0 0.0
    %3519 = vmatpush1.msra.mxu0 0.0
    %3520 = vmatprep.subr.mxu0 0.0
    %3521 = vmatpush1.msra.mxu0 0.0
    %3522 = vmatprep.subr.mxu0 0.0
    %3523 = vmatpush1.msra.mxu0 0.0
    %3524 = vmatprep.subr.mxu0 0.0
    %3525 = vmatpush1.msra.mxu0 0.0
    %3526 = vmatprep.subr.mxu0 0.0
    %3527 = vmatpush1.msra.mxu0 0.0
    %3528 = vmatprep.mubr.f32.mxu0 0.0
    %v3529 = vand.u32 %v3443, 4294901760
    %v3530 = vsub.f32 %v3443, %v3529
    %v3531 = vand.u32 %v3530, 4294901760
    %v3532 = vsub.f32 %v3530, %v3531
    %v3533 = vand.u32 %v3532, 4294901760
    %3534 = vmatmul.mubr.f32.gmra.mrb[0].mxu0 %v3533
    %v3535 = vpop.f32.mrb[0].mxu0
    %v3536 = vadd.f32 %v3447, %v3535
    %v3537 = vpop.f32.mrb[0].mxu0
    %3538 = vdwg.mxu0
    %3539 = vmatprep.subr.mxu0 0.0
    %v3540 = vand.u32 %v2778, 4294901760
    %v3541 = vsub.f32 %v2778, %v3540
    %v3542 = vand.u32 %v3541, 4294901760
    %v3543 = vsub.f32 %v3541, %v3542
    %v3544 = vand.u32 %v3543, 4294901760
    %3545 = vmatpush1.msra.mxu0 %v3544
    %3546 = vmatprep.subr.mxu0 0.0
    %v3547 = vand.u32 %v2779, 4294901760
    %v3548 = vsub.f32 %v2779, %v3547
    %v3549 = vand.u32 %v3548, 4294901760
    %v3550 = vsub.f32 %v3548, %v3549
    %v3551 = vand.u32 %v3550, 4294901760
    %3552 = vmatpush1.msra.mxu0 %v3551
    %3553 = vmatprep.subr.mxu0 0.0
    %v3554 = vand.u32 %v2780, 4294901760
    %v3555 = vsub.f32 %v2780, %v3554
    %v3556 = vand.u32 %v3555, 4294901760
    %v3557 = vsub.f32 %v3555, %v3556
    %v3558 = vand.u32 %v3557, 4294901760
    %3559 = vmatpush1.msra.mxu0 %v3558
    %3560 = vmatprep.subr.mxu0 0.0
    %v3561 = vand.u32 %v2781, 4294901760
    %v3562 = vsub.f32 %v2781, %v3561
    %v3563 = vand.u32 %v3562, 4294901760
    %v3564 = vsub.f32 %v3562, %v3563
    %v3565 = vand.u32 %v3564, 4294901760
    %3566 = vmatpush1.msra.mxu0 %v3565
    %3567 = vmatprep.subr.mxu0 0.0
    %v3568 = vand.u32 %v2782, 4294901760
    %v3569 = vsub.f32 %v2782, %v3568
    %v3570 = vand.u32 %v3569, 4294901760
    %v3571 = vsub.f32 %v3569, %v3570
    %v3572 = vand.u32 %v3571, 4294901760
    %3573 = vmatpush1.msra.mxu0 %v3572
    %3574 = vmatprep.subr.mxu0 0.0
    %v3575 = vand.u32 %v2783, 4294901760
    %v3576 = vsub.f32 %v2783, %v3575
    %v3577 = vand.u32 %v3576, 4294901760
    %v3578 = vsub.f32 %v3576, %v3577
    %v3579 = vand.u32 %v3578, 4294901760
    %3580 = vmatpush1.msra.mxu0 %v3579
    %3581 = vmatprep.subr.mxu0 0.0
    %v3582 = vand.u32 %v2784, 4294901760
    %v3583 = vsub.f32 %v2784, %v3582
    %v3584 = vand.u32 %v3583, 4294901760
    %v3585 = vsub.f32 %v3583, %v3584
    %v3586 = vand.u32 %v3585, 4294901760
    %3587 = vmatpush1.msra.mxu0 %v3586
    %3588 = vmatprep.subr.mxu0 0.0
    %v3589 = vand.u32 %v2785, 4294901760
    %v3590 = vsub.f32 %v2785, %v3589
    %v3591 = vand.u32 %v3590, 4294901760
    %v3592 = vsub.f32 %v3590, %v3591
    %v3593 = vand.u32 %v3592, 4294901760
    %3594 = vmatpush1.msra.mxu0 %v3593
    %3595 = vmatprep.subr.mxu0 0.0
    %v3596 = vand.u32 %v2786, 4294901760
    %v3597 = vsub.f32 %v2786, %v3596
    %v3598 = vand.u32 %v3597, 4294901760
    %v3599 = vsub.f32 %v3597, %v3598
    %v3600 = vand.u32 %v3599, 4294901760
    %3601 = vmatpush1.msra.mxu0 %v3600
    %3602 = vmatprep.subr.mxu0 0.0
    %v3603 = vand.u32 %v2787, 4294901760
    %v3604 = vsub.f32 %v2787, %v3603
    %v3605 = vand.u32 %v3604, 4294901760
    %v3606 = vsub.f32 %v3604, %v3605
    %v3607 = vand.u32 %v3606, 4294901760
    %3608 = vmatpush1.msra.mxu0 %v3607
    %3609 = vmatprep.subr.mxu0 0.0
    %v3610 = vand.u32 %v2788, 4294901760
    %v3611 = vsub.f32 %v2788, %v3610
    %v3612 = vand.u32 %v3611, 4294901760
    %v3613 = vsub.f32 %v3611, %v3612
    %v3614 = vand.u32 %v3613, 4294901760
    %3615 = vmatpush1.msra.mxu0 %v3614
    %3616 = vmatprep.subr.mxu0 0.0
    %v3617 = vand.u32 %v2789, 4294901760
    %v3618 = vsub.f32 %v2789, %v3617
    %v3619 = vand.u32 %v3618, 4294901760
    %v3620 = vsub.f32 %v3618, %v3619
    %v3621 = vand.u32 %v3620, 4294901760
    %3622 = vmatpush1.msra.mxu0 %v3621
    %3623 = vmatprep.subr.mxu0 0.0
    %v3624 = vand.u32 %v2790, 4294901760
    %v3625 = vsub.f32 %v2790, %v3624
    %v3626 = vand.u32 %v3625, 4294901760
    %v3627 = vsub.f32 %v3625, %v3626
    %v3628 = vand.u32 %v3627, 4294901760
    %3629 = vmatpush1.msra.mxu0 %v3628
    %3630 = vmatprep.subr.mxu0 0.0
    %v3631 = vand.u32 %v2791, 4294901760
    %v3632 = vsub.f32 %v2791, %v3631
    %v3633 = vand.u32 %v3632, 4294901760
    %v3634 = vsub.f32 %v3632, %v3633
    %v3635 = vand.u32 %v3634, 4294901760
    %3636 = vmatpush1.msra.mxu0 %v3635
    %3637 = vmatprep.subr.mxu0 0.0
    %v3638 = vand.u32 %v2792, 4294901760
    %v3639 = vsub.f32 %v2792, %v3638
    %v3640 = vand.u32 %v3639, 4294901760
    %v3641 = vsub.f32 %v3639, %v3640
    %v3642 = vand.u32 %v3641, 4294901760
    %3643 = vmatpush1.msra.mxu0 %v3642
    %3644 = vmatprep.subr.mxu0 0.0
    %v3645 = vand.u32 %v2793, 4294901760
    %v3646 = vsub.f32 %v2793, %v3645
    %v3647 = vand.u32 %v3646, 4294901760
    %v3648 = vsub.f32 %v3646, %v3647
    %v3649 = vand.u32 %v3648, 4294901760
    %3650 = vmatpush1.msra.mxu0 %v3649
    %3651 = vmatprep.subr.mxu0 0.0
    %3652 = vmatpush1.msra.mxu0 0.0
    %3653 = vmatprep.subr.mxu0 0.0
    %3654 = vmatpush1.msra.mxu0 0.0
    %3655 = vmatprep.subr.mxu0 0.0
    %3656 = vmatpush1.msra.mxu0 0.0
    %3657 = vmatprep.subr.mxu0 0.0
    %3658 = vmatpush1.msra.mxu0 0.0
    %3659 = vmatprep.subr.mxu0 0.0
    %3660 = vmatpush1.msra.mxu0 0.0
    %3661 = vmatprep.subr.mxu0 0.0
    %3662 = vmatpush1.msra.mxu0 0.0
    %3663 = vmatprep.subr.mxu0 0.0
    %3664 = vmatpush1.msra.mxu0 0.0
    %3665 = vmatprep.subr.mxu0 0.0
    %3666 = vmatpush1.msra.mxu0 0.0
    %3667 = vmatprep.subr.mxu0 0.0
    %3668 = vmatpush1.msra.mxu0 0.0
    %3669 = vmatprep.subr.mxu0 0.0
    %3670 = vmatpush1.msra.mxu0 0.0
    %3671 = vmatprep.subr.mxu0 0.0
    %3672 = vmatpush1.msra.mxu0 0.0
    %3673 = vmatprep.subr.mxu0 0.0
    %3674 = vmatpush1.msra.mxu0 0.0
    %3675 = vmatprep.subr.mxu0 0.0
    %3676 = vmatpush1.msra.mxu0 0.0
    %3677 = vmatprep.subr.mxu0 0.0
    %3678 = vmatpush1.msra.mxu0 0.0
    %3679 = vmatprep.subr.mxu0 0.0
    %3680 = vmatpush1.msra.mxu0 0.0
    %3681 = vmatprep.subr.mxu0 0.0
    %3682 = vmatpush1.msra.mxu0 0.0
    %3683 = vmatprep.mubr.f32.mxu0 0.0
    %v3684 = vand.u32 %v3443, 4294901760
    %3685 = vmatmul.mubr.f32.gmra.mrb[0].mxu0 %v3684
    %v3686 = vpop.f32.mrb[0].mxu0
    %v3687 = vadd.f32 %v3536, %v3686
    %v3688 = vpop.f32.mrb[0].mxu0
    %3689 = vdwg.mxu0
    %3690 = vmatprep.subr.mxu0 0.0
    %v3691 = vand.u32 %v2778, 4294901760
    %v3692 = vsub.f32 %v2778, %v3691
    %3693 = vmatpush1.msra.mxu0 %v3692
    %3694 = vmatprep.subr.mxu0 0.0
    %v3695 = vand.u32 %v2779, 4294901760
    %v3696 = vsub.f32 %v2779, %v3695
    %3697 = vmatpush1.msra.mxu0 %v3696
    %3698 = vmatprep.subr.mxu0 0.0
    %v3699 = vand.u32 %v2780, 4294901760
    %v3700 = vsub.f32 %v2780, %v3699
    %3701 = vmatpush1.msra.mxu0 %v3700
    %3702 = vmatprep.subr.mxu0 0.0
    %v3703 = vand.u32 %v2781, 4294901760
    %v3704 = vsub.f32 %v2781, %v3703
    %3705 = vmatpush1.msra.mxu0 %v3704
    %3706 = vmatprep.subr.mxu0 0.0
    %v3707 = vand.u32 %v2782, 4294901760
    %v3708 = vsub.f32 %v2782, %v3707
    %3709 = vmatpush1.msra.mxu0 %v3708
    %3710 = vmatprep.subr.mxu0 0.0
    %v3711 = vand.u32 %v2783, 4294901760
    %v3712 = vsub.f32 %v2783, %v3711
    %3713 = vmatpush1.msra.mxu0 %v3712
    %3714 = vmatprep.subr.mxu0 0.0
    %v3715 = vand.u32 %v2784, 4294901760
    %v3716 = vsub.f32 %v2784, %v3715
    %3717 = vmatpush1.msra.mxu0 %v3716
    %3718 = vmatprep.subr.mxu0 0.0
    %v3719 = vand.u32 %v2785, 4294901760
    %v3720 = vsub.f32 %v2785, %v3719
    %3721 = vmatpush1.msra.mxu0 %v3720
    %3722 = vmatprep.subr.mxu0 0.0
    %v3723 = vand.u32 %v2786, 4294901760
    %v3724 = vsub.f32 %v2786, %v3723
    %3725 = vmatpush1.msra.mxu0 %v3724
    %3726 = vmatprep.subr.mxu0 0.0
    %v3727 = vand.u32 %v2787, 4294901760
    %v3728 = vsub.f32 %v2787, %v3727
    %3729 = vmatpush1.msra.mxu0 %v3728
    %3730 = vmatprep.subr.mxu0 0.0
    %v3731 = vand.u32 %v2788, 4294901760
    %v3732 = vsub.f32 %v2788, %v3731
    %3733 = vmatpush1.msra.mxu0 %v3732
    %3734 = vmatprep.subr.mxu0 0.0
    %v3735 = vand.u32 %v2789, 4294901760
    %v3736 = vsub.f32 %v2789, %v3735
    %3737 = vmatpush1.msra.mxu0 %v3736
    %3738 = vmatprep.subr.mxu0 0.0
    %v3739 = vand.u32 %v2790, 4294901760
    %v3740 = vsub.f32 %v2790, %v3739
    %3741 = vmatpush1.msra.mxu0 %v3740
    %3742 = vmatprep.subr.mxu0 0.0
    %v3743 = vand.u32 %v2791, 4294901760
    %v3744 = vsub.f32 %v2791, %v3743
    %3745 = vmatpush1.msra.mxu0 %v3744
    %3746 = vmatprep.subr.mxu0 0.0
    %v3747 = vand.u32 %v2792, 4294901760
    %v3748 = vsub.f32 %v2792, %v3747
    %3749 = vmatpush1.msra.mxu0 %v3748
    %3750 = vmatprep.subr.mxu0 0.0
    %v3751 = vand.u32 %v2793, 4294901760
    %v3752 = vsub.f32 %v2793, %v3751
    %3753 = vmatpush1.msra.mxu0 %v3752
    %3754 = vmatprep.subr.mxu0 0.0
    %3755 = vmatpush1.msra.mxu0 0.0
    %3756 = vmatprep.subr.mxu0 0.0
    %3757 = vmatpush1.msra.mxu0 0.0
    %3758 = vmatprep.subr.mxu0 0.0
    %3759 = vmatpush1.msra.mxu0 0.0
    %3760 = vmatprep.subr.mxu0 0.0
    %3761 = vmatpush1.msra.mxu0 0.0
    %3762 = vmatprep.subr.mxu0 0.0
    %3763 = vmatpush1.msra.mxu0 0.0
    %3764 = vmatprep.subr.mxu0 0.0
    %3765 = vmatpush1.msra.mxu0 0.0
    %3766 = vmatprep.subr.mxu0 0.0
    %3767 = vmatpush1.msra.mxu0 0.0
    %3768 = vmatprep.subr.mxu0 0.0
    %3769 = vmatpush1.msra.mxu0 0.0
    %3770 = vmatprep.subr.mxu0 0.0
    %3771 = vmatpush1.msra.mxu0 0.0
    %3772 = vmatprep.subr.mxu0 0.0
    %3773 = vmatpush1.msra.mxu0 0.0
    %3774 = vmatprep.subr.mxu0 0.0
    %3775 = vmatpush1.msra.mxu0 0.0
    %3776 = vmatprep.subr.mxu0 0.0
    %3777 = vmatpush1.msra.mxu0 0.0
    %3778 = vmatprep.subr.mxu0 0.0
    %3779 = vmatpush1.msra.mxu0 0.0
    %3780 = vmatprep.subr.mxu0 0.0
    %3781 = vmatpush1.msra.mxu0 0.0
    %3782 = vmatprep.subr.mxu0 0.0
    %3783 = vmatpush1.msra.mxu0 0.0
    %3784 = vmatprep.subr.mxu0 0.0
    %3785 = vmatpush1.msra.mxu0 0.0
    %3786 = vmatprep.mubr.f32.mxu0 0.0
    %v3787 = vand.u32 %v3443, 4294901760
    %v3788 = vsub.f32 %v3443, %v3787
    %3789 = vmatmul.mubr.f32.gmra.mrb[0].mxu0 %v3788
    %v3790 = vpop.f32.mrb[0].mxu0
    %v3791 = vadd.f32 %v3687, %v3790
    %v3792 = vpop.f32.mrb[0].mxu0
    %3793 = vdwg.mxu0
    %3794 = vmatprep.subr.mxu0 0.0
    %v3795 = vand.u32 %v2778, 4294901760
    %3796 = vmatpush1.msra.mxu0 %v3795
    %3797 = vmatprep.subr.mxu0 0.0
    %v3798 = vand.u32 %v2779, 4294901760
    %3799 = vmatpush1.msra.mxu0 %v3798
    %3800 = vmatprep.subr.mxu0 0.0
    %v3801 = vand.u32 %v2780, 4294901760
    %3802 = vmatpush1.msra.mxu0 %v3801
    %3803 = vmatprep.subr.mxu0 0.0
    %v3804 = vand.u32 %v2781, 4294901760
    %3805 = vmatpush1.msra.mxu0 %v3804
    %3806 = vmatprep.subr.mxu0 0.0
    %v3807 = vand.u32 %v2782, 4294901760
    %3808 = vmatpush1.msra.mxu0 %v3807
    %3809 = vmatprep.subr.mxu0 0.0
    %v3810 = vand.u32 %v2783, 4294901760
    %3811 = vmatpush1.msra.mxu0 %v3810
    %3812 = vmatprep.subr.mxu0 0.0
    %v3813 = vand.u32 %v2784, 4294901760
    %3814 = vmatpush1.msra.mxu0 %v3813
    %3815 = vmatprep.subr.mxu0 0.0
    %v3816 = vand.u32 %v2785, 4294901760
    %3817 = vmatpush1.msra.mxu0 %v3816
    %3818 = vmatprep.subr.mxu0 0.0
    %v3819 = vand.u32 %v2786, 4294901760
    %3820 = vmatpush1.msra.mxu0 %v3819
    %3821 = vmatprep.subr.mxu0 0.0
    %v3822 = vand.u32 %v2787, 4294901760
    %3823 = vmatpush1.msra.mxu0 %v3822
    %3824 = vmatprep.subr.mxu0 0.0
    %v3825 = vand.u32 %v2788, 4294901760
    %3826 = vmatpush1.msra.mxu0 %v3825
    %3827 = vmatprep.subr.mxu0 0.0
    %v3828 = vand.u32 %v2789, 4294901760
    %3829 = vmatpush1.msra.mxu0 %v3828
    %3830 = vmatprep.subr.mxu0 0.0
    %v3831 = vand.u32 %v2790, 4294901760
    %3832 = vmatpush1.msra.mxu0 %v3831
    %3833 = vmatprep.subr.mxu0 0.0
    %v3834 = vand.u32 %v2791, 4294901760
    %3835 = vmatpush1.msra.mxu0 %v3834
    %3836 = vmatprep.subr.mxu0 0.0
    %v3837 = vand.u32 %v2792, 4294901760
    %3838 = vmatpush1.msra.mxu0 %v3837
    %3839 = vmatprep.subr.mxu0 0.0
    %v3840 = vand.u32 %v2793, 4294901760
    %3841 = vmatpush1.msra.mxu0 %v3840
    %3842 = vmatprep.subr.mxu0 0.0
    %3843 = vmatpush1.msra.mxu0 0.0
    %3844 = vmatprep.subr.mxu0 0.0
    %3845 = vmatpush1.msra.mxu0 0.0
    %3846 = vmatprep.subr.mxu0 0.0
    %3847 = vmatpush1.msra.mxu0 0.0
    %3848 = vmatprep.subr.mxu0 0.0
    %3849 = vmatpush1.msra.mxu0 0.0
    %3850 = vmatprep.subr.mxu0 0.0
    %3851 = vmatpush1.msra.mxu0 0.0
    %3852 = vmatprep.subr.mxu0 0.0
    %3853 = vmatpush1.msra.mxu0 0.0
    %3854 = vmatprep.subr.mxu0 0.0
    %3855 = vmatpush1.msra.mxu0 0.0
    %3856 = vmatprep.subr.mxu0 0.0
    %3857 = vmatpush1.msra.mxu0 0.0
    %3858 = vmatprep.subr.mxu0 0.0
    %3859 = vmatpush1.msra.mxu0 0.0
    %3860 = vmatprep.subr.mxu0 0.0
    %3861 = vmatpush1.msra.mxu0 0.0
    %3862 = vmatprep.subr.mxu0 0.0
    %3863 = vmatpush1.msra.mxu0 0.0
    %3864 = vmatprep.subr.mxu0 0.0
    %3865 = vmatpush1.msra.mxu0 0.0
    %3866 = vmatprep.subr.mxu0 0.0
    %3867 = vmatpush1.msra.mxu0 0.0
    %3868 = vmatprep.subr.mxu0 0.0
    %3869 = vmatpush1.msra.mxu0 0.0
    %3870 = vmatprep.subr.mxu0 0.0
    %3871 = vmatpush1.msra.mxu0 0.0
    %3872 = vmatprep.subr.mxu0 0.0
    %3873 = vmatpush1.msra.mxu0 0.0
    %3874 = vmatprep.mubr.f32.mxu0 0.0
    %v3875 = vand.u32 %v3443, 4294901760
    %v3876 = vsub.f32 %v3443, %v3875
    %v3877 = vand.u32 %v3876, 4294901760
    %3878 = vmatmul.mubr.f32.gmra.mrb[0].mxu0 %v3877
    %v3879 = vpop.f32.mrb[0].mxu0
    %v3880 = vadd.f32 %v3791, %v3879
    %v3881 = vpop.f32.mrb[0].mxu0
    %3882 = vdwg.mxu0
    %3883 = vmatprep.subr.mxu0 0.0
    %v3884 = vand.u32 %v2778, 4294901760
    %v3885 = vsub.f32 %v2778, %v3884
    %v3886 = vand.u32 %v3885, 4294901760
    %3887 = vmatpush1.msra.mxu0 %v3886
    %3888 = vmatprep.subr.mxu0 0.0
    %v3889 = vand.u32 %v2779, 4294901760
    %v3890 = vsub.f32 %v2779, %v3889
    %v3891 = vand.u32 %v3890, 4294901760
    %3892 = vmatpush1.msra.mxu0 %v3891
    %3893 = vmatprep.subr.mxu0 0.0
    %v3894 = vand.u32 %v2780, 4294901760
    %v3895 = vsub.f32 %v2780, %v3894
    %v3896 = vand.u32 %v3895, 4294901760
    %3897 = vmatpush1.msra.mxu0 %v3896
    %3898 = vmatprep.subr.mxu0 0.0
    %v3899 = vand.u32 %v2781, 4294901760
    %v3900 = vsub.f32 %v2781, %v3899
    %v3901 = vand.u32 %v3900, 4294901760
    %3902 = vmatpush1.msra.mxu0 %v3901
    %3903 = vmatprep.subr.mxu0 0.0
    %v3904 = vand.u32 %v2782, 4294901760
    %v3905 = vsub.f32 %v2782, %v3904
    %v3906 = vand.u32 %v3905, 4294901760
    %3907 = vmatpush1.msra.mxu0 %v3906
    %3908 = vmatprep.subr.mxu0 0.0
    %v3909 = vand.u32 %v2783, 4294901760
    %v3910 = vsub.f32 %v2783, %v3909
    %v3911 = vand.u32 %v3910, 4294901760
    %3912 = vmatpush1.msra.mxu0 %v3911
    %3913 = vmatprep.subr.mxu0 0.0
    %v3914 = vand.u32 %v2784, 4294901760
    %v3915 = vsub.f32 %v2784, %v3914
    %v3916 = vand.u32 %v3915, 4294901760
    %3917 = vmatpush1.msra.mxu0 %v3916
    %3918 = vmatprep.subr.mxu0 0.0
    %v3919 = vand.u32 %v2785, 4294901760
    %v3920 = vsub.f32 %v2785, %v3919
    %v3921 = vand.u32 %v3920, 4294901760
    %3922 = vmatpush1.msra.mxu0 %v3921
    %3923 = vmatprep.subr.mxu0 0.0
    %v3924 = vand.u32 %v2786, 4294901760
    %v3925 = vsub.f32 %v2786, %v3924
    %v3926 = vand.u32 %v3925, 4294901760
    %3927 = vmatpush1.msra.mxu0 %v3926
    %3928 = vmatprep.subr.mxu0 0.0
    %v3929 = vand.u32 %v2787, 4294901760
    %v3930 = vsub.f32 %v2787, %v3929
    %v3931 = vand.u32 %v3930, 4294901760
    %3932 = vmatpush1.msra.mxu0 %v3931
    %3933 = vmatprep.subr.mxu0 0.0
    %v3934 = vand.u32 %v2788, 4294901760
    %v3935 = vsub.f32 %v2788, %v3934
    %v3936 = vand.u32 %v3935, 4294901760
    %3937 = vmatpush1.msra.mxu0 %v3936
    %3938 = vmatprep.subr.mxu0 0.0
    %v3939 = vand.u32 %v2789, 4294901760
    %v3940 = vsub.f32 %v2789, %v3939
    %v3941 = vand.u32 %v3940, 4294901760
    %3942 = vmatpush1.msra.mxu0 %v3941
    %3943 = vmatprep.subr.mxu0 0.0
    %v3944 = vand.u32 %v2790, 4294901760
    %v3945 = vsub.f32 %v2790, %v3944
    %v3946 = vand.u32 %v3945, 4294901760
    %3947 = vmatpush1.msra.mxu0 %v3946
    %3948 = vmatprep.subr.mxu0 0.0
    %v3949 = vand.u32 %v2791, 4294901760
    %v3950 = vsub.f32 %v2791, %v3949
    %v3951 = vand.u32 %v3950, 4294901760
    %3952 = vmatpush1.msra.mxu0 %v3951
    %3953 = vmatprep.subr.mxu0 0.0
    %v3954 = vand.u32 %v2792, 4294901760
    %v3955 = vsub.f32 %v2792, %v3954
    %v3956 = vand.u32 %v3955, 4294901760
    %3957 = vmatpush1.msra.mxu0 %v3956
    %3958 = vmatprep.subr.mxu0 0.0
    %v3959 = vand.u32 %v2793, 4294901760
    %v3960 = vsub.f32 %v2793, %v3959
    %v3961 = vand.u32 %v3960, 4294901760
    %3962 = vmatpush1.msra.mxu0 %v3961
    %3963 = vmatprep.subr.mxu0 0.0
    %3964 = vmatpush1.msra.mxu0 0.0
    %3965 = vmatprep.subr.mxu0 0.0
    %3966 = vmatpush1.msra.mxu0 0.0
    %3967 = vmatprep.subr.mxu0 0.0
    %3968 = vmatpush1.msra.mxu0 0.0
    %3969 = vmatprep.subr.mxu0 0.0
    %3970 = vmatpush1.msra.mxu0 0.0
    %3971 = vmatprep.subr.mxu0 0.0
    %3972 = vmatpush1.msra.mxu0 0.0
    %3973 = vmatprep.subr.mxu0 0.0
    %3974 = vmatpush1.msra.mxu0 0.0
    %3975 = vmatprep.subr.mxu0 0.0
    %3976 = vmatpush1.msra.mxu0 0.0
    %3977 = vmatprep.subr.mxu0 0.0
    %3978 = vmatpush1.msra.mxu0 0.0
    %3979 = vmatprep.subr.mxu0 0.0
    %3980 = vmatpush1.msra.mxu0 0.0
    %3981 = vmatprep.subr.mxu0 0.0
    %3982 = vmatpush1.msra.mxu0 0.0
    %3983 = vmatprep.subr.mxu0 0.0
    %3984 = vmatpush1.msra.mxu0 0.0
    %3985 = vmatprep.subr.mxu0 0.0
    %3986 = vmatpush1.msra.mxu0 0.0
    %3987 = vmatprep.subr.mxu0 0.0
    %3988 = vmatpush1.msra.mxu0 0.0
    %3989 = vmatprep.subr.mxu0 0.0
    %3990 = vmatpush1.msra.mxu0 0.0
    %3991 = vmatprep.subr.mxu0 0.0
    %3992 = vmatpush1.msra.mxu0 0.0
    %3993 = vmatprep.subr.mxu0 0.0
    %3994 = vmatpush1.msra.mxu0 0.0
    %3995 = vmatprep.mubr.f32.mxu0 0.0
    %v3996 = vand.u32 %v3443, 4294901760
    %3997 = vmatmul.mubr.f32.gmra.mrb[0].mxu0 %v3996
    %v3998 = vpop.f32.mrb[0].mxu0
    %v3999 = vadd.f32 %v3880, %v3998
    %v4000 = vpop.f32.mrb[0].mxu0
    %4001 = vdwg.mxu0
    %4002 = vmatprep.subr.mxu0 0.0
    %v4003 = vand.u32 %v2778, 4294901760
    %4004 = vmatpush1.msra.mxu0 %v4003
    %4005 = vmatprep.subr.mxu0 0.0
    %v4006 = vand.u32 %v2779, 4294901760
    %4007 = vmatpush1.msra.mxu0 %v4006
    %4008 = vmatprep.subr.mxu0 0.0
    %v4009 = vand.u32 %v2780, 4294901760
    %4010 = vmatpush1.msra.mxu0 %v4009
    %4011 = vmatprep.subr.mxu0 0.0
    %v4012 = vand.u32 %v2781, 4294901760
    %4013 = vmatpush1.msra.mxu0 %v4012
    %4014 = vmatprep.subr.mxu0 0.0
    %v4015 = vand.u32 %v2782, 4294901760
    %4016 = vmatpush1.msra.mxu0 %v4015
    %4017 = vmatprep.subr.mxu0 0.0
    %v4018 = vand.u32 %v2783, 4294901760
    %4019 = vmatpush1.msra.mxu0 %v4018
    %4020 = vmatprep.subr.mxu0 0.0
    %v4021 = vand.u32 %v2784, 4294901760
    %4022 = vmatpush1.msra.mxu0 %v4021
    %4023 = vmatprep.subr.mxu0 0.0
    %v4024 = vand.u32 %v2785, 4294901760
    %4025 = vmatpush1.msra.mxu0 %v4024
    %4026 = vmatprep.subr.mxu0 0.0
    %v4027 = vand.u32 %v2786, 4294901760
    %4028 = vmatpush1.msra.mxu0 %v4027
    %4029 = vmatprep.subr.mxu0 0.0
    %v4030 = vand.u32 %v2787, 4294901760
    %4031 = vmatpush1.msra.mxu0 %v4030
    %4032 = vmatprep.subr.mxu0 0.0
    %v4033 = vand.u32 %v2788, 4294901760
    %4034 = vmatpush1.msra.mxu0 %v4033
    %4035 = vmatprep.subr.mxu0 0.0
    %v4036 = vand.u32 %v2789, 4294901760
    %4037 = vmatpush1.msra.mxu0 %v4036
    %4038 = vmatprep.subr.mxu0 0.0
    %v4039 = vand.u32 %v2790, 4294901760
    %4040 = vmatpush1.msra.mxu0 %v4039
    %4041 = vmatprep.subr.mxu0 0.0
    %v4042 = vand.u32 %v2791, 4294901760
    %4043 = vmatpush1.msra.mxu0 %v4042
    %4044 = vmatprep.subr.mxu0 0.0
    %v4045 = vand.u32 %v2792, 4294901760
    %4046 = vmatpush1.msra.mxu0 %v4045
    %4047 = vmatprep.subr.mxu0 0.0
    %v4048 = vand.u32 %v2793, 4294901760
    %4049 = vmatpush1.msra.mxu0 %v4048
    %4050 = vmatprep.subr.mxu0 0.0
    %4051 = vmatpush1.msra.mxu0 0.0
    %4052 = vmatprep.subr.mxu0 0.0
    %4053 = vmatpush1.msra.mxu0 0.0
    %4054 = vmatprep.subr.mxu0 0.0
    %4055 = vmatpush1.msra.mxu0 0.0
    %4056 = vmatprep.subr.mxu0 0.0
    %4057 = vmatpush1.msra.mxu0 0.0
    %4058 = vmatprep.subr.mxu0 0.0
    %4059 = vmatpush1.msra.mxu0 0.0
    %4060 = vmatprep.subr.mxu0 0.0
    %4061 = vmatpush1.msra.mxu0 0.0
    %4062 = vmatprep.subr.mxu0 0.0
    %4063 = vmatpush1.msra.mxu0 0.0
    %4064 = vmatprep.subr.mxu0 0.0
    %4065 = vmatpush1.msra.mxu0 0.0
    %4066 = vmatprep.subr.mxu0 0.0
    %4067 = vmatpush1.msra.mxu0 0.0
    %4068 = vmatprep.subr.mxu0 0.0
    %4069 = vmatpush1.msra.mxu0 0.0
    %4070 = vmatprep.subr.mxu0 0.0
    %4071 = vmatpush1.msra.mxu0 0.0
    %4072 = vmatprep.subr.mxu0 0.0
    %4073 = vmatpush1.msra.mxu0 0.0
    %4074 = vmatprep.subr.mxu0 0.0
    %4075 = vmatpush1.msra.mxu0 0.0
    %4076 = vmatprep.subr.mxu0 0.0
    %4077 = vmatpush1.msra.mxu0 0.0
    %4078 = vmatprep.subr.mxu0 0.0
    %4079 = vmatpush1.msra.mxu0 0.0
    %4080 = vmatprep.subr.mxu0 0.0
    %4081 = vmatpush1.msra.mxu0 0.0
    %4082 = vmatprep.mubr.f32.mxu0 0.0
    %v4083 = vand.u32 %v3443, 4294901760
    %4084 = vmatmul.mubr.f32.gmra.mrb[0].mxu0 %v4083
    %v4085 = vpop.f32.mrb[0].mxu0
    %v4086 = vadd.f32 %v3999, %v4085
    %v4087 = vpop.f32.mrb[0].mxu0
    %4088 = vdwg.mxu0
    %v4089 = vrot.slane %v4086, 4
    %v4090 = vadd.f32 %v4086, %v4089
    %v4091 = vrot.slane %v4090, 2
    %v4092 = vadd.f32 %v4090, %v4091
    %v4093 = vrot.slane %v4092, 1
    %v4094 = vadd.f32 %v4092, %v4093
    %v4095 = vmul.f32 %v4086, %v4086
    %v4096 = vrot.slane %v4095, 4
    %v4097 = vadd.f32 %v4095, %v4096
    %v4098 = vrot.slane %v4097, 2
    %v4099 = vadd.f32 %v4097, %v4098
    %v4100 = vrot.slane %v4099, 1
    %v4101 = vadd.f32 %v4099, %v4100
    %v4102 = vmul.f32 %v4094, 0.125
    %v4103 = vmul.f32 %v4101, 0.125
    %v4104 = vmul.f32 %v4102, %v4102
    %v4105 = vsub.f32 %v4103, %v4104
    %v4106 = vmax.f32 %v4105, 0.0
    %v4107 = vsub.f32 %v4086, %v4102
    %v4108 = vadd.f32 %v4106, 1e-05
    %v4109 = vrsqrt.pop %v4108
    %v4110 = vmul.f32 %v4107, %v4109
    %v4111 = vlaneseq
    %v4112 = vshrl.u32 %v4111, 7
    %v4113 = vsub.s32 0, %v4112
    %v4114 = vrot.slane %v2796, %v4113
    %v4115 = vmul.f32 %v4110, %v4114
    %v4116 = vlaneseq
    %v4117 = vshrl.u32 %v4116, 7
    %v4118 = vsub.s32 0, %v4117
    %v4119 = vrot.slane %v2797, %v4118
    %v4120 = vadd.f32 %v4115, %v4119
    %v4121 = vadd.f32 %v1391, %v4120
    %s4122 = scalar_lea.vmem %s3, 16
    %v4123 = vld [vmem:[%s4122] sm:$0xff]
    %v4124 = vmul.f32 %v4123, 0.05
    %v4125 = vadd.f32 %v4121, %v4124
    %s4126 = scalar_lea.vmem [#allocation2], 768
    %v4127 = vld [vmem:[%s4126] sm:$0xff]
    %v4128 = vld [vmem:[%s4126 + $0x8] sm:$0xff]
    %v4129 = vld [vmem:[%s4126 + $0x10] sm:$0xff]
    %v4130 = vld [vmem:[%s4126 + $0x18] sm:$0xff]
    %v4131 = vld [vmem:[%s4126 + $0x20] sm:$0xff]
    %v4132 = vld [vmem:[%s4126 + $0x28] sm:$0xff]
    %v4133 = vld [vmem:[%s4126 + $0x30] sm:$0xff]
    %v4134 = vld [vmem:[%s4126 + $0x38] sm:$0xff]
    %v4135 = vld [vmem:[%s4126 + $0x40] sm:$0xff]
    %v4136 = vld [vmem:[%s4126 + $0x48] sm:$0xff]
    %v4137 = vld [vmem:[%s4126 + $0x50] sm:$0xff]
    %v4138 = vld [vmem:[%s4126 + $0x58] sm:$0xff]
    %v4139 = vld [vmem:[%s4126 + $0x60] sm:$0xff]
    %v4140 = vld [vmem:[%s4126 + $0x68] sm:$0xff]
    %v4141 = vld [vmem:[%s4126 + $0x70] sm:$0xff]
    %v4142 = vld [vmem:[%s4126 + $0x78] sm:$0xff]
    %s4143 = scalar_lea.vmem [#allocation2], 896
    %v4144 = vld [vmem:[%s4143] sm:$0xff]
    %v4145 = vld [vmem:[%s4143 + $0x8] sm:$0xff]
    %v4146 = vld [vmem:[%s4143 + $0x10] sm:$0xff]
    %v4147 = vld [vmem:[%s4143 + $0x18] sm:$0xff]
    %v4148 = vld [vmem:[%s4143 + $0x20] sm:$0xff]
    %v4149 = vld [vmem:[%s4143 + $0x28] sm:$0xff]
    %v4150 = vld [vmem:[%s4143 + $0x30] sm:$0xff]
    %v4151 = vld [vmem:[%s4143 + $0x38] sm:$0xff]
    %v4152 = vld [vmem:[%s4143 + $0x40] sm:$0xff]
    %v4153 = vld [vmem:[%s4143 + $0x48] sm:$0xff]
    %v4154 = vld [vmem:[%s4143 + $0x50] sm:$0xff]
    %v4155 = vld [vmem:[%s4143 + $0x58] sm:$0xff]
    %v4156 = vld [vmem:[%s4143 + $0x60] sm:$0xff]
    %v4157 = vld [vmem:[%s4143 + $0x68] sm:$0xff]
    %v4158 = vld [vmem:[%s4143 + $0x70] sm:$0xff]
    %v4159 = vld [vmem:[%s4143 + $0x78] sm:$0xff]
    %v4160 = vld [vmem:[%s2 + $0xc] sm:$0x1]
    %v4161 = vld [vmem:[%s2 + $0xd] sm:$0x1]
    %v4162 = vld [vmem:[%s2 + $0xe] sm:$0x1]
    %v4163 = vld [vmem:[%s2 + $0xf] sm:$0x1]
    %v4164 = vlaneseq
    %v4165 = vshrl.u32 %v4164, 7
    %v4166 = vsub.s32 0, %v4165
    %v4167 = vrot.slane %v4160, %v4166
    %4168 = vmatprep.subr.mxu0 0.0
    %v4169 = vand.u32 %v4127, 4294901760
    %4170 = vmatpush1.msra.mxu0 %v4169
    %4171 = vmatprep.subr.mxu0 0.0
    %v4172 = vand.u32 %v4128, 4294901760
    %4173 = vmatpush1.msra.mxu0 %v4172
    %4174 = vmatprep.subr.mxu0 0.0
    %v4175 = vand.u32 %v4129, 4294901760
    %4176 = vmatpush1.msra.mxu0 %v4175
    %4177 = vmatprep.subr.mxu0 0.0
    %v4178 = vand.u32 %v4130, 4294901760
    %4179 = vmatpush1.msra.mxu0 %v4178
    %4180 = vmatprep.subr.mxu0 0.0
    %v4181 = vand.u32 %v4131, 4294901760
    %4182 = vmatpush1.msra.mxu0 %v4181
    %4183 = vmatprep.subr.mxu0 0.0
    %v4184 = vand.u32 %v4132, 4294901760
    %4185 = vmatpush1.msra.mxu0 %v4184
    %4186 = vmatprep.subr.mxu0 0.0
    %v4187 = vand.u32 %v4133, 4294901760
    %4188 = vmatpush1.msra.mxu0 %v4187
    %4189 = vmatprep.subr.mxu0 0.0
    %v4190 = vand.u32 %v4134, 4294901760
    %4191 = vmatpush1.msra.mxu0 %v4190
    %4192 = vmatprep.subr.mxu0 0.0
    %v4193 = vand.u32 %v4135, 4294901760
    %4194 = vmatpush1.msra.mxu0 %v4193
    %4195 = vmatprep.subr.mxu0 0.0
    %v4196 = vand.u32 %v4136, 4294901760
    %4197 = vmatpush1.msra.mxu0 %v4196
    %4198 = vmatprep.subr.mxu0 0.0
    %v4199 = vand.u32 %v4137, 4294901760
    %4200 = vmatpush1.msra.mxu0 %v4199
    %4201 = vmatprep.subr.mxu0 0.0
    %v4202 = vand.u32 %v4138, 4294901760
    %4203 = vmatpush1.msra.mxu0 %v4202
    %4204 = vmatprep.subr.mxu0 0.0
    %v4205 = vand.u32 %v4139, 4294901760
    %4206 = vmatpush1.msra.mxu0 %v4205
    %4207 = vmatprep.subr.mxu0 0.0
    %v4208 = vand.u32 %v4140, 4294901760
    %4209 = vmatpush1.msra.mxu0 %v4208
    %4210 = vmatprep.subr.mxu0 0.0
    %v4211 = vand.u32 %v4141, 4294901760
    %4212 = vmatpush1.msra.mxu0 %v4211
    %4213 = vmatprep.subr.mxu0 0.0
    %v4214 = vand.u32 %v4142, 4294901760
    %4215 = vmatpush1.msra.mxu0 %v4214
    %4216 = vmatprep.subr.mxu0 0.0
    %4217 = vmatpush1.msra.mxu0 0.0
    %4218 = vmatprep.subr.mxu0 0.0
    %4219 = vmatpush1.msra.mxu0 0.0
    %4220 = vmatprep.subr.mxu0 0.0
    %4221 = vmatpush1.msra.mxu0 0.0
    %4222 = vmatprep.subr.mxu0 0.0
    %4223 = vmatpush1.msra.mxu0 0.0
    %4224 = vmatprep.subr.mxu0 0.0
    %4225 = vmatpush1.msra.mxu0 0.0
    %4226 = vmatprep.subr.mxu0 0.0
    %4227 = vmatpush1.msra.mxu0 0.0
    %4228 = vmatprep.subr.mxu0 0.0
    %4229 = vmatpush1.msra.mxu0 0.0
    %4230 = vmatprep.subr.mxu0 0.0
    %4231 = vmatpush1.msra.mxu0 0.0
    %4232 = vmatprep.subr.mxu0 0.0
    %4233 = vmatpush1.msra.mxu0 0.0
    %4234 = vmatprep.subr.mxu0 0.0
    %4235 = vmatpush1.msra.mxu0 0.0
    %4236 = vmatprep.subr.mxu0 0.0
    %4237 = vmatpush1.msra.mxu0 0.0
    %4238 = vmatprep.subr.mxu0 0.0
    %4239 = vmatpush1.msra.mxu0 0.0
    %4240 = vmatprep.subr.mxu0 0.0
    %4241 = vmatpush1.msra.mxu0 0.0
    %4242 = vmatprep.subr.mxu0 0.0
    %4243 = vmatpush1.msra.mxu0 0.0
    %4244 = vmatprep.subr.mxu0 0.0
    %4245 = vmatpush1.msra.mxu0 0.0
    %4246 = vmatprep.subr.mxu0 0.0
    %4247 = vmatpush1.msra.mxu0 0.0
    %4248 = vmatprep.mubr.f32.mxu0 0.0
    %v4249 = vand.u32 %v4125, 4294901760
    %v4250 = vsub.f32 %v4125, %v4249
    %v4251 = vand.u32 %v4250, 4294901760
    %v4252 = vsub.f32 %v4250, %v4251
    %v4253 = vand.u32 %v4252, 4294901760
    %4254 = vmatmul.mubr.f32.gmra.mrb[0].mxu0 %v4253
    %v4255 = vpop.f32.mrb[0].mxu0
    %v4256 = vadd.f32 %v4167, %v4255
    %v4257 = vpop.f32.mrb[0].mxu0
    %4258 = vdwg.mxu0
    %4259 = vmatprep.subr.mxu0 0.0
    %v4260 = vand.u32 %v4127, 4294901760
    %v4261 = vsub.f32 %v4127, %v4260
    %v4262 = vand.u32 %v4261, 4294901760
    %v4263 = vsub.f32 %v4261, %v4262
    %v4264 = vand.u32 %v4263, 4294901760
    %4265 = vmatpush1.msra.mxu0 %v4264
    %4266 = vmatprep.subr.mxu0 0.0
    %v4267 = vand.u32 %v4128, 4294901760
    %v4268 = vsub.f32 %v4128, %v4267
    %v4269 = vand.u32 %v4268, 4294901760
    %v4270 = vsub.f32 %v4268, %v4269
    %v4271 = vand.u32 %v4270, 4294901760
    %4272 = vmatpush1.msra.mxu0 %v4271
    %4273 = vmatprep.subr.mxu0 0.0
    %v4274 = vand.u32 %v4129, 4294901760
    %v4275 = vsub.f32 %v4129, %v4274
    %v4276 = vand.u32 %v4275, 4294901760
    %v4277 = vsub.f32 %v4275, %v4276
    %v4278 = vand.u32 %v4277, 4294901760
    %4279 = vmatpush1.msra.mxu0 %v4278
    %4280 = vmatprep.subr.mxu0 0.0
    %v4281 = vand.u32 %v4130, 4294901760
    %v4282 = vsub.f32 %v4130, %v4281
    %v4283 = vand.u32 %v4282, 4294901760
    %v4284 = vsub.f32 %v4282, %v4283
    %v4285 = vand.u32 %v4284, 4294901760
    %4286 = vmatpush1.msra.mxu0 %v4285
    %4287 = vmatprep.subr.mxu0 0.0
    %v4288 = vand.u32 %v4131, 4294901760
    %v4289 = vsub.f32 %v4131, %v4288
    %v4290 = vand.u32 %v4289, 4294901760
    %v4291 = vsub.f32 %v4289, %v4290
    %v4292 = vand.u32 %v4291, 4294901760
    %4293 = vmatpush1.msra.mxu0 %v4292
    %4294 = vmatprep.subr.mxu0 0.0
    %v4295 = vand.u32 %v4132, 4294901760
    %v4296 = vsub.f32 %v4132, %v4295
    %v4297 = vand.u32 %v4296, 4294901760
    %v4298 = vsub.f32 %v4296, %v4297
    %v4299 = vand.u32 %v4298, 4294901760
    %4300 = vmatpush1.msra.mxu0 %v4299
    %4301 = vmatprep.subr.mxu0 0.0
    %v4302 = vand.u32 %v4133, 4294901760
    %v4303 = vsub.f32 %v4133, %v4302
    %v4304 = vand.u32 %v4303, 4294901760
    %v4305 = vsub.f32 %v4303, %v4304
    %v4306 = vand.u32 %v4305, 4294901760
    %4307 = vmatpush1.msra.mxu0 %v4306
    %4308 = vmatprep.subr.mxu0 0.0
    %v4309 = vand.u32 %v4134, 4294901760
    %v4310 = vsub.f32 %v4134, %v4309
    %v4311 = vand.u32 %v4310, 4294901760
    %v4312 = vsub.f32 %v4310, %v4311
    %v4313 = vand.u32 %v4312, 4294901760
    %4314 = vmatpush1.msra.mxu0 %v4313
    %4315 = vmatprep.subr.mxu0 0.0
    %v4316 = vand.u32 %v4135, 4294901760
    %v4317 = vsub.f32 %v4135, %v4316
    %v4318 = vand.u32 %v4317, 4294901760
    %v4319 = vsub.f32 %v4317, %v4318
    %v4320 = vand.u32 %v4319, 4294901760
    %4321 = vmatpush1.msra.mxu0 %v4320
    %4322 = vmatprep.subr.mxu0 0.0
    %v4323 = vand.u32 %v4136, 4294901760
    %v4324 = vsub.f32 %v4136, %v4323
    %v4325 = vand.u32 %v4324, 4294901760
    %v4326 = vsub.f32 %v4324, %v4325
    %v4327 = vand.u32 %v4326, 4294901760
    %4328 = vmatpush1.msra.mxu0 %v4327
    %4329 = vmatprep.subr.mxu0 0.0
    %v4330 = vand.u32 %v4137, 4294901760
    %v4331 = vsub.f32 %v4137, %v4330
    %v4332 = vand.u32 %v4331, 4294901760
    %v4333 = vsub.f32 %v4331, %v4332
    %v4334 = vand.u32 %v4333, 4294901760
    %4335 = vmatpush1.msra.mxu0 %v4334
    %4336 = vmatprep.subr.mxu0 0.0
    %v4337 = vand.u32 %v4138, 4294901760
    %v4338 = vsub.f32 %v4138, %v4337
    %v4339 = vand.u32 %v4338, 4294901760
    %v4340 = vsub.f32 %v4338, %v4339
    %v4341 = vand.u32 %v4340, 4294901760
    %4342 = vmatpush1.msra.mxu0 %v4341
    %4343 = vmatprep.subr.mxu0 0.0
    %v4344 = vand.u32 %v4139, 4294901760
    %v4345 = vsub.f32 %v4139, %v4344
    %v4346 = vand.u32 %v4345, 4294901760
    %v4347 = vsub.f32 %v4345, %v4346
    %v4348 = vand.u32 %v4347, 4294901760
    %4349 = vmatpush1.msra.mxu0 %v4348
    %4350 = vmatprep.subr.mxu0 0.0
    %v4351 = vand.u32 %v4140, 4294901760
    %v4352 = vsub.f32 %v4140, %v4351
    %v4353 = vand.u32 %v4352, 4294901760
    %v4354 = vsub.f32 %v4352, %v4353
    %v4355 = vand.u32 %v4354, 4294901760
    %4356 = vmatpush1.msra.mxu0 %v4355
    %4357 = vmatprep.subr.mxu0 0.0
    %v4358 = vand.u32 %v4141, 4294901760
    %v4359 = vsub.f32 %v4141, %v4358
    %v4360 = vand.u32 %v4359, 4294901760
    %v4361 = vsub.f32 %v4359, %v4360
    %v4362 = vand.u32 %v4361, 4294901760
    %4363 = vmatpush1.msra.mxu0 %v4362
    %4364 = vmatprep.subr.mxu0 0.0
    %v4365 = vand.u32 %v4142, 4294901760
    %v4366 = vsub.f32 %v4142, %v4365
    %v4367 = vand.u32 %v4366, 4294901760
    %v4368 = vsub.f32 %v4366, %v4367
    %v4369 = vand.u32 %v4368, 4294901760
    %4370 = vmatpush1.msra.mxu0 %v4369
    %4371 = vmatprep.subr.mxu0 0.0
    %4372 = vmatpush1.msra.mxu0 0.0
    %4373 = vmatprep.subr.mxu0 0.0
    %4374 = vmatpush1.msra.mxu0 0.0
    %4375 = vmatprep.subr.mxu0 0.0
    %4376 = vmatpush1.msra.mxu0 0.0
    %4377 = vmatprep.subr.mxu0 0.0
    %4378 = vmatpush1.msra.mxu0 0.0
    %4379 = vmatprep.subr.mxu0 0.0
    %4380 = vmatpush1.msra.mxu0 0.0
    %4381 = vmatprep.subr.mxu0 0.0
    %4382 = vmatpush1.msra.mxu0 0.0
    %4383 = vmatprep.subr.mxu0 0.0
    %4384 = vmatpush1.msra.mxu0 0.0
    %4385 = vmatprep.subr.mxu0 0.0
    %4386 = vmatpush1.msra.mxu0 0.0
    %4387 = vmatprep.subr.mxu0 0.0
    %4388 = vmatpush1.msra.mxu0 0.0
    %4389 = vmatprep.subr.mxu0 0.0
    %4390 = vmatpush1.msra.mxu0 0.0
    %4391 = vmatprep.subr.mxu0 0.0
    %4392 = vmatpush1.msra.mxu0 0.0
    %4393 = vmatprep.subr.mxu0 0.0
    %4394 = vmatpush1.msra.mxu0 0.0
    %4395 = vmatprep.subr.mxu0 0.0
    %4396 = vmatpush1.msra.mxu0 0.0
    %4397 = vmatprep.subr.mxu0 0.0
    %4398 = vmatpush1.msra.mxu0 0.0
    %4399 = vmatprep.subr.mxu0 0.0
    %4400 = vmatpush1.msra.mxu0 0.0
    %4401 = vmatprep.subr.mxu0 0.0
    %4402 = vmatpush1.msra.mxu0 0.0
    %4403 = vmatprep.mubr.f32.mxu0 0.0
    %v4404 = vand.u32 %v4125, 4294901760
    %4405 = vmatmul.mubr.f32.gmra.mrb[0].mxu0 %v4404
    %v4406 = vpop.f32.mrb[0].mxu0
    %v4407 = vadd.f32 %v4256, %v4406
    %v4408 = vpop.f32.mrb[0].mxu0
    %4409 = vdwg.mxu0
    %4410 = vmatprep.subr.mxu0 0.0
    %v4411 = vand.u32 %v4127, 4294901760
    %v4412 = vsub.f32 %v4127, %v4411
    %4413 = vmatpush1.msra.mxu0 %v4412
    %4414 = vmatprep.subr.mxu0 0.0
    %v4415 = vand.u32 %v4128, 4294901760
    %v4416 = vsub.f32 %v4128, %v4415
    %4417 = vmatpush1.msra.mxu0 %v4416
    %4418 = vmatprep.subr.mxu0 0.0
    %v4419 = vand.u32 %v4129, 4294901760
    %v4420 = vsub.f32 %v4129, %v4419
    %4421 = vmatpush1.msra.mxu0 %v4420
    %4422 = vmatprep.subr.mxu0 0.0
    %v4423 = vand.u32 %v4130, 4294901760
    %v4424 = vsub.f32 %v4130, %v4423
    %4425 = vmatpush1.msra.mxu0 %v4424
    %4426 = vmatprep.subr.mxu0 0.0
    %v4427 = vand.u32 %v4131, 4294901760
    %v4428 = vsub.f32 %v4131, %v4427
    %4429 = vmatpush1.msra.mxu0 %v4428
    %4430 = vmatprep.subr.mxu0 0.0
    %v4431 = vand.u32 %v4132, 4294901760
    %v4432 = vsub.f32 %v4132, %v4431
    %4433 = vmatpush1.msra.mxu0 %v4432
    %4434 = vmatprep.subr.mxu0 0.0
    %v4435 = vand.u32 %v4133, 4294901760
    %v4436 = vsub.f32 %v4133, %v4435
    %4437 = vmatpush1.msra.mxu0 %v4436
    %4438 = vmatprep.subr.mxu0 0.0
    %v4439 = vand.u32 %v4134, 4294901760
    %v4440 = vsub.f32 %v4134, %v4439
    %4441 = vmatpush1.msra.mxu0 %v4440
    %4442 = vmatprep.subr.mxu0 0.0
    %v4443 = vand.u32 %v4135, 4294901760
    %v4444 = vsub.f32 %v4135, %v4443
    %4445 = vmatpush1.msra.mxu0 %v4444
    %4446 = vmatprep.subr.mxu0 0.0
    %v4447 = vand.u32 %v4136, 4294901760
    %v4448 = vsub.f32 %v4136, %v4447
    %4449 = vmatpush1.msra.mxu0 %v4448
    %4450 = vmatprep.subr.mxu0 0.0
    %v4451 = vand.u32 %v4137, 4294901760
    %v4452 = vsub.f32 %v4137, %v4451
    %4453 = vmatpush1.msra.mxu0 %v4452
    %4454 = vmatprep.subr.mxu0 0.0
    %v4455 = vand.u32 %v4138, 4294901760
    %v4456 = vsub.f32 %v4138, %v4455
    %4457 = vmatpush1.msra.mxu0 %v4456
    %4458 = vmatprep.subr.mxu0 0.0
    %v4459 = vand.u32 %v4139, 4294901760
    %v4460 = vsub.f32 %v4139, %v4459
    %4461 = vmatpush1.msra.mxu0 %v4460
    %4462 = vmatprep.subr.mxu0 0.0
    %v4463 = vand.u32 %v4140, 4294901760
    %v4464 = vsub.f32 %v4140, %v4463
    %4465 = vmatpush1.msra.mxu0 %v4464
    %4466 = vmatprep.subr.mxu0 0.0
    %v4467 = vand.u32 %v4141, 4294901760
    %v4468 = vsub.f32 %v4141, %v4467
    %4469 = vmatpush1.msra.mxu0 %v4468
    %4470 = vmatprep.subr.mxu0 0.0
    %v4471 = vand.u32 %v4142, 4294901760
    %v4472 = vsub.f32 %v4142, %v4471
    %4473 = vmatpush1.msra.mxu0 %v4472
    %4474 = vmatprep.subr.mxu0 0.0
    %4475 = vmatpush1.msra.mxu0 0.0
    %4476 = vmatprep.subr.mxu0 0.0
    %4477 = vmatpush1.msra.mxu0 0.0
    %4478 = vmatprep.subr.mxu0 0.0
    %4479 = vmatpush1.msra.mxu0 0.0
    %4480 = vmatprep.subr.mxu0 0.0
    %4481 = vmatpush1.msra.mxu0 0.0
    %4482 = vmatprep.subr.mxu0 0.0
    %4483 = vmatpush1.msra.mxu0 0.0
    %4484 = vmatprep.subr.mxu0 0.0
    %4485 = vmatpush1.msra.mxu0 0.0
    %4486 = vmatprep.subr.mxu0 0.0
    %4487 = vmatpush1.msra.mxu0 0.0
    %4488 = vmatprep.subr.mxu0 0.0
    %4489 = vmatpush1.msra.mxu0 0.0
    %4490 = vmatprep.subr.mxu0 0.0
    %4491 = vmatpush1.msra.mxu0 0.0
    %4492 = vmatprep.subr.mxu0 0.0
    %4493 = vmatpush1.msra.mxu0 0.0
    %4494 = vmatprep.subr.mxu0 0.0
    %4495 = vmatpush1.msra.mxu0 0.0
    %4496 = vmatprep.subr.mxu0 0.0
    %4497 = vmatpush1.msra.mxu0 0.0
    %4498 = vmatprep.subr.mxu0 0.0
    %4499 = vmatpush1.msra.mxu0 0.0
    %4500 = vmatprep.subr.mxu0 0.0
    %4501 = vmatpush1.msra.mxu0 0.0
    %4502 = vmatprep.subr.mxu0 0.0
    %4503 = vmatpush1.msra.mxu0 0.0
    %4504 = vmatprep.subr.mxu0 0.0
    %4505 = vmatpush1.msra.mxu0 0.0
    %4506 = vmatprep.mubr.f32.mxu0 0.0
    %v4507 = vand.u32 %v4125, 4294901760
    %v4508 = vsub.f32 %v4125, %v4507
    %4509 = vmatmul.mubr.f32.gmra.mrb[0].mxu0 %v4508
    %v4510 = vpop.f32.mrb[0].mxu0
    %v4511 = vadd.f32 %v4407, %v4510
    %v4512 = vpop.f32.mrb[0].mxu0
    %4513 = vdwg.mxu0
    %4514 = vmatprep.subr.mxu0 0.0
    %v4515 = vand.u32 %v4127, 4294901760
    %4516 = vmatpush1.msra.mxu0 %v4515
    %4517 = vmatprep.subr.mxu0 0.0
    %v4518 = vand.u32 %v4128, 4294901760
    %4519 = vmatpush1.msra.mxu0 %v4518
    %4520 = vmatprep.subr.mxu0 0.0
    %v4521 = vand.u32 %v4129, 4294901760
    %4522 = vmatpush1.msra.mxu0 %v4521
    %4523 = vmatprep.subr.mxu0 0.0
    %v4524 = vand.u32 %v4130, 4294901760
    %4525 = vmatpush1.msra.mxu0 %v4524
    %4526 = vmatprep.subr.mxu0 0.0
    %v4527 = vand.u32 %v4131, 4294901760
    %4528 = vmatpush1.msra.mxu0 %v4527
    %4529 = vmatprep.subr.mxu0 0.0
    %v4530 = vand.u32 %v4132, 4294901760
    %4531 = vmatpush1.msra.mxu0 %v4530
    %4532 = vmatprep.subr.mxu0 0.0
    %v4533 = vand.u32 %v4133, 4294901760
    %4534 = vmatpush1.msra.mxu0 %v4533
    %4535 = vmatprep.subr.mxu0 0.0
    %v4536 = vand.u32 %v4134, 4294901760
    %4537 = vmatpush1.msra.mxu0 %v4536
    %4538 = vmatprep.subr.mxu0 0.0
    %v4539 = vand.u32 %v4135, 4294901760
    %4540 = vmatpush1.msra.mxu0 %v4539
    %4541 = vmatprep.subr.mxu0 0.0
    %v4542 = vand.u32 %v4136, 4294901760
    %4543 = vmatpush1.msra.mxu0 %v4542
    %4544 = vmatprep.subr.mxu0 0.0
    %v4545 = vand.u32 %v4137, 4294901760
    %4546 = vmatpush1.msra.mxu0 %v4545
    %4547 = vmatprep.subr.mxu0 0.0
    %v4548 = vand.u32 %v4138, 4294901760
    %4549 = vmatpush1.msra.mxu0 %v4548
    %4550 = vmatprep.subr.mxu0 0.0
    %v4551 = vand.u32 %v4139, 4294901760
    %4552 = vmatpush1.msra.mxu0 %v4551
    %4553 = vmatprep.subr.mxu0 0.0
    %v4554 = vand.u32 %v4140, 4294901760
    %4555 = vmatpush1.msra.mxu0 %v4554
    %4556 = vmatprep.subr.mxu0 0.0
    %v4557 = vand.u32 %v4141, 4294901760
    %4558 = vmatpush1.msra.mxu0 %v4557
    %4559 = vmatprep.subr.mxu0 0.0
    %v4560 = vand.u32 %v4142, 4294901760
    %4561 = vmatpush1.msra.mxu0 %v4560
    %4562 = vmatprep.subr.mxu0 0.0
    %4563 = vmatpush1.msra.mxu0 0.0
    %4564 = vmatprep.subr.mxu0 0.0
    %4565 = vmatpush1.msra.mxu0 0.0
    %4566 = vmatprep.subr.mxu0 0.0
    %4567 = vmatpush1.msra.mxu0 0.0
    %4568 = vmatprep.subr.mxu0 0.0
    %4569 = vmatpush1.msra.mxu0 0.0
    %4570 = vmatprep.subr.mxu0 0.0
    %4571 = vmatpush1.msra.mxu0 0.0
    %4572 = vmatprep.subr.mxu0 0.0
    %4573 = vmatpush1.msra.mxu0 0.0
    %4574 = vmatprep.subr.mxu0 0.0
    %4575 = vmatpush1.msra.mxu0 0.0
    %4576 = vmatprep.subr.mxu0 0.0
    %4577 = vmatpush1.msra.mxu0 0.0
    %4578 = vmatprep.subr.mxu0 0.0
    %4579 = vmatpush1.msra.mxu0 0.0
    %4580 = vmatprep.subr.mxu0 0.0
    %4581 = vmatpush1.msra.mxu0 0.0
    %4582 = vmatprep.subr.mxu0 0.0
    %4583 = vmatpush1.msra.mxu0 0.0
    %4584 = vmatprep.subr.mxu0 0.0
    %4585 = vmatpush1.msra.mxu0 0.0
    %4586 = vmatprep.subr.mxu0 0.0
    %4587 = vmatpush1.msra.mxu0 0.0
    %4588 = vmatprep.subr.mxu0 0.0
    %4589 = vmatpush1.msra.mxu0 0.0
    %4590 = vmatprep.subr.mxu0 0.0
    %4591 = vmatpush1.msra.mxu0 0.0
    %4592 = vmatprep.subr.mxu0 0.0
    %4593 = vmatpush1.msra.mxu0 0.0
    %4594 = vmatprep.mubr.f32.mxu0 0.0
    %v4595 = vand.u32 %v4125, 4294901760
    %v4596 = vsub.f32 %v4125, %v4595
    %v4597 = vand.u32 %v4596, 4294901760
    %4598 = vmatmul.mubr.f32.gmra.mrb[0].mxu0 %v4597
    %v4599 = vpop.f32.mrb[0].mxu0
    %v4600 = vadd.f32 %v4511, %v4599
    %v4601 = vpop.f32.mrb[0].mxu0
    %4602 = vdwg.mxu0
    %4603 = vmatprep.subr.mxu0 0.0
    %v4604 = vand.u32 %v4127, 4294901760
    %v4605 = vsub.f32 %v4127, %v4604
    %v4606 = vand.u32 %v4605, 4294901760
    %4607 = vmatpush1.msra.mxu0 %v4606
    %4608 = vmatprep.subr.mxu0 0.0
    %v4609 = vand.u32 %v4128, 4294901760
    %v4610 = vsub.f32 %v4128, %v4609
    %v4611 = vand.u32 %v4610, 4294901760
    %4612 = vmatpush1.msra.mxu0 %v4611
    %4613 = vmatprep.subr.mxu0 0.0
    %v4614 = vand.u32 %v4129, 4294901760
    %v4615 = vsub.f32 %v4129, %v4614
    %v4616 = vand.u32 %v4615, 4294901760
    %4617 = vmatpush1.msra.mxu0 %v4616
    %4618 = vmatprep.subr.mxu0 0.0
    %v4619 = vand.u32 %v4130, 4294901760
    %v4620 = vsub.f32 %v4130, %v4619
    %v4621 = vand.u32 %v4620, 4294901760
    %4622 = vmatpush1.msra.mxu0 %v4621
    %4623 = vmatprep.subr.mxu0 0.0
    %v4624 = vand.u32 %v4131, 4294901760
    %v4625 = vsub.f32 %v4131, %v4624
    %v4626 = vand.u32 %v4625, 4294901760
    %4627 = vmatpush1.msra.mxu0 %v4626
    %4628 = vmatprep.subr.mxu0 0.0
    %v4629 = vand.u32 %v4132, 4294901760
    %v4630 = vsub.f32 %v4132, %v4629
    %v4631 = vand.u32 %v4630, 4294901760
    %4632 = vmatpush1.msra.mxu0 %v4631
    %4633 = vmatprep.subr.mxu0 0.0
    %v4634 = vand.u32 %v4133, 4294901760
    %v4635 = vsub.f32 %v4133, %v4634
    %v4636 = vand.u32 %v4635, 4294901760
    %4637 = vmatpush1.msra.mxu0 %v4636
    %4638 = vmatprep.subr.mxu0 0.0
    %v4639 = vand.u32 %v4134, 4294901760
    %v4640 = vsub.f32 %v4134, %v4639
    %v4641 = vand.u32 %v4640, 4294901760
    %4642 = vmatpush1.msra.mxu0 %v4641
    %4643 = vmatprep.subr.mxu0 0.0
    %v4644 = vand.u32 %v4135, 4294901760
    %v4645 = vsub.f32 %v4135, %v4644
    %v4646 = vand.u32 %v4645, 4294901760
    %4647 = vmatpush1.msra.mxu0 %v4646
    %4648 = vmatprep.subr.mxu0 0.0
    %v4649 = vand.u32 %v4136, 4294901760
    %v4650 = vsub.f32 %v4136, %v4649
    %v4651 = vand.u32 %v4650, 4294901760
    %4652 = vmatpush1.msra.mxu0 %v4651
    %4653 = vmatprep.subr.mxu0 0.0
    %v4654 = vand.u32 %v4137, 4294901760
    %v4655 = vsub.f32 %v4137, %v4654
    %v4656 = vand.u32 %v4655, 4294901760
    %4657 = vmatpush1.msra.mxu0 %v4656
    %4658 = vmatprep.subr.mxu0 0.0
    %v4659 = vand.u32 %v4138, 4294901760
    %v4660 = vsub.f32 %v4138, %v4659
    %v4661 = vand.u32 %v4660, 4294901760
    %4662 = vmatpush1.msra.mxu0 %v4661
    %4663 = vmatprep.subr.mxu0 0.0
    %v4664 = vand.u32 %v4139, 4294901760
    %v4665 = vsub.f32 %v4139, %v4664
    %v4666 = vand.u32 %v4665, 4294901760
    %4667 = vmatpush1.msra.mxu0 %v4666
    %4668 = vmatprep.subr.mxu0 0.0
    %v4669 = vand.u32 %v4140, 4294901760
    %v4670 = vsub.f32 %v4140, %v4669
    %v4671 = vand.u32 %v4670, 4294901760
    %4672 = vmatpush1.msra.mxu0 %v4671
    %4673 = vmatprep.subr.mxu0 0.0
    %v4674 = vand.u32 %v4141, 4294901760
    %v4675 = vsub.f32 %v4141, %v4674
    %v4676 = vand.u32 %v4675, 4294901760
    %4677 = vmatpush1.msra.mxu0 %v4676
    %4678 = vmatprep.subr.mxu0 0.0
    %v4679 = vand.u32 %v4142, 4294901760
    %v4680 = vsub.f32 %v4142, %v4679
    %v4681 = vand.u32 %v4680, 4294901760
    %4682 = vmatpush1.msra.mxu0 %v4681
    %4683 = vmatprep.subr.mxu0 0.0
    %4684 = vmatpush1.msra.mxu0 0.0
    %4685 = vmatprep.subr.mxu0 0.0
    %4686 = vmatpush1.msra.mxu0 0.0
    %4687 = vmatprep.subr.mxu0 0.0
    %4688 = vmatpush1.msra.mxu0 0.0
    %4689 = vmatprep.subr.mxu0 0.0
    %4690 = vmatpush1.msra.mxu0 0.0
    %4691 = vmatprep.subr.mxu0 0.0
    %4692 = vmatpush1.msra.mxu0 0.0
    %4693 = vmatprep.subr.mxu0 0.0
    %4694 = vmatpush1.msra.mxu0 0.0
    %4695 = vmatprep.subr.mxu0 0.0
    %4696 = vmatpush1.msra.mxu0 0.0
    %4697 = vmatprep.subr.mxu0 0.0
    %4698 = vmatpush1.msra.mxu0 0.0
    %4699 = vmatprep.subr.mxu0 0.0
    %4700 = vmatpush1.msra.mxu0 0.0
    %4701 = vmatprep.subr.mxu0 0.0
    %4702 = vmatpush1.msra.mxu0 0.0
    %4703 = vmatprep.subr.mxu0 0.0
    %4704 = vmatpush1.msra.mxu0 0.0
    %4705 = vmatprep.subr.mxu0 0.0
    %4706 = vmatpush1.msra.mxu0 0.0
    %4707 = vmatprep.subr.mxu0 0.0
    %4708 = vmatpush1.msra.mxu0 0.0
    %4709 = vmatprep.subr.mxu0 0.0
    %4710 = vmatpush1.msra.mxu0 0.0
    %4711 = vmatprep.subr.mxu0 0.0
    %4712 = vmatpush1.msra.mxu0 0.0
    %4713 = vmatprep.subr.mxu0 0.0
    %4714 = vmatpush1.msra.mxu0 0.0
    %4715 = vmatprep.mubr.f32.mxu0 0.0
    %v4716 = vand.u32 %v4125, 4294901760
    %4717 = vmatmul.mubr.f32.gmra.mrb[0].mxu0 %v4716
    %v4718 = vpop.f32.mrb[0].mxu0
    %v4719 = vadd.f32 %v4600, %v4718
    %v4720 = vpop.f32.mrb[0].mxu0
    %4721 = vdwg.mxu0
    %4722 = vmatprep.subr.mxu0 0.0
    %v4723 = vand.u32 %v4127, 4294901760
    %4724 = vmatpush1.msra.mxu0 %v4723
    %4725 = vmatprep.subr.mxu0 0.0
    %v4726 = vand.u32 %v4128, 4294901760
    %4727 = vmatpush1.msra.mxu0 %v4726
    %4728 = vmatprep.subr.mxu0 0.0
    %v4729 = vand.u32 %v4129, 4294901760
    %4730 = vmatpush1.msra.mxu0 %v4729
    %4731 = vmatprep.subr.mxu0 0.0
    %v4732 = vand.u32 %v4130, 4294901760
    %4733 = vmatpush1.msra.mxu0 %v4732
    %4734 = vmatprep.subr.mxu0 0.0
    %v4735 = vand.u32 %v4131, 4294901760
    %4736 = vmatpush1.msra.mxu0 %v4735
    %4737 = vmatprep.subr.mxu0 0.0
    %v4738 = vand.u32 %v4132, 4294901760
    %4739 = vmatpush1.msra.mxu0 %v4738
    %4740 = vmatprep.subr.mxu0 0.0
    %v4741 = vand.u32 %v4133, 4294901760
    %4742 = vmatpush1.msra.mxu0 %v4741
    %4743 = vmatprep.subr.mxu0 0.0
    %v4744 = vand.u32 %v4134, 4294901760
    %4745 = vmatpush1.msra.mxu0 %v4744
    %4746 = vmatprep.subr.mxu0 0.0
    %v4747 = vand.u32 %v4135, 4294901760
    %4748 = vmatpush1.msra.mxu0 %v4747
    %4749 = vmatprep.subr.mxu0 0.0
    %v4750 = vand.u32 %v4136, 4294901760
    %4751 = vmatpush1.msra.mxu0 %v4750
    %4752 = vmatprep.subr.mxu0 0.0
    %v4753 = vand.u32 %v4137, 4294901760
    %4754 = vmatpush1.msra.mxu0 %v4753
    %4755 = vmatprep.subr.mxu0 0.0
    %v4756 = vand.u32 %v4138, 4294901760
    %4757 = vmatpush1.msra.mxu0 %v4756
    %4758 = vmatprep.subr.mxu0 0.0
    %v4759 = vand.u32 %v4139, 4294901760
    %4760 = vmatpush1.msra.mxu0 %v4759
    %4761 = vmatprep.subr.mxu0 0.0
    %v4762 = vand.u32 %v4140, 4294901760
    %4763 = vmatpush1.msra.mxu0 %v4762
    %4764 = vmatprep.subr.mxu0 0.0
    %v4765 = vand.u32 %v4141, 4294901760
    %4766 = vmatpush1.msra.mxu0 %v4765
    %4767 = vmatprep.subr.mxu0 0.0
    %v4768 = vand.u32 %v4142, 4294901760
    %4769 = vmatpush1.msra.mxu0 %v4768
    %4770 = vmatprep.subr.mxu0 0.0
    %4771 = vmatpush1.msra.mxu0 0.0
    %4772 = vmatprep.subr.mxu0 0.0
    %4773 = vmatpush1.msra.mxu0 0.0
    %4774 = vmatprep.subr.mxu0 0.0
    %4775 = vmatpush1.msra.mxu0 0.0
    %4776 = vmatprep.subr.mxu0 0.0
    %4777 = vmatpush1.msra.mxu0 0.0
    %4778 = vmatprep.subr.mxu0 0.0
    %4779 = vmatpush1.msra.mxu0 0.0
    %4780 = vmatprep.subr.mxu0 0.0
    %4781 = vmatpush1.msra.mxu0 0.0
    %4782 = vmatprep.subr.mxu0 0.0
    %4783 = vmatpush1.msra.mxu0 0.0
    %4784 = vmatprep.subr.mxu0 0.0
    %4785 = vmatpush1.msra.mxu0 0.0
    %4786 = vmatprep.subr.mxu0 0.0
    %4787 = vmatpush1.msra.mxu0 0.0
    %4788 = vmatprep.subr.mxu0 0.0
    %4789 = vmatpush1.msra.mxu0 0.0
    %4790 = vmatprep.subr.mxu0 0.0
    %4791 = vmatpush1.msra.mxu0 0.0
    %4792 = vmatprep.subr.mxu0 0.0
    %4793 = vmatpush1.msra.mxu0 0.0
    %4794 = vmatprep.subr.mxu0 0.0
    %4795 = vmatpush1.msra.mxu0 0.0
    %4796 = vmatprep.subr.mxu0 0.0
    %4797 = vmatpush1.msra.mxu0 0.0
    %4798 = vmatprep.subr.mxu0 0.0
    %4799 = vmatpush1.msra.mxu0 0.0
    %4800 = vmatprep.subr.mxu0 0.0
    %4801 = vmatpush1.msra.mxu0 0.0
    %4802 = vmatprep.mubr.f32.mxu0 0.0
    %v4803 = vand.u32 %v4125, 4294901760
    %4804 = vmatmul.mubr.f32.gmra.mrb[0].mxu0 %v4803
    %v4805 = vpop.f32.mrb[0].mxu0
    %v4806 = vadd.f32 %v4719, %v4805
    %v4807 = vpop.f32.mrb[0].mxu0
    %4808 = vdwg.mxu0
    %v4809 = vmax.f32 %v4806, 0.0
    %v4810 = vlaneseq
    %v4811 = vshrl.u32 %v4810, 7
    %v4812 = vsub.s32 0, %v4811
    %v4813 = vrot.slane %v4161, %v4812
    %4814 = vmatprep.subr.mxu0 0.0
    %v4815 = vand.u32 %v4144, 4294901760
    %4816 = vmatpush1.msra.mxu0 %v4815
    %4817 = vmatprep.subr.mxu0 0.0
    %v4818 = vand.u32 %v4145, 4294901760
    %4819 = vmatpush1.msra.mxu0 %v4818
    %4820 = vmatprep.subr.mxu0 0.0
    %v4821 = vand.u32 %v4146, 4294901760
    %4822 = vmatpush1.msra.mxu0 %v4821
    %4823 = vmatprep.subr.mxu0 0.0
    %v4824 = vand.u32 %v4147, 4294901760
    %4825 = vmatpush1.msra.mxu0 %v4824
    %4826 = vmatprep.subr.mxu0 0.0
    %v4827 = vand.u32 %v4148, 4294901760
    %4828 = vmatpush1.msra.mxu0 %v4827
    %4829 = vmatprep.subr.mxu0 0.0
    %v4830 = vand.u32 %v4149, 4294901760
    %4831 = vmatpush1.msra.mxu0 %v4830
    %4832 = vmatprep.subr.mxu0 0.0
    %v4833 = vand.u32 %v4150, 4294901760
    %4834 = vmatpush1.msra.mxu0 %v4833
    %4835 = vmatprep.subr.mxu0 0.0
    %v4836 = vand.u32 %v4151, 4294901760
    %4837 = vmatpush1.msra.mxu0 %v4836
    %4838 = vmatprep.subr.mxu0 0.0
    %v4839 = vand.u32 %v4152, 4294901760
    %4840 = vmatpush1.msra.mxu0 %v4839
    %4841 = vmatprep.subr.mxu0 0.0
    %v4842 = vand.u32 %v4153, 4294901760
    %4843 = vmatpush1.msra.mxu0 %v4842
    %4844 = vmatprep.subr.mxu0 0.0
    %v4845 = vand.u32 %v4154, 4294901760
    %4846 = vmatpush1.msra.mxu0 %v4845
    %4847 = vmatprep.subr.mxu0 0.0
    %v4848 = vand.u32 %v4155, 4294901760
    %4849 = vmatpush1.msra.mxu0 %v4848
    %4850 = vmatprep.subr.mxu0 0.0
    %v4851 = vand.u32 %v4156, 4294901760
    %4852 = vmatpush1.msra.mxu0 %v4851
    %4853 = vmatprep.subr.mxu0 0.0
    %v4854 = vand.u32 %v4157, 4294901760
    %4855 = vmatpush1.msra.mxu0 %v4854
    %4856 = vmatprep.subr.mxu0 0.0
    %v4857 = vand.u32 %v4158, 4294901760
    %4858 = vmatpush1.msra.mxu0 %v4857
    %4859 = vmatprep.subr.mxu0 0.0
    %v4860 = vand.u32 %v4159, 4294901760
    %4861 = vmatpush1.msra.mxu0 %v4860
    %4862 = vmatprep.subr.mxu0 0.0
    %4863 = vmatpush1.msra.mxu0 0.0
    %4864 = vmatprep.subr.mxu0 0.0
    %4865 = vmatpush1.msra.mxu0 0.0
    %4866 = vmatprep.subr.mxu0 0.0
    %4867 = vmatpush1.msra.mxu0 0.0
    %4868 = vmatprep.subr.mxu0 0.0
    %4869 = vmatpush1.msra.mxu0 0.0
    %4870 = vmatprep.subr.mxu0 0.0
    %4871 = vmatpush1.msra.mxu0 0.0
    %4872 = vmatprep.subr.mxu0 0.0
    %4873 = vmatpush1.msra.mxu0 0.0
    %4874 = vmatprep.subr.mxu0 0.0
    %4875 = vmatpush1.msra.mxu0 0.0
    %4876 = vmatprep.subr.mxu0 0.0
    %4877 = vmatpush1.msra.mxu0 0.0
    %4878 = vmatprep.subr.mxu0 0.0
    %4879 = vmatpush1.msra.mxu0 0.0
    %4880 = vmatprep.subr.mxu0 0.0
    %4881 = vmatpush1.msra.mxu0 0.0
    %4882 = vmatprep.subr.mxu0 0.0
    %4883 = vmatpush1.msra.mxu0 0.0
    %4884 = vmatprep.subr.mxu0 0.0
    %4885 = vmatpush1.msra.mxu0 0.0
    %4886 = vmatprep.subr.mxu0 0.0
    %4887 = vmatpush1.msra.mxu0 0.0
    %4888 = vmatprep.subr.mxu0 0.0
    %4889 = vmatpush1.msra.mxu0 0.0
    %4890 = vmatprep.subr.mxu0 0.0
    %4891 = vmatpush1.msra.mxu0 0.0
    %4892 = vmatprep.subr.mxu0 0.0
    %4893 = vmatpush1.msra.mxu0 0.0
    %4894 = vmatprep.mubr.f32.mxu0 0.0
    %v4895 = vand.u32 %v4809, 4294901760
    %v4896 = vsub.f32 %v4809, %v4895
    %v4897 = vand.u32 %v4896, 4294901760
    %v4898 = vsub.f32 %v4896, %v4897
    %v4899 = vand.u32 %v4898, 4294901760
    %4900 = vmatmul.mubr.f32.gmra.mrb[0].mxu0 %v4899
    %v4901 = vpop.f32.mrb[0].mxu0
    %v4902 = vadd.f32 %v4813, %v4901
    %v4903 = vpop.f32.mrb[0].mxu0
    %4904 = vdwg.mxu0
    %4905 = vmatprep.subr.mxu0 0.0
    %v4906 = vand.u32 %v4144, 4294901760
    %v4907 = vsub.f32 %v4144, %v4906
    %v4908 = vand.u32 %v4907, 4294901760
    %v4909 = vsub.f32 %v4907, %v4908
    %v4910 = vand.u32 %v4909, 4294901760
    %4911 = vmatpush1.msra.mxu0 %v4910
    %4912 = vmatprep.subr.mxu0 0.0
    %v4913 = vand.u32 %v4145, 4294901760
    %v4914 = vsub.f32 %v4145, %v4913
    %v4915 = vand.u32 %v4914, 4294901760
    %v4916 = vsub.f32 %v4914, %v4915
    %v4917 = vand.u32 %v4916, 4294901760
    %4918 = vmatpush1.msra.mxu0 %v4917
    %4919 = vmatprep.subr.mxu0 0.0
    %v4920 = vand.u32 %v4146, 4294901760
    %v4921 = vsub.f32 %v4146, %v4920
    %v4922 = vand.u32 %v4921, 4294901760
    %v4923 = vsub.f32 %v4921, %v4922
    %v4924 = vand.u32 %v4923, 4294901760
    %4925 = vmatpush1.msra.mxu0 %v4924
    %4926 = vmatprep.subr.mxu0 0.0
    %v4927 = vand.u32 %v4147, 4294901760
    %v4928 = vsub.f32 %v4147, %v4927
    %v4929 = vand.u32 %v4928, 4294901760
    %v4930 = vsub.f32 %v4928, %v4929
    %v4931 = vand.u32 %v4930, 4294901760
    %4932 = vmatpush1.msra.mxu0 %v4931
    %4933 = vmatprep.subr.mxu0 0.0
    %v4934 = vand.u32 %v4148, 4294901760
    %v4935 = vsub.f32 %v4148, %v4934
    %v4936 = vand.u32 %v4935, 4294901760
    %v4937 = vsub.f32 %v4935, %v4936
    %v4938 = vand.u32 %v4937, 4294901760
    %4939 = vmatpush1.msra.mxu0 %v4938
    %4940 = vmatprep.subr.mxu0 0.0
    %v4941 = vand.u32 %v4149, 4294901760
    %v4942 = vsub.f32 %v4149, %v4941
    %v4943 = vand.u32 %v4942, 4294901760
    %v4944 = vsub.f32 %v4942, %v4943
    %v4945 = vand.u32 %v4944, 4294901760
    %4946 = vmatpush1.msra.mxu0 %v4945
    %4947 = vmatprep.subr.mxu0 0.0
    %v4948 = vand.u32 %v4150, 4294901760
    %v4949 = vsub.f32 %v4150, %v4948
    %v4950 = vand.u32 %v4949, 4294901760
    %v4951 = vsub.f32 %v4949, %v4950
    %v4952 = vand.u32 %v4951, 4294901760
    %4953 = vmatpush1.msra.mxu0 %v4952
    %4954 = vmatprep.subr.mxu0 0.0
    %v4955 = vand.u32 %v4151, 4294901760
    %v4956 = vsub.f32 %v4151, %v4955
    %v4957 = vand.u32 %v4956, 4294901760
    %v4958 = vsub.f32 %v4956, %v4957
    %v4959 = vand.u32 %v4958, 4294901760
    %4960 = vmatpush1.msra.mxu0 %v4959
    %4961 = vmatprep.subr.mxu0 0.0
    %v4962 = vand.u32 %v4152, 4294901760
    %v4963 = vsub.f32 %v4152, %v4962
    %v4964 = vand.u32 %v4963, 4294901760
    %v4965 = vsub.f32 %v4963, %v4964
    %v4966 = vand.u32 %v4965, 4294901760
    %4967 = vmatpush1.msra.mxu0 %v4966
    %4968 = vmatprep.subr.mxu0 0.0
    %v4969 = vand.u32 %v4153, 4294901760
    %v4970 = vsub.f32 %v4153, %v4969
    %v4971 = vand.u32 %v4970, 4294901760
    %v4972 = vsub.f32 %v4970, %v4971
    %v4973 = vand.u32 %v4972, 4294901760
    %4974 = vmatpush1.msra.mxu0 %v4973
    %4975 = vmatprep.subr.mxu0 0.0
    %v4976 = vand.u32 %v4154, 4294901760
    %v4977 = vsub.f32 %v4154, %v4976
    %v4978 = vand.u32 %v4977, 4294901760
    %v4979 = vsub.f32 %v4977, %v4978
    %v4980 = vand.u32 %v4979, 4294901760
    %4981 = vmatpush1.msra.mxu0 %v4980
    %4982 = vmatprep.subr.mxu0 0.0
    %v4983 = vand.u32 %v4155, 4294901760
    %v4984 = vsub.f32 %v4155, %v4983
    %v4985 = vand.u32 %v4984, 4294901760
    %v4986 = vsub.f32 %v4984, %v4985
    %v4987 = vand.u32 %v4986, 4294901760
    %4988 = vmatpush1.msra.mxu0 %v4987
    %4989 = vmatprep.subr.mxu0 0.0
    %v4990 = vand.u32 %v4156, 4294901760
    %v4991 = vsub.f32 %v4156, %v4990
    %v4992 = vand.u32 %v4991, 4294901760
    %v4993 = vsub.f32 %v4991, %v4992
    %v4994 = vand.u32 %v4993, 4294901760
    %4995 = vmatpush1.msra.mxu0 %v4994
    %4996 = vmatprep.subr.mxu0 0.0
    %v4997 = vand.u32 %v4157, 4294901760
    %v4998 = vsub.f32 %v4157, %v4997
    %v4999 = vand.u32 %v4998, 4294901760
    %v5000 = vsub.f32 %v4998, %v4999
    %v5001 = vand.u32 %v5000, 4294901760
    %5002 = vmatpush1.msra.mxu0 %v5001
    %5003 = vmatprep.subr.mxu0 0.0
    %v5004 = vand.u32 %v4158, 4294901760
    %v5005 = vsub.f32 %v4158, %v5004
    %v5006 = vand.u32 %v5005, 4294901760
    %v5007 = vsub.f32 %v5005, %v5006
    %v5008 = vand.u32 %v5007, 4294901760
    %5009 = vmatpush1.msra.mxu0 %v5008
    %5010 = vmatprep.subr.mxu0 0.0
    %v5011 = vand.u32 %v4159, 4294901760
    %v5012 = vsub.f32 %v4159, %v5011
    %v5013 = vand.u32 %v5012, 4294901760
    %v5014 = vsub.f32 %v5012, %v5013
    %v5015 = vand.u32 %v5014, 4294901760
    %5016 = vmatpush1.msra.mxu0 %v5015
    %5017 = vmatprep.subr.mxu0 0.0
    %5018 = vmatpush1.msra.mxu0 0.0
    %5019 = vmatprep.subr.mxu0 0.0
    %5020 = vmatpush1.msra.mxu0 0.0
    %5021 = vmatprep.subr.mxu0 0.0
    %5022 = vmatpush1.msra.mxu0 0.0
    %5023 = vmatprep.subr.mxu0 0.0
    %5024 = vmatpush1.msra.mxu0 0.0
    %5025 = vmatprep.subr.mxu0 0.0
    %5026 = vmatpush1.msra.mxu0 0.0
    %5027 = vmatprep.subr.mxu0 0.0
    %5028 = vmatpush1.msra.mxu0 0.0
    %5029 = vmatprep.subr.mxu0 0.0
    %5030 = vmatpush1.msra.mxu0 0.0
    %5031 = vmatprep.subr.mxu0 0.0
    %5032 = vmatpush1.msra.mxu0 0.0
    %5033 = vmatprep.subr.mxu0 0.0
    %5034 = vmatpush1.msra.mxu0 0.0
    %5035 = vmatprep.subr.mxu0 0.0
    %5036 = vmatpush1.msra.mxu0 0.0
    %5037 = vmatprep.subr.mxu0 0.0
    %5038 = vmatpush1.msra.mxu0 0.0
    %5039 = vmatprep.subr.mxu0 0.0
    %5040 = vmatpush1.msra.mxu0 0.0
    %5041 = vmatprep.subr.mxu0 0.0
    %5042 = vmatpush1.msra.mxu0 0.0
    %5043 = vmatprep.subr.mxu0 0.0
    %5044 = vmatpush1.msra.mxu0 0.0
    %5045 = vmatprep.subr.mxu0 0.0
    %5046 = vmatpush1.msra.mxu0 0.0
    %5047 = vmatprep.subr.mxu0 0.0
    %5048 = vmatpush1.msra.mxu0 0.0
    %5049 = vmatprep.mubr.f32.mxu0 0.0
    %v5050 = vand.u32 %v4809, 4294901760
    %5051 = vmatmul.mubr.f32.gmra.mrb[0].mxu0 %v5050
    %v5052 = vpop.f32.mrb[0].mxu0
    %v5053 = vadd.f32 %v4902, %v5052
    %v5054 = vpop.f32.mrb[0].mxu0
    %5055 = vdwg.mxu0
    %5056 = vmatprep.subr.mxu0 0.0
    %v5057 = vand.u32 %v4144, 4294901760
    %v5058 = vsub.f32 %v4144, %v5057
    %5059 = vmatpush1.msra.mxu0 %v5058
    %5060 = vmatprep.subr.mxu0 0.0
    %v5061 = vand.u32 %v4145, 4294901760
    %v5062 = vsub.f32 %v4145, %v5061
    %5063 = vmatpush1.msra.mxu0 %v5062
    %5064 = vmatprep.subr.mxu0 0.0
    %v5065 = vand.u32 %v4146, 4294901760
    %v5066 = vsub.f32 %v4146, %v5065
    %5067 = vmatpush1.msra.mxu0 %v5066
    %5068 = vmatprep.subr.mxu0 0.0
    %v5069 = vand.u32 %v4147, 4294901760
    %v5070 = vsub.f32 %v4147, %v5069
    %5071 = vmatpush1.msra.mxu0 %v5070
    %5072 = vmatprep.subr.mxu0 0.0
    %v5073 = vand.u32 %v4148, 4294901760
    %v5074 = vsub.f32 %v4148, %v5073
    %5075 = vmatpush1.msra.mxu0 %v5074
    %5076 = vmatprep.subr.mxu0 0.0
    %v5077 = vand.u32 %v4149, 4294901760
    %v5078 = vsub.f32 %v4149, %v5077
    %5079 = vmatpush1.msra.mxu0 %v5078
    %5080 = vmatprep.subr.mxu0 0.0
    %v5081 = vand.u32 %v4150, 4294901760
    %v5082 = vsub.f32 %v4150, %v5081
    %5083 = vmatpush1.msra.mxu0 %v5082
    %5084 = vmatprep.subr.mxu0 0.0
    %v5085 = vand.u32 %v4151, 4294901760
    %v5086 = vsub.f32 %v4151, %v5085
    %5087 = vmatpush1.msra.mxu0 %v5086
    %5088 = vmatprep.subr.mxu0 0.0
    %v5089 = vand.u32 %v4152, 4294901760
    %v5090 = vsub.f32 %v4152, %v5089
    %5091 = vmatpush1.msra.mxu0 %v5090
    %5092 = vmatprep.subr.mxu0 0.0
    %v5093 = vand.u32 %v4153, 4294901760
    %v5094 = vsub.f32 %v4153, %v5093
    %5095 = vmatpush1.msra.mxu0 %v5094
    %5096 = vmatprep.subr.mxu0 0.0
    %v5097 = vand.u32 %v4154, 4294901760
    %v5098 = vsub.f32 %v4154, %v5097
    %5099 = vmatpush1.msra.mxu0 %v5098
    %5100 = vmatprep.subr.mxu0 0.0
    %v5101 = vand.u32 %v4155, 4294901760
    %v5102 = vsub.f32 %v4155, %v5101
    %5103 = vmatpush1.msra.mxu0 %v5102
    %5104 = vmatprep.subr.mxu0 0.0
    %v5105 = vand.u32 %v4156, 4294901760
    %v5106 = vsub.f32 %v4156, %v5105
    %5107 = vmatpush1.msra.mxu0 %v5106
    %5108 = vmatprep.subr.mxu0 0.0
    %v5109 = vand.u32 %v4157, 4294901760
    %v5110 = vsub.f32 %v4157, %v5109
    %5111 = vmatpush1.msra.mxu0 %v5110
    %5112 = vmatprep.subr.mxu0 0.0
    %v5113 = vand.u32 %v4158, 4294901760
    %v5114 = vsub.f32 %v4158, %v5113
    %5115 = vmatpush1.msra.mxu0 %v5114
    %5116 = vmatprep.subr.mxu0 0.0
    %v5117 = vand.u32 %v4159, 4294901760
    %v5118 = vsub.f32 %v4159, %v5117
    %5119 = vmatpush1.msra.mxu0 %v5118
    %5120 = vmatprep.subr.mxu0 0.0
    %5121 = vmatpush1.msra.mxu0 0.0
    %5122 = vmatprep.subr.mxu0 0.0
    %5123 = vmatpush1.msra.mxu0 0.0
    %5124 = vmatprep.subr.mxu0 0.0
    %5125 = vmatpush1.msra.mxu0 0.0
    %5126 = vmatprep.subr.mxu0 0.0
    %5127 = vmatpush1.msra.mxu0 0.0
    %5128 = vmatprep.subr.mxu0 0.0
    %5129 = vmatpush1.msra.mxu0 0.0
    %5130 = vmatprep.subr.mxu0 0.0
    %5131 = vmatpush1.msra.mxu0 0.0
    %5132 = vmatprep.subr.mxu0 0.0
    %5133 = vmatpush1.msra.mxu0 0.0
    %5134 = vmatprep.subr.mxu0 0.0
    %5135 = vmatpush1.msra.mxu0 0.0
    %5136 = vmatprep.subr.mxu0 0.0
    %5137 = vmatpush1.msra.mxu0 0.0
    %5138 = vmatprep.subr.mxu0 0.0
    %5139 = vmatpush1.msra.mxu0 0.0
    %5140 = vmatprep.subr.mxu0 0.0
    %5141 = vmatpush1.msra.mxu0 0.0
    %5142 = vmatprep.subr.mxu0 0.0
    %5143 = vmatpush1.msra.mxu0 0.0
    %5144 = vmatprep.subr.mxu0 0.0
    %5145 = vmatpush1.msra.mxu0 0.0
    %5146 = vmatprep.subr.mxu0 0.0
    %5147 = vmatpush1.msra.mxu0 0.0
    %5148 = vmatprep.subr.mxu0 0.0
    %5149 = vmatpush1.msra.mxu0 0.0
    %5150 = vmatprep.subr.mxu0 0.0
    %5151 = vmatpush1.msra.mxu0 0.0
    %5152 = vmatprep.mubr.f32.mxu0 0.0
    %v5153 = vand.u32 %v4809, 4294901760
    %v5154 = vsub.f32 %v4809, %v5153
    %5155 = vmatmul.mubr.f32.gmra.mrb[0].mxu0 %v5154
    %v5156 = vpop.f32.mrb[0].mxu0
    %v5157 = vadd.f32 %v5053, %v5156
    %v5158 = vpop.f32.mrb[0].mxu0
    %5159 = vdwg.mxu0
    %5160 = vmatprep.subr.mxu0 0.0
    %v5161 = vand.u32 %v4144, 4294901760
    %5162 = vmatpush1.msra.mxu0 %v5161
    %5163 = vmatprep.subr.mxu0 0.0
    %v5164 = vand.u32 %v4145, 4294901760
    %5165 = vmatpush1.msra.mxu0 %v5164
    %5166 = vmatprep.subr.mxu0 0.0
    %v5167 = vand.u32 %v4146, 4294901760
    %5168 = vmatpush1.msra.mxu0 %v5167
    %5169 = vmatprep.subr.mxu0 0.0
    %v5170 = vand.u32 %v4147, 4294901760
    %5171 = vmatpush1.msra.mxu0 %v5170
    %5172 = vmatprep.subr.mxu0 0.0
    %v5173 = vand.u32 %v4148, 4294901760
    %5174 = vmatpush1.msra.mxu0 %v5173
    %5175 = vmatprep.subr.mxu0 0.0
    %v5176 = vand.u32 %v4149, 4294901760
    %5177 = vmatpush1.msra.mxu0 %v5176
    %5178 = vmatprep.subr.mxu0 0.0
    %v5179 = vand.u32 %v4150, 4294901760
    %5180 = vmatpush1.msra.mxu0 %v5179
    %5181 = vmatprep.subr.mxu0 0.0
    %v5182 = vand.u32 %v4151, 4294901760
    %5183 = vmatpush1.msra.mxu0 %v5182
    %5184 = vmatprep.subr.mxu0 0.0
    %v5185 = vand.u32 %v4152, 4294901760
    %5186 = vmatpush1.msra.mxu0 %v5185
    %5187 = vmatprep.subr.mxu0 0.0
    %v5188 = vand.u32 %v4153, 4294901760
    %5189 = vmatpush1.msra.mxu0 %v5188
    %5190 = vmatprep.subr.mxu0 0.0
    %v5191 = vand.u32 %v4154, 4294901760
    %5192 = vmatpush1.msra.mxu0 %v5191
    %5193 = vmatprep.subr.mxu0 0.0
    %v5194 = vand.u32 %v4155, 4294901760
    %5195 = vmatpush1.msra.mxu0 %v5194
    %5196 = vmatprep.subr.mxu0 0.0
    %v5197 = vand.u32 %v4156, 4294901760
    %5198 = vmatpush1.msra.mxu0 %v5197
    %5199 = vmatprep.subr.mxu0 0.0
    %v5200 = vand.u32 %v4157, 4294901760
    %5201 = vmatpush1.msra.mxu0 %v5200
    %5202 = vmatprep.subr.mxu0 0.0
    %v5203 = vand.u32 %v4158, 4294901760
    %5204 = vmatpush1.msra.mxu0 %v5203
    %5205 = vmatprep.subr.mxu0 0.0
    %v5206 = vand.u32 %v4159, 4294901760
    %5207 = vmatpush1.msra.mxu0 %v5206
    %5208 = vmatprep.subr.mxu0 0.0
    %5209 = vmatpush1.msra.mxu0 0.0
    %5210 = vmatprep.subr.mxu0 0.0
    %5211 = vmatpush1.msra.mxu0 0.0
    %5212 = vmatprep.subr.mxu0 0.0
    %5213 = vmatpush1.msra.mxu0 0.0
    %5214 = vmatprep.subr.mxu0 0.0
    %5215 = vmatpush1.msra.mxu0 0.0
    %5216 = vmatprep.subr.mxu0 0.0
    %5217 = vmatpush1.msra.mxu0 0.0
    %5218 = vmatprep.subr.mxu0 0.0
    %5219 = vmatpush1.msra.mxu0 0.0
    %5220 = vmatprep.subr.mxu0 0.0
    %5221 = vmatpush1.msra.mxu0 0.0
    %5222 = vmatprep.subr.mxu0 0.0
    %5223 = vmatpush1.msra.mxu0 0.0
    %5224 = vmatprep.subr.mxu0 0.0
    %5225 = vmatpush1.msra.mxu0 0.0
    %5226 = vmatprep.subr.mxu0 0.0
    %5227 = vmatpush1.msra.mxu0 0.0
    %5228 = vmatprep.subr.mxu0 0.0
    %5229 = vmatpush1.msra.mxu0 0.0
    %5230 = vmatprep.subr.mxu0 0.0
    %5231 = vmatpush1.msra.mxu0 0.0
    %5232 = vmatprep.subr.mxu0 0.0
    %5233 = vmatpush1.msra.mxu0 0.0
    %5234 = vmatprep.subr.mxu0 0.0
    %5235 = vmatpush1.msra.mxu0 0.0
    %5236 = vmatprep.subr.mxu0 0.0
    %5237 = vmatpush1.msra.mxu0 0.0
    %5238 = vmatprep.subr.mxu0 0.0
    %5239 = vmatpush1.msra.mxu0 0.0
    %5240 = vmatprep.mubr.f32.mxu0 0.0
    %v5241 = vand.u32 %v4809, 4294901760
    %v5242 = vsub.f32 %v4809, %v5241
    %v5243 = vand.u32 %v5242, 4294901760
    %5244 = vmatmul.mubr.f32.gmra.mrb[0].mxu0 %v5243
    %v5245 = vpop.f32.mrb[0].mxu0
    %v5246 = vadd.f32 %v5157, %v5245
    %v5247 = vpop.f32.mrb[0].mxu0
    %5248 = vdwg.mxu0
    %5249 = vmatprep.subr.mxu0 0.0
    %v5250 = vand.u32 %v4144, 4294901760
    %v5251 = vsub.f32 %v4144, %v5250
    %v5252 = vand.u32 %v5251, 4294901760
    %5253 = vmatpush1.msra.mxu0 %v5252
    %5254 = vmatprep.subr.mxu0 0.0
    %v5255 = vand.u32 %v4145, 4294901760
    %v5256 = vsub.f32 %v4145, %v5255
    %v5257 = vand.u32 %v5256, 4294901760
    %5258 = vmatpush1.msra.mxu0 %v5257
    %5259 = vmatprep.subr.mxu0 0.0
    %v5260 = vand.u32 %v4146, 4294901760
    %v5261 = vsub.f32 %v4146, %v5260
    %v5262 = vand.u32 %v5261, 4294901760
    %5263 = vmatpush1.msra.mxu0 %v5262
    %5264 = vmatprep.subr.mxu0 0.0
    %v5265 = vand.u32 %v4147, 4294901760
    %v5266 = vsub.f32 %v4147, %v5265
    %v5267 = vand.u32 %v5266, 4294901760
    %5268 = vmatpush1.msra.mxu0 %v5267
    %5269 = vmatprep.subr.mxu0 0.0
    %v5270 = vand.u32 %v4148, 4294901760
    %v5271 = vsub.f32 %v4148, %v5270
    %v5272 = vand.u32 %v5271, 4294901760
    %5273 = vmatpush1.msra.mxu0 %v5272
    %5274 = vmatprep.subr.mxu0 0.0
    %v5275 = vand.u32 %v4149, 4294901760
    %v5276 = vsub.f32 %v4149, %v5275
    %v5277 = vand.u32 %v5276, 4294901760
    %5278 = vmatpush1.msra.mxu0 %v5277
    %5279 = vmatprep.subr.mxu0 0.0
    %v5280 = vand.u32 %v4150, 4294901760
    %v5281 = vsub.f32 %v4150, %v5280
    %v5282 = vand.u32 %v5281, 4294901760
    %5283 = vmatpush1.msra.mxu0 %v5282
    %5284 = vmatprep.subr.mxu0 0.0
    %v5285 = vand.u32 %v4151, 4294901760
    %v5286 = vsub.f32 %v4151, %v5285
    %v5287 = vand.u32 %v5286, 4294901760
    %5288 = vmatpush1.msra.mxu0 %v5287
    %5289 = vmatprep.subr.mxu0 0.0
    %v5290 = vand.u32 %v4152, 4294901760
    %v5291 = vsub.f32 %v4152, %v5290
    %v5292 = vand.u32 %v5291, 4294901760
    %5293 = vmatpush1.msra.mxu0 %v5292
    %5294 = vmatprep.subr.mxu0 0.0
    %v5295 = vand.u32 %v4153, 4294901760
    %v5296 = vsub.f32 %v4153, %v5295
    %v5297 = vand.u32 %v5296, 4294901760
    %5298 = vmatpush1.msra.mxu0 %v5297
    %5299 = vmatprep.subr.mxu0 0.0
    %v5300 = vand.u32 %v4154, 4294901760
    %v5301 = vsub.f32 %v4154, %v5300
    %v5302 = vand.u32 %v5301, 4294901760
    %5303 = vmatpush1.msra.mxu0 %v5302
    %5304 = vmatprep.subr.mxu0 0.0
    %v5305 = vand.u32 %v4155, 4294901760
    %v5306 = vsub.f32 %v4155, %v5305
    %v5307 = vand.u32 %v5306, 4294901760
    %5308 = vmatpush1.msra.mxu0 %v5307
    %5309 = vmatprep.subr.mxu0 0.0
    %v5310 = vand.u32 %v4156, 4294901760
    %v5311 = vsub.f32 %v4156, %v5310
    %v5312 = vand.u32 %v5311, 4294901760
    %5313 = vmatpush1.msra.mxu0 %v5312
    %5314 = vmatprep.subr.mxu0 0.0
    %v5315 = vand.u32 %v4157, 4294901760
    %v5316 = vsub.f32 %v4157, %v5315
    %v5317 = vand.u32 %v5316, 4294901760
    %5318 = vmatpush1.msra.mxu0 %v5317
    %5319 = vmatprep.subr.mxu0 0.0
    %v5320 = vand.u32 %v4158, 4294901760
    %v5321 = vsub.f32 %v4158, %v5320
    %v5322 = vand.u32 %v5321, 4294901760
    %5323 = vmatpush1.msra.mxu0 %v5322
    %5324 = vmatprep.subr.mxu0 0.0
    %v5325 = vand.u32 %v4159, 4294901760
    %v5326 = vsub.f32 %v4159, %v5325
    %v5327 = vand.u32 %v5326, 4294901760
    %5328 = vmatpush1.msra.mxu0 %v5327
    %5329 = vmatprep.subr.mxu0 0.0
    %5330 = vmatpush1.msra.mxu0 0.0
    %5331 = vmatprep.subr.mxu0 0.0
    %5332 = vmatpush1.msra.mxu0 0.0
    %5333 = vmatprep.subr.mxu0 0.0
    %5334 = vmatpush1.msra.mxu0 0.0
    %5335 = vmatprep.subr.mxu0 0.0
    %5336 = vmatpush1.msra.mxu0 0.0
    %5337 = vmatprep.subr.mxu0 0.0
    %5338 = vmatpush1.msra.mxu0 0.0
    %5339 = vmatprep.subr.mxu0 0.0
    %5340 = vmatpush1.msra.mxu0 0.0
    %5341 = vmatprep.subr.mxu0 0.0
    %5342 = vmatpush1.msra.mxu0 0.0
    %5343 = vmatprep.subr.mxu0 0.0
    %5344 = vmatpush1.msra.mxu0 0.0
    %5345 = vmatprep.subr.mxu0 0.0
    %5346 = vmatpush1.msra.mxu0 0.0
    %5347 = vmatprep.subr.mxu0 0.0
    %5348 = vmatpush1.msra.mxu0 0.0
    %5349 = vmatprep.subr.mxu0 0.0
    %5350 = vmatpush1.msra.mxu0 0.0
    %5351 = vmatprep.subr.mxu0 0.0
    %5352 = vmatpush1.msra.mxu0 0.0
    %5353 = vmatprep.subr.mxu0 0.0
    %5354 = vmatpush1.msra.mxu0 0.0
    %5355 = vmatprep.subr.mxu0 0.0
    %5356 = vmatpush1.msra.mxu0 0.0
    %5357 = vmatprep.subr.mxu0 0.0
    %5358 = vmatpush1.msra.mxu0 0.0
    %5359 = vmatprep.subr.mxu0 0.0
    %5360 = vmatpush1.msra.mxu0 0.0
    %5361 = vmatprep.mubr.f32.mxu0 0.0
    %v5362 = vand.u32 %v4809, 4294901760
    %5363 = vmatmul.mubr.f32.gmra.mrb[0].mxu0 %v5362
    %v5364 = vpop.f32.mrb[0].mxu0
    %v5365 = vadd.f32 %v5246, %v5364
    %v5366 = vpop.f32.mrb[0].mxu0
    %5367 = vdwg.mxu0
    %5368 = vmatprep.subr.mxu0 0.0
    %v5369 = vand.u32 %v4144, 4294901760
    %5370 = vmatpush1.msra.mxu0 %v5369
    %5371 = vmatprep.subr.mxu0 0.0
    %v5372 = vand.u32 %v4145, 4294901760
    %5373 = vmatpush1.msra.mxu0 %v5372
    %5374 = vmatprep.subr.mxu0 0.0
    %v5375 = vand.u32 %v4146, 4294901760
    %5376 = vmatpush1.msra.mxu0 %v5375
    %5377 = vmatprep.subr.mxu0 0.0
    %v5378 = vand.u32 %v4147, 4294901760
    %5379 = vmatpush1.msra.mxu0 %v5378
    %5380 = vmatprep.subr.mxu0 0.0
    %v5381 = vand.u32 %v4148, 4294901760
    %5382 = vmatpush1.msra.mxu0 %v5381
    %5383 = vmatprep.subr.mxu0 0.0
    %v5384 = vand.u32 %v4149, 4294901760
    %5385 = vmatpush1.msra.mxu0 %v5384
    %5386 = vmatprep.subr.mxu0 0.0
    %v5387 = vand.u32 %v4150, 4294901760
    %5388 = vmatpush1.msra.mxu0 %v5387
    %5389 = vmatprep.subr.mxu0 0.0
    %v5390 = vand.u32 %v4151, 4294901760
    %5391 = vmatpush1.msra.mxu0 %v5390
    %5392 = vmatprep.subr.mxu0 0.0
    %v5393 = vand.u32 %v4152, 4294901760
    %5394 = vmatpush1.msra.mxu0 %v5393
    %5395 = vmatprep.subr.mxu0 0.0
    %v5396 = vand.u32 %v4153, 4294901760
    %5397 = vmatpush1.msra.mxu0 %v5396
    %5398 = vmatprep.subr.mxu0 0.0
    %v5399 = vand.u32 %v4154, 4294901760
    %5400 = vmatpush1.msra.mxu0 %v5399
    %5401 = vmatprep.subr.mxu0 0.0
    %v5402 = vand.u32 %v4155, 4294901760
    %5403 = vmatpush1.msra.mxu0 %v5402
    %5404 = vmatprep.subr.mxu0 0.0
    %v5405 = vand.u32 %v4156, 4294901760
    %5406 = vmatpush1.msra.mxu0 %v5405
    %5407 = vmatprep.subr.mxu0 0.0
    %v5408 = vand.u32 %v4157, 4294901760
    %5409 = vmatpush1.msra.mxu0 %v5408
    %5410 = vmatprep.subr.mxu0 0.0
    %v5411 = vand.u32 %v4158, 4294901760
    %5412 = vmatpush1.msra.mxu0 %v5411
    %5413 = vmatprep.subr.mxu0 0.0
    %v5414 = vand.u32 %v4159, 4294901760
    %5415 = vmatpush1.msra.mxu0 %v5414
    %5416 = vmatprep.subr.mxu0 0.0
    %5417 = vmatpush1.msra.mxu0 0.0
    %5418 = vmatprep.subr.mxu0 0.0
    %5419 = vmatpush1.msra.mxu0 0.0
    %5420 = vmatprep.subr.mxu0 0.0
    %5421 = vmatpush1.msra.mxu0 0.0
    %5422 = vmatprep.subr.mxu0 0.0
    %5423 = vmatpush1.msra.mxu0 0.0
    %5424 = vmatprep.subr.mxu0 0.0
    %5425 = vmatpush1.msra.mxu0 0.0
    %5426 = vmatprep.subr.mxu0 0.0
    %5427 = vmatpush1.msra.mxu0 0.0
    %5428 = vmatprep.subr.mxu0 0.0
    %5429 = vmatpush1.msra.mxu0 0.0
    %5430 = vmatprep.subr.mxu0 0.0
    %5431 = vmatpush1.msra.mxu0 0.0
    %5432 = vmatprep.subr.mxu0 0.0
    %5433 = vmatpush1.msra.mxu0 0.0
    %5434 = vmatprep.subr.mxu0 0.0
    %5435 = vmatpush1.msra.mxu0 0.0
    %5436 = vmatprep.subr.mxu0 0.0
    %5437 = vmatpush1.msra.mxu0 0.0
    %5438 = vmatprep.subr.mxu0 0.0
    %5439 = vmatpush1.msra.mxu0 0.0
    %5440 = vmatprep.subr.mxu0 0.0
    %5441 = vmatpush1.msra.mxu0 0.0
    %5442 = vmatprep.subr.mxu0 0.0
    %5443 = vmatpush1.msra.mxu0 0.0
    %5444 = vmatprep.subr.mxu0 0.0
    %5445 = vmatpush1.msra.mxu0 0.0
    %5446 = vmatprep.subr.mxu0 0.0
    %5447 = vmatpush1.msra.mxu0 0.0
    %5448 = vmatprep.mubr.f32.mxu0 0.0
    %v5449 = vand.u32 %v4809, 4294901760
    %5450 = vmatmul.mubr.f32.gmra.mrb[0].mxu0 %v5449
    %v5451 = vpop.f32.mrb[0].mxu0
    %v5452 = vadd.f32 %v5365, %v5451
    %v5453 = vpop.f32.mrb[0].mxu0
    %5454 = vdwg.mxu0
    %v5455 = vrot.slane %v5452, 4
    %v5456 = vadd.f32 %v5452, %v5455
    %v5457 = vrot.slane %v5456, 2
    %v5458 = vadd.f32 %v5456, %v5457
    %v5459 = vrot.slane %v5458, 1
    %v5460 = vadd.f32 %v5458, %v5459
    %v5461 = vmul.f32 %v5452, %v5452
    %v5462 = vrot.slane %v5461, 4
    %v5463 = vadd.f32 %v5461, %v5462
    %v5464 = vrot.slane %v5463, 2
    %v5465 = vadd.f32 %v5463, %v5464
    %v5466 = vrot.slane %v5465, 1
    %v5467 = vadd.f32 %v5465, %v5466
    %v5468 = vmul.f32 %v5460, 0.125
    %v5469 = vmul.f32 %v5467, 0.125
    %v5470 = vmul.f32 %v5468, %v5468
    %v5471 = vsub.f32 %v5469, %v5470
    %v5472 = vmax.f32 %v5471, 0.0
    %v5473 = vsub.f32 %v5452, %v5468
    %v5474 = vadd.f32 %v5472, 1e-05
    %v5475 = vrsqrt.pop %v5474
    %v5476 = vmul.f32 %v5473, %v5475
    %v5477 = vlaneseq
    %v5478 = vshrl.u32 %v5477, 7
    %v5479 = vsub.s32 0, %v5478
    %v5480 = vrot.slane %v4162, %v5479
    %v5481 = vmul.f32 %v5476, %v5480
    %v5482 = vlaneseq
    %v5483 = vshrl.u32 %v5482, 7
    %v5484 = vsub.s32 0, %v5483
    %v5485 = vrot.slane %v4163, %v5484
    %v5486 = vadd.f32 %v5481, %v5485
    %v5487 = vadd.f32 %v1391, %v2755
    %v5488 = vadd.f32 %v5487, %v4120
    %v5489 = vadd.f32 %v5488, %v5486
    %5490 = vst [vmem:[%s4] sm:$0xff] %v5489
    // Predicated region
    $region22: #{_forward_impl.1} parent=1 // pred_check
      _
    $region23: #{_forward_impl.1} parent=1 // pred_check_branch
      %5492 = sbr.rel (0) target = $region25
    $region24: #{_forward_impl.1} parent=1 // pred_region
      _
    $region25: #{_forward_impl.1} parent=1 // pred_fallthru
      _
    // Predicated region
    $region26: #{_forward_impl.1} parent=1 // pred_check
      _
    $region27: #{_forward_impl.1} parent=1 // pred_check_branch
      %5494 = sbr.rel (0) target = $region29
    $region28: #{_forward_impl.1} parent=1 // pred_region
      _
    $region29: #{_forward_impl.1} parent=1 // pred_fallthru
      _
    %5495 = vsyncpa [#allocation3], 1

</llo_original>
